<compile_context>
chip_gen: v7x
topology: tpu7x:2x2x1
jax: 0.10.0
libtpu: 0.0.40
codegen_flags: <defaults>
</compile_context>

<pallas_src>
import jax
import jax.numpy as jnp
from jax import lax
from jax.experimental import pallas as pl
from jax.experimental.pallas import tpu as pltpu


def decoder_kernel(
    y_ref, k1_ref, v1_ref, k2_ref, v2_ref,
    wq1_ref, bq1_ref, w0_ref, b0_ref, g1_ref, be1_ref,
    wq2_ref, bq2_ref, w1_ref, b1_ref, g2_ref, be2_ref,
    w2_ref, b2_ref, w3_ref, b3_ref, g3_ref, be3_ref,
    out_ref,
):
    TM, p = out_ref.shape
    q_idx = pl.program_id(0)
    row0 = pl.multiple_of(q_idx * TM, TM)
    inv_sqrt_dk = 1.0 / (float(p) ** 0.5)

    Y_tile = y_ref[...]                      # (TM, p) f32: this step's queries + residual

    def linear(x_f32, w_ref, b_ref):
        # bf16 MXU operands, f32 accumulation; bias add stays f32.
        return jnp.dot(x_f32.astype(jnp.bfloat16), w_ref[...],
                       preferred_element_type=jnp.float32) + b_ref[...]

    def scores(q_bf16, k_bf16):
        # Q @ K.T with the transpose folded into dot_general (contract last dims).
        return lax.dot_general(q_bf16, k_bf16,
                               dimension_numbers=(((1,), (1,)), ((), ())),
                               preferred_element_type=jnp.float32)

    def layernorm(x, g_ref, b_ref, eps=1e-5):
        mu = jnp.mean(x, axis=-1, keepdims=True)
        var = jnp.mean((x - mu) ** 2, axis=-1, keepdims=True)   # biased (torch LN)
        return (x - mu) * lax.rsqrt(var + eps) * g_ref[...] + b_ref[...]

    # ---- block 1: masked (causal) self-attention, kv-tiled online softmax ----
    # Scale folded into Q (f32) before the bf16 cast; K1/V1 are precomputed bf16.
    Q1 = (linear(Y_tile, wq1_ref, bq1_ref) * inv_sqrt_dk).astype(jnp.bfloat16)
    row_ids = lax.broadcasted_iota(jnp.int32, (TM, TM), 0) + row0

    def kv_step(kv, carry):
        m_i, l_i, acc = carry
        off = pl.multiple_of(kv * TM, TM)
        k_t = k1_ref[pl.ds(off, TM), :]                        # (TM, p) bf16
        v_t = v1_ref[pl.ds(off, TM), :]                        # (TM, p) bf16
        s = scores(Q1, k_t)                                    # (TM, TM) f32
        col_ids = lax.broadcasted_iota(jnp.int32, (TM, TM), 1) + off
        s = jnp.where(col_ids <= row_ids, s, jnp.float32(-1e30))
        m_new = jnp.maximum(m_i, jnp.max(s, axis=-1, keepdims=True))
        alpha = jnp.exp(m_i - m_new)
        pexp = jnp.exp(s - m_new)
        l_new = alpha * l_i + jnp.sum(pexp, axis=-1, keepdims=True)
        acc_new = alpha * acc + jnp.dot(pexp.astype(jnp.bfloat16), v_t,
                                        preferred_element_type=jnp.float32)
        return m_new, l_new, acc_new

    m0 = jnp.full((TM, 1), -1e30, jnp.float32)
    l0 = jnp.zeros((TM, 1), jnp.float32)
    a0 = jnp.zeros((TM, p), jnp.float32)
    # Causal skip: only kv tiles <= the current query tile are ever touched.
    _, l_i, acc = lax.fori_loop(0, q_idx + 1, kv_step, (m0, l0, a0))
    AV = acc * pl.reciprocal(l_i, approx=True)
    U1 = layernorm(linear(AV, w0_ref, b0_ref) + Y_tile, g1_ref, be1_ref)

    # ---- block 2: cross-attention over encoder memory (K2/V2 precomputed) ----
    Q2 = (linear(U1, wq2_ref, bq2_ref) * inv_sqrt_dk).astype(jnp.bfloat16)
    S2 = scores(Q2, k2_ref[...])                               # (TM, n)
    S2 = S2 - jnp.max(S2, axis=-1, keepdims=True)
    E2 = jnp.exp(S2)
    A2 = E2 * pl.reciprocal(jnp.sum(E2, axis=-1, keepdims=True), approx=True)
    AV2 = jnp.dot(A2.astype(jnp.bfloat16), v2_ref[...],
                  preferred_element_type=jnp.float32)
    U2 = layernorm(linear(AV2, w1_ref, b1_ref) + U1, g2_ref, be2_ref)

    # ---- block 3: position-wise feed-forward ----
    Z = jnp.maximum(linear(U2, w2_ref, b2_ref), 0.0)           # (TM, d_ff) ReLU
    U3 = layernorm(linear(Z, w3_ref, b3_ref) + U2, g3_ref, be3_ref)

    out_ref[...] = U3.astype(out_ref.dtype)                    # lane-dense (TM, p) store


def _const_spec(shape):
    """VMEM-resident (constant-index) input; single-buffered to halve residency."""
    try:
        return pl.BlockSpec(shape, lambda i: (0, 0), pipeline_mode=pl.Buffered(1))
    except Exception:                     # older jax without pipeline_mode support
        return pl.BlockSpec(shape, lambda i: (0, 0))


def transformer_decoder(Xp, Y, params, *, tm=128):
    m, p = Y.shape
    tm = min(tm, m)
    assert m % tm == 0, "decoder length must be a multiple of the row tile"

    (wq1, bq1, wk1, bk1, wv1, bv1, w0, b0, g1, be1,
     wq2, bq2, wk2, bk2, wv2, bv2, w1, b1, g2, be2,
     w2, b2, w3, b3, g3, be3) = params

    def mm(a, b):
        return jnp.dot(a.astype(jnp.bfloat16), b.astype(jnp.bfloat16),
                       preferred_element_type=jnp.float32)

    # Hoisted K/V projections: computed once here (plain XLA matmuls, same bf16/f32
    # numerics as the kernel), stored bf16, kept VMEM-resident across all grid steps.
    K1 = (mm(Y, wk1) + bk1).astype(jnp.bfloat16)    # (m, p)
    V1 = (mm(Y, wv1) + bv1).astype(jnp.bfloat16)    # (m, p)
    K2 = (mm(Xp, wk2) + bk2).astype(jnp.bfloat16)   # (n, p)
    V2 = (mm(Xp, wv2) + bv2).astype(jnp.bfloat16)   # (n, p)

    # Remaining weights (2-D, fan_in > 1) stored in bf16; biases & LN params stay f32.
    def prep(a):
        return a.astype(jnp.bfloat16) if (a.ndim == 2 and a.shape[0] > 1) else a

    kernel_args = [Y, K1, V1, K2, V2,
                   prep(wq1), bq1, prep(w0), b0, g1, be1,
                   prep(wq2), bq2, prep(w1), b1, g2, be2,
                   prep(w2), b2, prep(w3), b3, g3, be3]

    in_specs = ([pl.BlockSpec((tm, p), lambda i: (i, 0))]      # Y: per-step tile, pipelined
                + [_const_spec(a.shape) for a in kernel_args[1:]])
    out_specs = pl.BlockSpec((tm, p), lambda i: (i, 0))

    return pl.pallas_call(
        decoder_kernel,
        out_shape=jax.ShapeDtypeStruct((m, p), jnp.float32),
        grid_spec=pltpu.PrefetchScalarGridSpec(
            num_scalar_prefetch=0,
            grid=(m // tm,),
            in_specs=in_specs,
            out_specs=out_specs,
        ),
        compiler_params=pltpu.CompilerParams(
            dimension_semantics=("parallel",),     # shard row tiles across TCs (v7x)
            vmem_limit_bytes=48 * 1024 * 1024,     # fits v7x's 64 MiB; loosens v5e/v6e cap
        ),
    )(*kernel_args)


# ---------------- parameter construction (deterministic, torch-like init) ----------------
def _linear_params(key, fan_in, fan_out):
    kw, kb = jax.random.split(key)
    bound = 1.0 / (fan_in ** 0.5)
    # stored as (in, out): kernel computes x @ W + b  ==  torch x @ W.T + b
    w = jax.random.uniform(kw, (fan_in, fan_out), jnp.float32, -bound, bound)
    b = jax.random.uniform(kb, (1, fan_out), jnp.float32, -bound, bound)
    return w, b


def make_params(key, p, d_ff):
    keys = jax.random.split(key, 10)
    params = []
    for i in range(4):                                   # self-attn: Q1, K1, V1, W0
        params += list(_linear_params(keys[i], p, p))
    params += [jnp.ones((1, p), jnp.float32), jnp.zeros((1, p), jnp.float32)]   # ln1
    for i in range(4, 8):                                # cross-attn: Q2, K2, V2, W1
        params += list(_linear_params(keys[i], p, p))
    params += [jnp.ones((1, p), jnp.float32), jnp.zeros((1, p), jnp.float32)]   # ln2
    params += list(_linear_params(keys[8], p, d_ff))     # FFN W2
    params += list(_linear_params(keys[9], d_ff, p))     # FFN W3
    params += [jnp.ones((1, p), jnp.float32), jnp.zeros((1, p), jnp.float32)]   # ln3
    return params


# ---------------- pure-JAX reference (same bf16-matmul numerics) ----------------
def reference(Xp, Y, params):
    (wq1, bq1, wk1, bk1, wv1, bv1, w0, b0, g1, be1,
     wq2, bq2, wk2, bk2, wv2, bv2, w1, b1, g2, be2,
     w2, b2, w3, b3, g3, be3) = params
    m, p = Y.shape
    scale = 1.0 / (p ** 0.5)

    def mm(a, b):
        return jnp.dot(a.astype(jnp.bfloat16), b.astype(jnp.bfloat16),
                       preferred_element_type=jnp.float32)

    def lin(x, w, b):
        return mm(x, w) + b

    def ln(x, g, b):
        mu = jnp.mean(x, -1, keepdims=True)
        var = jnp.mean((x - mu) ** 2, -1, keepdims=True)
        return (x - mu) / jnp.sqrt(var + 1e-5) * g + b

    Q, K, V = lin(Y, wq1, bq1), lin(Y, wk1, bk1), lin(Y, wv1, bv1)
    S = mm(Q, K.T) * scale
    S = jnp.where(jnp.tril(jnp.ones((m, m), bool)), S, jnp.float32(-1e30))
    A = jax.nn.softmax(S, axis=-1)
    U1 = ln(lin(mm(A, V), w0, b0) + Y, g1, be1)
    Q, K, V = lin(U1, wq2, bq2), lin(Xp, wk2, bk2), lin(Xp, wv2, bv2)
    A = jax.nn.softmax(mm(Q, K.T) * scale, axis=-1)
    U2 = ln(lin(mm(A, V), w1, b1) + U1, g2, be2)
    Z = jnp.maximum(lin(U2, w2, b2), 0.0)
    return ln(lin(Z, w3, b3) + U2, g3, be3)


if __name__ == "__main__":
    # small but lane-aligned shapes: p, d_ff, n multiples of 128; m a multiple of tm=128.
    m, n, p, d_ff = 256, 128, 128, 256

    key = jax.random.PRNGKey(0)
    k_xp, k_y, k_param = jax.random.split(key, 3)
    Xp = jax.random.normal(k_xp, (n, p), jnp.float32)
    Y = jax.random.normal(k_y, (m, p), jnp.float32)
    params = make_params(k_param, p, d_ff)

    out = transformer_decoder(Xp, Y, params, tm=128)
    out = jax.block_until_ready(out)

    ref = reference(Xp, Y, params)
    assert out.shape == (m, p)
    # bf16 matmul inputs + EUP approx reciprocal + online-softmax rescaling -> modest tolerance
    assert jnp.allclose(out, ref, atol=2e-2, rtol=2e-2), "mismatch vs pure-JAX reference"

    print("KERNEL_OK")
</pallas_src>

<mosaic_0001>
module attributes {stable_mosaic.version = 11 : i64} {
  func.func @decoder_kernel(%arg0: i32, %arg1: memref<128x128xf32, #tpu.memory_space<vmem>>, %arg2: memref<256x128xbf16, #tpu.memory_space<vmem>>, %arg3: memref<256x128xbf16, #tpu.memory_space<vmem>>, %arg4: memref<128x128xbf16, #tpu.memory_space<vmem>>, %arg5: memref<128x128xbf16, #tpu.memory_space<vmem>>, %arg6: memref<128x128xbf16, #tpu.memory_space<vmem>>, %arg7: memref<1x128xf32, #tpu.memory_space<vmem>>, %arg8: memref<128x128xbf16, #tpu.memory_space<vmem>>, %arg9: memref<1x128xf32, #tpu.memory_space<vmem>>, %arg10: memref<1x128xf32, #tpu.memory_space<vmem>>, %arg11: memref<1x128xf32, #tpu.memory_space<vmem>>, %arg12: memref<128x128xbf16, #tpu.memory_space<vmem>>, %arg13: memref<1x128xf32, #tpu.memory_space<vmem>>, %arg14: memref<128x128xbf16, #tpu.memory_space<vmem>>, %arg15: memref<1x128xf32, #tpu.memory_space<vmem>>, %arg16: memref<1x128xf32, #tpu.memory_space<vmem>>, %arg17: memref<1x128xf32, #tpu.memory_space<vmem>>, %arg18: memref<128x256xbf16, #tpu.memory_space<vmem>>, %arg19: memref<1x256xf32, #tpu.memory_space<vmem>>, %arg20: memref<256x128xbf16, #tpu.memory_space<vmem>>, %arg21: memref<1x128xf32, #tpu.memory_space<vmem>>, %arg22: memref<1x128xf32, #tpu.memory_space<vmem>>, %arg23: memref<1x128xf32, #tpu.memory_space<vmem>>, %arg24: memref<128x128xf32, #tpu.memory_space<vmem>>) attributes {dimension_semantics = [#tpu.dimension_semantics<parallel>], iteration_bounds = array<i64: 2>, scalar_prefetch = 0 : i64, scratch_operands = 0 : i64, tpu.core_type = #tpu.core_type<tc>, window_params = [{transform_indices = @transform_0, window_bounds = array<i64: 128, 128>}, {pipeline_mode = #tpu.pipeline_mode<synchronous>, transform_indices = @transform_1, window_bounds = array<i64: 256, 128>}, {pipeline_mode = #tpu.pipeline_mode<synchronous>, transform_indices = @transform_2, window_bounds = array<i64: 256, 128>}, {pipeline_mode = #tpu.pipeline_mode<synchronous>, transform_indices = @transform_3, window_bounds = array<i64: 128, 128>}, {pipeline_mode = #tpu.pipeline_mode<synchronous>, transform_indices = @transform_4, window_bounds = array<i64: 128, 128>}, {pipeline_mode = #tpu.pipeline_mode<synchronous>, transform_indices = @transform_5, window_bounds = array<i64: 128, 128>}, {pipeline_mode = #tpu.pipeline_mode<synchronous>, transform_indices = @transform_6, window_bounds = array<i64: 1, 128>}, {pipeline_mode = #tpu.pipeline_mode<synchronous>, transform_indices = @transform_7, window_bounds = array<i64: 128, 128>}, {pipeline_mode = #tpu.pipeline_mode<synchronous>, transform_indices = @transform_8, window_bounds = array<i64: 1, 128>}, {pipeline_mode = #tpu.pipeline_mode<synchronous>, transform_indices = @transform_9, window_bounds = array<i64: 1, 128>}, {pipeline_mode = #tpu.pipeline_mode<synchronous>, transform_indices = @transform_10, window_bounds = array<i64: 1, 128>}, {pipeline_mode = #tpu.pipeline_mode<synchronous>, transform_indices = @transform_11, window_bounds = array<i64: 128, 128>}, {pipeline_mode = #tpu.pipeline_mode<synchronous>, transform_indices = @transform_12, window_bounds = array<i64: 1, 128>}, {pipeline_mode = #tpu.pipeline_mode<synchronous>, transform_indices = @transform_13, window_bounds = array<i64: 128, 128>}, {pipeline_mode = #tpu.pipeline_mode<synchronous>, transform_indices = @transform_14, window_bounds = array<i64: 1, 128>}, {pipeline_mode = #tpu.pipeline_mode<synchronous>, transform_indices = @transform_15, window_bounds = array<i64: 1, 128>}, {pipeline_mode = #tpu.pipeline_mode<synchronous>, transform_indices = @transform_16, window_bounds = array<i64: 1, 128>}, {pipeline_mode = #tpu.pipeline_mode<synchronous>, transform_indices = @transform_17, window_bounds = array<i64: 128, 256>}, {pipeline_mode = #tpu.pipeline_mode<synchronous>, transform_indices = @transform_18, window_bounds = array<i64: 1, 256>}, {pipeline_mode = #tpu.pipeline_mode<synchronous>, transform_indices = @transform_19, window_bounds = array<i64: 256, 128>}, {pipeline_mode = #tpu.pipeline_mode<synchronous>, transform_indices = @transform_20, window_bounds = array<i64: 1, 128>}, {pipeline_mode = #tpu.pipeline_mode<synchronous>, transform_indices = @transform_21, window_bounds = array<i64: 1, 128>}, {pipeline_mode = #tpu.pipeline_mode<synchronous>, transform_indices = @transform_22, window_bounds = array<i64: 1, 128>}, {transform_indices = @transform_23, window_bounds = array<i64: 128, 128>}]} {
    %c128_i32 = arith.constant 128 : i32
    %0 = arith.muli %arg0, %c128_i32 : i32
    %1 = tpu.assume_multiple %0, 128 : i32
    %c0 = arith.constant 0 : index
    %c0_0 = arith.constant 0 : index
    %2 = vector.load %arg1[%c0, %c0_0] : memref<128x128xf32, #tpu.memory_space<vmem>>, vector<128x128xf32>
    %3 = arith.truncf %2 : vector<128x128xf32> to vector<128x128xbf16>
    %c0_1 = arith.constant 0 : index
    %c0_2 = arith.constant 0 : index
    %4 = vector.load %arg6[%c0_1, %c0_2] : memref<128x128xbf16, #tpu.memory_space<vmem>>, vector<128x128xbf16>
    %cst = arith.constant dense<0.000000e+00> : vector<128x128xf32>
    %5 = tpu.matmul %3, %4, %cst {dimension_numbers = #tpu.dot_dimension_numbers<[1], [0], [0], [1], [0, 0, 1, 1], [], []>} : vector<128x128xbf16>, vector<128x128xbf16>, vector<128x128xf32> -> vector<128x128xf32>
    %c0_3 = arith.constant 0 : index
    %c0_4 = arith.constant 0 : index
    %6 = vector.load %arg7[%c0_3, %c0_4] : memref<1x128xf32, #tpu.memory_space<vmem>>, vector<1x128xf32>
    %7 = vector.broadcast %6 : vector<1x128xf32> to vector<128x128xf32>
    %8 = arith.addf %5, %7 : vector<128x128xf32>
    %cst_5 = arith.constant 0.0883883461 : f32
    %9 = vector.broadcast %cst_5 : f32 to vector<128x128xf32>
    %10 = arith.mulf %8, %9 : vector<128x128xf32>
    %11 = arith.truncf %10 : vector<128x128xf32> to vector<128x128xbf16>
    %12 = tpu.iota {dimensions = array<i32: 0>} : vector<128x128xi32>
    %13 = vector.broadcast %1 : i32 to vector<128x128xi32>
    %14 = arith.addi %12, %13 : vector<128x128xi32>
    %cst_6 = arith.constant -1.000000e+30 : f32
    %15 = vector.broadcast %cst_6 : f32 to vector<128x1xf32>
    %cst_7 = arith.constant 0.000000e+00 : f32
    %16 = vector.broadcast %cst_7 : f32 to vector<128x1xf32>
    %cst_8 = arith.constant 0.000000e+00 : f32
    %17 = vector.broadcast %cst_8 : f32 to vector<128x128xf32>
    %c1_i32 = arith.constant 1 : i32
    %18 = arith.addi %arg0, %c1_i32 : i32
    %c0_i32 = arith.constant 0 : i32
    %19 = arith.subi %18, %c0_i32 : i32
    %20 = arith.addi %c0_i32, %19 : i32
    %c1_i32_9 = arith.constant 1 : i32
    %21:3 = scf.for %arg25 = %c0_i32 to %20 step %c1_i32_9 iter_args(%arg26 = %15, %arg27 = %16, %arg28 = %17) -> (vector<128x1xf32>, vector<128x1xf32>, vector<128x128xf32>)  : i32 {
      %c128_i32_74 = arith.constant 128 : i32
      %151 = arith.muli %arg25, %c128_i32_74 : i32
      %152 = tpu.assume_multiple %151, 128 : i32
      %153 = arith.index_cast %152 : i32 to index
      %c0_75 = arith.constant 0 : index
      %154 = vector.load %arg2[%153, %c0_75] : memref<256x128xbf16, #tpu.memory_space<vmem>>, vector<128x128xbf16>
      %155 = arith.index_cast %152 : i32 to index
      %c0_76 = arith.constant 0 : index
      %156 = vector.load %arg3[%155, %c0_76] : memref<256x128xbf16, #tpu.memory_space<vmem>>, vector<128x128xbf16>
      %cst_77 = arith.constant dense<0.000000e+00> : vector<128x128xf32>
      %157 = tpu.matmul %11, %154, %cst_77 {dimension_numbers = #tpu.dot_dimension_numbers<[1], [1], [0], [0], [0, 0, 1, 0], [], []>} : vector<128x128xbf16>, vector<128x128xbf16>, vector<128x128xf32> -> vector<128x128xf32>
      %158 = tpu.iota {dimensions = array<i32: 1>} : vector<128x128xi32>
      %159 = vector.broadcast %152 : i32 to vector<128x128xi32>
      %160 = arith.addi %158, %159 : vector<128x128xi32>
      %161 = arith.cmpi sle, %160, %14 : vector<128x128xi32>
      %cst_78 = arith.constant -1.000000e+30 : f32
      %162 = vector.broadcast %cst_78 : f32 to vector<128x128xf32>
      %163 = arith.select %161, %157, %162 : vector<128x128xi1>, vector<128x128xf32>
      %cst_79 = arith.constant dense<0xFF800000> : vector<128xf32>
      %164 = vector.multi_reduction <maximumf>, %163, %cst_79 [1] : vector<128x128xf32> to vector<128xf32>
      %165 = vector.shape_cast %164 : vector<128xf32> to vector<128x1xf32>
      %166 = arith.maximumf %arg26, %165 : vector<128x1xf32>
      %167 = arith.subf %arg26, %166 : vector<128x1xf32>
      %168 = math.exp %167 : vector<128x1xf32>
      %169 = vector.broadcast %166 : vector<128x1xf32> to vector<128x128xf32>
      %170 = arith.subf %163, %169 : vector<128x128xf32>
      %171 = math.exp %170 : vector<128x128xf32>
      %172 = arith.mulf %168, %arg27 : vector<128x1xf32>
      %cst_80 = arith.constant dense<0.000000e+00> : vector<128xf32>
      %173 = vector.multi_reduction <add>, %171, %cst_80 [1] : vector<128x128xf32> to vector<128xf32>
      %174 = vector.shape_cast %173 : vector<128xf32> to vector<128x1xf32>
      %175 = arith.addf %172, %174 : vector<128x1xf32>
      %176 = vector.broadcast %168 : vector<128x1xf32> to vector<128x128xf32>
      %177 = arith.mulf %176, %arg28 : vector<128x128xf32>
      %178 = arith.truncf %171 : vector<128x128xf32> to vector<128x128xbf16>
      %cst_81 = arith.constant dense<0.000000e+00> : vector<128x128xf32>
      %179 = tpu.matmul %178, %156, %cst_81 {dimension_numbers = #tpu.dot_dimension_numbers<[1], [0], [0], [1], [0, 0, 1, 1], [], []>} : vector<128x128xbf16>, vector<128x128xbf16>, vector<128x128xf32> -> vector<128x128xf32>
      %180 = arith.addf %177, %179 : vector<128x128xf32>
      scf.yield %166, %175, %180 : vector<128x1xf32>, vector<128x1xf32>, vector<128x128xf32>
    }
    %22 = tpu.reciprocal %21#1 {approx = true} : vector<128x1xf32> -> vector<128x1xf32>
    %23 = vector.broadcast %22 : vector<128x1xf32> to vector<128x128xf32>
    %24 = arith.mulf %21#2, %23 : vector<128x128xf32>
    %25 = arith.truncf %24 : vector<128x128xf32> to vector<128x128xbf16>
    %c0_10 = arith.constant 0 : index
    %c0_11 = arith.constant 0 : index
    %26 = vector.load %arg8[%c0_10, %c0_11] : memref<128x128xbf16, #tpu.memory_space<vmem>>, vector<128x128xbf16>
    %cst_12 = arith.constant dense<0.000000e+00> : vector<128x128xf32>
    %27 = tpu.matmul %25, %26, %cst_12 {dimension_numbers = #tpu.dot_dimension_numbers<[1], [0], [0], [1], [0, 0, 1, 1], [], []>} : vector<128x128xbf16>, vector<128x128xbf16>, vector<128x128xf32> -> vector<128x128xf32>
    %c0_13 = arith.constant 0 : index
    %c0_14 = arith.constant 0 : index
    %28 = vector.load %arg9[%c0_13, %c0_14] : memref<1x128xf32, #tpu.memory_space<vmem>>, vector<1x128xf32>
    %29 = vector.broadcast %28 : vector<1x128xf32> to vector<128x128xf32>
    %30 = arith.addf %27, %29 : vector<128x128xf32>
    %31 = arith.addf %30, %2 : vector<128x128xf32>
    %cst_15 = arith.constant dense<0.000000e+00> : vector<128xf32>
    %32 = vector.multi_reduction <add>, %31, %cst_15 [1] : vector<128x128xf32> to vector<128xf32>
    %33 = vector.shape_cast %32 : vector<128xf32> to vector<128x1xf32>
    %cst_16 = arith.constant 1.280000e+02 : f32
    %34 = vector.broadcast %cst_16 : f32 to vector<128x1xf32>
    %35 = arith.divf %33, %34 : vector<128x1xf32>
    %36 = vector.broadcast %35 : vector<128x1xf32> to vector<128x128xf32>
    %37 = arith.subf %31, %36 : vector<128x128xf32>
    %38 = arith.mulf %37, %37 : vector<128x128xf32>
    %cst_17 = arith.constant dense<0.000000e+00> : vector<128xf32>
    %39 = vector.multi_reduction <add>, %38, %cst_17 [1] : vector<128x128xf32> to vector<128xf32>
    %40 = vector.shape_cast %39 : vector<128xf32> to vector<128x1xf32>
    %cst_18 = arith.constant 1.280000e+02 : f32
    %41 = vector.broadcast %cst_18 : f32 to vector<128x1xf32>
    %42 = arith.divf %40, %41 : vector<128x1xf32>
    %43 = vector.broadcast %35 : vector<128x1xf32> to vector<128x128xf32>
    %44 = arith.subf %31, %43 : vector<128x128xf32>
    %cst_19 = arith.constant 9.99999974E-6 : f32
    %45 = vector.broadcast %cst_19 : f32 to vector<128x1xf32>
    %46 = arith.addf %42, %45 : vector<128x1xf32>
    %47 = math.rsqrt %46 : vector<128x1xf32>
    %48 = vector.broadcast %47 : vector<128x1xf32> to vector<128x128xf32>
    %49 = arith.mulf %44, %48 : vector<128x128xf32>
    %c0_20 = arith.constant 0 : index
    %c0_21 = arith.constant 0 : index
    %50 = vector.load %arg10[%c0_20, %c0_21] : memref<1x128xf32, #tpu.memory_space<vmem>>, vector<1x128xf32>
    %51 = vector.broadcast %50 : vector<1x128xf32> to vector<128x128xf32>
    %52 = arith.mulf %49, %51 : vector<128x128xf32>
    %c0_22 = arith.constant 0 : index
    %c0_23 = arith.constant 0 : index
    %53 = vector.load %arg11[%c0_22, %c0_23] : memref<1x128xf32, #tpu.memory_space<vmem>>, vector<1x128xf32>
    %54 = vector.broadcast %53 : vector<1x128xf32> to vector<128x128xf32>
    %55 = arith.addf %52, %54 : vector<128x128xf32>
    %56 = arith.truncf %55 : vector<128x128xf32> to vector<128x128xbf16>
    %c0_24 = arith.constant 0 : index
    %c0_25 = arith.constant 0 : index
    %57 = vector.load %arg12[%c0_24, %c0_25] : memref<128x128xbf16, #tpu.memory_space<vmem>>, vector<128x128xbf16>
    %cst_26 = arith.constant dense<0.000000e+00> : vector<128x128xf32>
    %58 = tpu.matmul %56, %57, %cst_26 {dimension_numbers = #tpu.dot_dimension_numbers<[1], [0], [0], [1], [0, 0, 1, 1], [], []>} : vector<128x128xbf16>, vector<128x128xbf16>, vector<128x128xf32> -> vector<128x128xf32>
    %c0_27 = arith.constant 0 : index
    %c0_28 = arith.constant 0 : index
    %59 = vector.load %arg13[%c0_27, %c0_28] : memref<1x128xf32, #tpu.memory_space<vmem>>, vector<1x128xf32>
    %60 = vector.broadcast %59 : vector<1x128xf32> to vector<128x128xf32>
    %61 = arith.addf %58, %60 : vector<128x128xf32>
    %cst_29 = arith.constant 0.0883883461 : f32
    %62 = vector.broadcast %cst_29 : f32 to vector<128x128xf32>
    %63 = arith.mulf %61, %62 : vector<128x128xf32>
    %64 = arith.truncf %63 : vector<128x128xf32> to vector<128x128xbf16>
    %c0_30 = arith.constant 0 : index
    %c0_31 = arith.constant 0 : index
    %65 = vector.load %arg4[%c0_30, %c0_31] : memref<128x128xbf16, #tpu.memory_space<vmem>>, vector<128x128xbf16>
    %cst_32 = arith.constant dense<0.000000e+00> : vector<128x128xf32>
    %66 = tpu.matmul %64, %65, %cst_32 {dimension_numbers = #tpu.dot_dimension_numbers<[1], [1], [0], [0], [0, 0, 1, 0], [], []>} : vector<128x128xbf16>, vector<128x128xbf16>, vector<128x128xf32> -> vector<128x128xf32>
    %cst_33 = arith.constant dense<0xFF800000> : vector<128xf32>
    %67 = vector.multi_reduction <maximumf>, %66, %cst_33 [1] : vector<128x128xf32> to vector<128xf32>
    %68 = vector.shape_cast %67 : vector<128xf32> to vector<128x1xf32>
    %69 = vector.broadcast %68 : vector<128x1xf32> to vector<128x128xf32>
    %70 = arith.subf %66, %69 : vector<128x128xf32>
    %71 = math.exp %70 : vector<128x128xf32>
    %cst_34 = arith.constant dense<0.000000e+00> : vector<128xf32>
    %72 = vector.multi_reduction <add>, %71, %cst_34 [1] : vector<128x128xf32> to vector<128xf32>
    %73 = vector.shape_cast %72 : vector<128xf32> to vector<128x1xf32>
    %74 = tpu.reciprocal %73 {approx = true} : vector<128x1xf32> -> vector<128x1xf32>
    %75 = vector.broadcast %74 : vector<128x1xf32> to vector<128x128xf32>
    %76 = arith.mulf %71, %75 : vector<128x128xf32>
    %77 = arith.truncf %76 : vector<128x128xf32> to vector<128x128xbf16>
    %c0_35 = arith.constant 0 : index
    %c0_36 = arith.constant 0 : index
    %78 = vector.load %arg5[%c0_35, %c0_36] : memref<128x128xbf16, #tpu.memory_space<vmem>>, vector<128x128xbf16>
    %cst_37 = arith.constant dense<0.000000e+00> : vector<128x128xf32>
    %79 = tpu.matmul %77, %78, %cst_37 {dimension_numbers = #tpu.dot_dimension_numbers<[1], [0], [0], [1], [0, 0, 1, 1], [], []>} : vector<128x128xbf16>, vector<128x128xbf16>, vector<128x128xf32> -> vector<128x128xf32>
    %80 = arith.truncf %79 : vector<128x128xf32> to vector<128x128xbf16>
    %c0_38 = arith.constant 0 : index
    %c0_39 = arith.constant 0 : index
    %81 = vector.load %arg14[%c0_38, %c0_39] : memref<128x128xbf16, #tpu.memory_space<vmem>>, vector<128x128xbf16>
    %cst_40 = arith.constant dense<0.000000e+00> : vector<128x128xf32>
    %82 = tpu.matmul %80, %81, %cst_40 {dimension_numbers = #tpu.dot_dimension_numbers<[1], [0], [0], [1], [0, 0, 1, 1], [], []>} : vector<128x128xbf16>, vector<128x128xbf16>, vector<128x128xf32> -> vector<128x128xf32>
    %c0_41 = arith.constant 0 : index
    %c0_42 = arith.constant 0 : index
    %83 = vector.load %arg15[%c0_41, %c0_42] : memref<1x128xf32, #tpu.memory_space<vmem>>, vector<1x128xf32>
    %84 = vector.broadcast %83 : vector<1x128xf32> to vector<128x128xf32>
    %85 = arith.addf %82, %84 : vector<128x128xf32>
    %86 = arith.addf %85, %55 : vector<128x128xf32>
    %cst_43 = arith.constant dense<0.000000e+00> : vector<128xf32>
    %87 = vector.multi_reduction <add>, %86, %cst_43 [1] : vector<128x128xf32> to vector<128xf32>
    %88 = vector.shape_cast %87 : vector<128xf32> to vector<128x1xf32>
    %cst_44 = arith.constant 1.280000e+02 : f32
    %89 = vector.broadcast %cst_44 : f32 to vector<128x1xf32>
    %90 = arith.divf %88, %89 : vector<128x1xf32>
    %91 = vector.broadcast %90 : vector<128x1xf32> to vector<128x128xf32>
    %92 = arith.subf %86, %91 : vector<128x128xf32>
    %93 = arith.mulf %92, %92 : vector<128x128xf32>
    %cst_45 = arith.constant dense<0.000000e+00> : vector<128xf32>
    %94 = vector.multi_reduction <add>, %93, %cst_45 [1] : vector<128x128xf32> to vector<128xf32>
    %95 = vector.shape_cast %94 : vector<128xf32> to vector<128x1xf32>
    %cst_46 = arith.constant 1.280000e+02 : f32
    %96 = vector.broadcast %cst_46 : f32 to vector<128x1xf32>
    %97 = arith.divf %95, %96 : vector<128x1xf32>
    %98 = vector.broadcast %90 : vector<128x1xf32> to vector<128x128xf32>
    %99 = arith.subf %86, %98 : vector<128x128xf32>
    %cst_47 = arith.constant 9.99999974E-6 : f32
    %100 = vector.broadcast %cst_47 : f32 to vector<128x1xf32>
    %101 = arith.addf %97, %100 : vector<128x1xf32>
    %102 = math.rsqrt %101 : vector<128x1xf32>
    %103 = vector.broadcast %102 : vector<128x1xf32> to vector<128x128xf32>
    %104 = arith.mulf %99, %103 : vector<128x128xf32>
    %c0_48 = arith.constant 0 : index
    %c0_49 = arith.constant 0 : index
    %105 = vector.load %arg16[%c0_48, %c0_49] : memref<1x128xf32, #tpu.memory_space<vmem>>, vector<1x128xf32>
    %106 = vector.broadcast %105 : vector<1x128xf32> to vector<128x128xf32>
    %107 = arith.mulf %104, %106 : vector<128x128xf32>
    %c0_50 = arith.constant 0 : index
    %c0_51 = arith.constant 0 : index
    %108 = vector.load %arg17[%c0_50, %c0_51] : memref<1x128xf32, #tpu.memory_space<vmem>>, vector<1x128xf32>
    %109 = vector.broadcast %108 : vector<1x128xf32> to vector<128x128xf32>
    %110 = arith.addf %107, %109 : vector<128x128xf32>
    %111 = arith.truncf %110 : vector<128x128xf32> to vector<128x128xbf16>
    %c0_52 = arith.constant 0 : index
    %c0_53 = arith.constant 0 : index
    %112 = vector.load %arg18[%c0_52, %c0_53] : memref<128x256xbf16, #tpu.memory_space<vmem>>, vector<128x256xbf16>
    %cst_54 = arith.constant dense<0.000000e+00> : vector<128x256xf32>
    %113 = tpu.matmul %111, %112, %cst_54 {dimension_numbers = #tpu.dot_dimension_numbers<[1], [0], [0], [1], [0, 0, 1, 1], [], []>} : vector<128x128xbf16>, vector<128x256xbf16>, vector<128x256xf32> -> vector<128x256xf32>
    %c0_55 = arith.constant 0 : index
    %c0_56 = arith.constant 0 : index
    %114 = vector.load %arg19[%c0_55, %c0_56] : memref<1x256xf32, #tpu.memory_space<vmem>>, vector<1x256xf32>
    %115 = vector.broadcast %114 : vector<1x256xf32> to vector<128x256xf32>
    %116 = arith.addf %113, %115 : vector<128x256xf32>
    %cst_57 = arith.constant 0.000000e+00 : f32
    %117 = vector.broadcast %cst_57 : f32 to vector<128x256xf32>
    %118 = arith.maximumf %116, %117 : vector<128x256xf32>
    %119 = arith.truncf %118 : vector<128x256xf32> to vector<128x256xbf16>
    %c0_58 = arith.constant 0 : index
    %c0_59 = arith.constant 0 : index
    %120 = vector.load %arg20[%c0_58, %c0_59] : memref<256x128xbf16, #tpu.memory_space<vmem>>, vector<256x128xbf16>
    %cst_60 = arith.constant dense<0.000000e+00> : vector<128x128xf32>
    %121 = tpu.matmul %119, %120, %cst_60 {dimension_numbers = #tpu.dot_dimension_numbers<[1], [0], [0], [1], [0, 0, 1, 1], [], []>} : vector<128x256xbf16>, vector<256x128xbf16>, vector<128x128xf32> -> vector<128x128xf32>
    %c0_61 = arith.constant 0 : index
    %c0_62 = arith.constant 0 : index
    %122 = vector.load %arg21[%c0_61, %c0_62] : memref<1x128xf32, #tpu.memory_space<vmem>>, vector<1x128xf32>
    %123 = vector.broadcast %122 : vector<1x128xf32> to vector<128x128xf32>
    %124 = arith.addf %121, %123 : vector<128x128xf32>
    %125 = arith.addf %124, %110 : vector<128x128xf32>
    %cst_63 = arith.constant dense<0.000000e+00> : vector<128xf32>
    %126 = vector.multi_reduction <add>, %125, %cst_63 [1] : vector<128x128xf32> to vector<128xf32>
    %127 = vector.shape_cast %126 : vector<128xf32> to vector<128x1xf32>
    %cst_64 = arith.constant 1.280000e+02 : f32
    %128 = vector.broadcast %cst_64 : f32 to vector<128x1xf32>
    %129 = arith.divf %127, %128 : vector<128x1xf32>
    %130 = vector.broadcast %129 : vector<128x1xf32> to vector<128x128xf32>
    %131 = arith.subf %125, %130 : vector<128x128xf32>
    %132 = arith.mulf %131, %131 : vector<128x128xf32>
    %cst_65 = arith.constant dense<0.000000e+00> : vector<128xf32>
    %133 = vector.multi_reduction <add>, %132, %cst_65 [1] : vector<128x128xf32> to vector<128xf32>
    %134 = vector.shape_cast %133 : vector<128xf32> to vector<128x1xf32>
    %cst_66 = arith.constant 1.280000e+02 : f32
    %135 = vector.broadcast %cst_66 : f32 to vector<128x1xf32>
    %136 = arith.divf %134, %135 : vector<128x1xf32>
    %137 = vector.broadcast %129 : vector<128x1xf32> to vector<128x128xf32>
    %138 = arith.subf %125, %137 : vector<128x128xf32>
    %cst_67 = arith.constant 9.99999974E-6 : f32
    %139 = vector.broadcast %cst_67 : f32 to vector<128x1xf32>
    %140 = arith.addf %136, %139 : vector<128x1xf32>
    %141 = math.rsqrt %140 : vector<128x1xf32>
    %142 = vector.broadcast %141 : vector<128x1xf32> to vector<128x128xf32>
    %143 = arith.mulf %138, %142 : vector<128x128xf32>
    %c0_68 = arith.constant 0 : index
    %c0_69 = arith.constant 0 : index
    %144 = vector.load %arg22[%c0_68, %c0_69] : memref<1x128xf32, #tpu.memory_space<vmem>>, vector<1x128xf32>
    %145 = vector.broadcast %144 : vector<1x128xf32> to vector<128x128xf32>
    %146 = arith.mulf %143, %145 : vector<128x128xf32>
    %c0_70 = arith.constant 0 : index
    %c0_71 = arith.constant 0 : index
    %147 = vector.load %arg23[%c0_70, %c0_71] : memref<1x128xf32, #tpu.memory_space<vmem>>, vector<1x128xf32>
    %148 = vector.broadcast %147 : vector<1x128xf32> to vector<128x128xf32>
    %149 = arith.addf %146, %148 : vector<128x128xf32>
    %c0_72 = arith.constant 0 : index
    %c0_73 = arith.constant 0 : index
    %150 = vector.load %arg24[%c0_72, %c0_73] : memref<128x128xf32, #tpu.memory_space<vmem>>, vector<128x128xf32>
    tpu.vector_store %arg24[%c0_72, %c0_73], %149 {strides = array<i32>} : memref<128x128xf32, #tpu.memory_space<vmem>>, vector<128x128xf32>,
    return
  }
  func.func @transform_0(%arg0: i32) -> (i32, i32) {
    %c0_i32 = arith.constant 0 : i32
    %c0_i32_0 = arith.constant 0 : i32
    return %arg0, %c0_i32 : i32, i32
  }
  func.func @transform_1(%arg0: i32) -> (i32, i32) {
    %c0_i32 = arith.constant 0 : i32
    %c0_i32_0 = arith.constant 0 : i32
    %c0_i32_1 = arith.constant 0 : i32
    return %c0_i32, %c0_i32_0 : i32, i32
  }
  func.func @transform_2(%arg0: i32) -> (i32, i32) {
    %c0_i32 = arith.constant 0 : i32
    %c0_i32_0 = arith.constant 0 : i32
    %c0_i32_1 = arith.constant 0 : i32
    return %c0_i32, %c0_i32_0 : i32, i32
  }
  func.func @transform_3(%arg0: i32) -> (i32, i32) {
    %c0_i32 = arith.constant 0 : i32
    %c0_i32_0 = arith.constant 0 : i32
    %c0_i32_1 = arith.constant 0 : i32
    return %c0_i32, %c0_i32_0 : i32, i32
  }
  func.func @transform_4(%arg0: i32) -> (i32, i32) {
    %c0_i32 = arith.constant 0 : i32
    %c0_i32_0 = arith.constant 0 : i32
    %c0_i32_1 = arith.constant 0 : i32
    return %c0_i32, %c0_i32_0 : i32, i32
  }
  func.func @transform_5(%arg0: i32) -> (i32, i32) {
    %c0_i32 = arith.constant 0 : i32
    %c0_i32_0 = arith.constant 0 : i32
    %c0_i32_1 = arith.constant 0 : i32
    return %c0_i32, %c0_i32_0 : i32, i32
  }
  func.func @transform_6(%arg0: i32) -> (i32, i32) {
    %c0_i32 = arith.constant 0 : i32
    %c0_i32_0 = arith.constant 0 : i32
    %c0_i32_1 = arith.constant 0 : i32
    return %c0_i32, %c0_i32_0 : i32, i32
  }
  func.func @transform_7(%arg0: i32) -> (i32, i32) {
    %c0_i32 = arith.constant 0 : i32
    %c0_i32_0 = arith.constant 0 : i32
    %c0_i32_1 = arith.constant 0 : i32
    return %c0_i32, %c0_i32_0 : i32, i32
  }
  func.func @transform_8(%arg0: i32) -> (i32, i32) {
    %c0_i32 = arith.constant 0 : i32
    %c0_i32_0 = arith.constant 0 : i32
    %c0_i32_1 = arith.constant 0 : i32
    return %c0_i32, %c0_i32_0 : i32, i32
  }
  func.func @transform_9(%arg0: i32) -> (i32, i32) {
    %c0_i32 = arith.constant 0 : i32
    %c0_i32_0 = arith.constant 0 : i32
    %c0_i32_1 = arith.constant 0 : i32
    return %c0_i32, %c0_i32_0 : i32, i32
  }
  func.func @transform_10(%arg0: i32) -> (i32, i32) {
    %c0_i32 = arith.constant 0 : i32
    %c0_i32_0 = arith.constant 0 : i32
    %c0_i32_1 = arith.constant 0 : i32
    return %c0_i32, %c0_i32_0 : i32, i32
  }
  func.func @transform_11(%arg0: i32) -> (i32, i32) {
    %c0_i32 = arith.constant 0 : i32
    %c0_i32_0 = arith.constant 0 : i32
    %c0_i32_1 = arith.constant 0 : i32
    return %c0_i32, %c0_i32_0 : i32, i32
  }
  func.func @transform_12(%arg0: i32) -> (i32, i32) {
    %c0_i32 = arith.constant 0 : i32
    %c0_i32_0 = arith.constant 0 : i32
    %c0_i32_1 = arith.constant 0 : i32
    return %c0_i32, %c0_i32_0 : i32, i32
  }
  func.func @transform_13(%arg0: i32) -> (i32, i32) {
    %c0_i32 = arith.constant 0 : i32
    %c0_i32_0 = arith.constant 0 : i32
    %c0_i32_1 = arith.constant 0 : i32
    return %c0_i32, %c0_i32_0 : i32, i32
  }
  func.func @transform_14(%arg0: i32) -> (i32, i32) {
    %c0_i32 = arith.constant 0 : i32
    %c0_i32_0 = arith.constant 0 : i32
    %c0_i32_1 = arith.constant 0 : i32
    return %c0_i32, %c0_i32_0 : i32, i32
  }
  func.func @transform_15(%arg0: i32) -> (i32, i32) {
    %c0_i32 = arith.constant 0 : i32
    %c0_i32_0 = arith.constant 0 : i32
    %c0_i32_1 = arith.constant 0 : i32
    return %c0_i32, %c0_i32_0 : i32, i32
  }
  func.func @transform_16(%arg0: i32) -> (i32, i32) {
    %c0_i32 = arith.constant 0 : i32
    %c0_i32_0 = arith.constant 0 : i32
    %c0_i32_1 = arith.constant 0 : i32
    return %c0_i32, %c0_i32_0 : i32, i32
  }
  func.func @transform_17(%arg0: i32) -> (i32, i32) {
    %c0_i32 = arith.constant 0 : i32
    %c0_i32_0 = arith.constant 0 : i32
    %c0_i32_1 = arith.constant 0 : i32
    return %c0_i32, %c0_i32_0 : i32, i32
  }
  func.func @transform_18(%arg0: i32) -> (i32, i32) {
    %c0_i32 = arith.constant 0 : i32
    %c0_i32_0 = arith.constant 0 : i32
    %c0_i32_1 = arith.constant 0 : i32
    return %c0_i32, %c0_i32_0 : i32, i32
  }
  func.func @transform_19(%arg0: i32) -> (i32, i32) {
    %c0_i32 = arith.constant 0 : i32
    %c0_i32_0 = arith.constant 0 : i32
    %c0_i32_1 = arith.constant 0 : i32
    return %c0_i32, %c0_i32_0 : i32, i32
  }
  func.func @transform_20(%arg0: i32) -> (i32, i32) {
    %c0_i32 = arith.constant 0 : i32
    %c0_i32_0 = arith.constant 0 : i32
    %c0_i32_1 = arith.constant 0 : i32
    return %c0_i32, %c0_i32_0 : i32, i32
  }
  func.func @transform_21(%arg0: i32) -> (i32, i32) {
    %c0_i32 = arith.constant 0 : i32
    %c0_i32_0 = arith.constant 0 : i32
    %c0_i32_1 = arith.constant 0 : i32
    return %c0_i32, %c0_i32_0 : i32, i32
  }
  func.func @transform_22(%arg0: i32) -> (i32, i32) {
    %c0_i32 = arith.constant 0 : i32
    %c0_i32_0 = arith.constant 0 : i32
    %c0_i32_1 = arith.constant 0 : i32
    return %c0_i32, %c0_i32_0 : i32, i32
  }
  func.func @transform_23(%arg0: i32) -> (i32, i32) {
    %c0_i32 = arith.constant 0 : i32
    %c0_i32_0 = arith.constant 0 : i32
    return %arg0, %c0_i32 : i32, i32
  }
}

</mosaic_0001>

<llo_original>
// kernel: tpu_custom_call.1
$region0: #{tpu_custom_call.1}
  #allocation0 [shape = 'u32[]', space=smem, size = 0x4, offset = 0x4, fixed_abs, tag = 'smem constant byte address 0x4 - core index']
  #allocation1 [shape = 'u32[144,128]{1,0:T(1,128)}', space=vmem, size = 0x12000, scoped, tag = 'internal scratch']
  %s0 = inlined_call_operand.hbm [shape: f32[256,128], index: 0, kind: input, shape index: {}]
  %s1 = inlined_call_operand.hbm [shape: bf16[256,128], index: 1, kind: input, shape index: {}]
  %s2 = inlined_call_operand.hbm [shape: bf16[256,128], index: 2, kind: input, shape index: {}]
  %s3 = inlined_call_operand.hbm [shape: bf16[128,128], index: 3, kind: input, shape index: {}]
  %s4 = inlined_call_operand.hbm [shape: bf16[128,128], index: 4, kind: input, shape index: {}]
  %s5 = inlined_call_operand.hbm [shape: bf16[128,128], index: 5, kind: input, shape index: {}]
  %s6 = inlined_call_operand.vmem [shape: f32[1,128], index: 6, kind: input, shape index: {}]
  %s7 = inlined_call_operand.hbm [shape: bf16[128,128], index: 7, kind: input, shape index: {}]
  %s8 = inlined_call_operand.vmem [shape: f32[1,128], index: 8, kind: input, shape index: {}]
  %s9 = inlined_call_operand.vmem [shape: f32[1,128], index: 9, kind: input, shape index: {}]
  %s10 = inlined_call_operand.vmem [shape: f32[1,128], index: 10, kind: input, shape index: {}]
  %s11 = inlined_call_operand.hbm [shape: bf16[128,128], index: 11, kind: input, shape index: {}]
  %s12 = inlined_call_operand.vmem [shape: f32[1,128], index: 12, kind: input, shape index: {}]
  %s13 = inlined_call_operand.hbm [shape: bf16[128,128], index: 13, kind: input, shape index: {}]
  %s14 = inlined_call_operand.vmem [shape: f32[1,128], index: 14, kind: input, shape index: {}]
  %s15 = inlined_call_operand.vmem [shape: f32[1,128], index: 15, kind: input, shape index: {}]
  %s16 = inlined_call_operand.vmem [shape: f32[1,128], index: 16, kind: input, shape index: {}]
  %s17 = inlined_call_operand.hbm [shape: bf16[128,256], index: 17, kind: input, shape index: {}]
  %s18 = inlined_call_operand.vmem [shape: f32[1,256], index: 18, kind: input, shape index: {}]
  %s19 = inlined_call_operand.hbm [shape: bf16[256,128], index: 19, kind: input, shape index: {}]
  %s20 = inlined_call_operand.vmem [shape: f32[1,128], index: 20, kind: input, shape index: {}]
  %s21 = inlined_call_operand.vmem [shape: f32[1,128], index: 21, kind: input, shape index: {}]
  %s22 = inlined_call_operand.vmem [shape: f32[1,128], index: 22, kind: input, shape index: {}]
  %s23 = inlined_call_operand.hbm [shape: f32[256,128], index: 23, kind: output, shape index: {}]
  %s24 = sld [smem:[#allocation0]]
  $region176: #{tpu_custom_call.1} parent=0
    _
  %s26 = ssub.s32 1, %s24
  %s27 = scalar_select 0, %s26, %s24
  $region1: #{tpu_custom_call.1} parent=0
    #allocation2 [shape = 'u8[131072]{0}', space=vmem, size = 0x20000, scoped, tag = 'input window, operand 0']
    #allocation3 [shape = 's32[2]{0}', space=sflag, size = 0x8, scoped, tag = 'scoped memory for tpu_custom_call.1']
    #allocation4 [shape = 's32[2]{0}', space=sflag, size = 0x8, scoped, tag = 'scoped memory for tpu_custom_call.1']
    #allocation5 [shape = 'u8[65536]{0}', space=vmem, size = 0x10000, scoped, tag = 'input window, operand 1, single buffered']
    #allocation6 [shape = 's32[1]{0}', space=sflag, size = 0x4, scoped, tag = 'scoped memory for tpu_custom_call.1']
    #allocation7 [shape = 'u8[65536]{0}', space=vmem, size = 0x10000, scoped, tag = 'input window, operand 2, single buffered']
    #allocation8 [shape = 'u8[32768]{0}', space=vmem, size = 0x8000, scoped, tag = 'input window, operand 3, single buffered']
    #allocation9 [shape = 's32[1]{0}', space=sflag, size = 0x4, scoped, tag = 'scoped memory for tpu_custom_call.1']
    #allocation10 [shape = 'u8[32768]{0}', space=vmem, size = 0x8000, scoped, tag = 'input window, operand 4, single buffered']
    #allocation11 [shape = 'u8[32768]{0}', space=vmem, size = 0x8000, scoped, tag = 'input window, operand 5, single buffered']
    #allocation12 [shape = 's32[1]{0}', space=sflag, size = 0x4, scoped, tag = 'scoped memory for tpu_custom_call.1']
    #allocation13 [shape = 'u8[32768]{0}', space=vmem, size = 0x8000, scoped, tag = 'input window, operand 7, single buffered']
    #allocation14 [shape = 'u8[32768]{0}', space=vmem, size = 0x8000, scoped, tag = 'input window, operand 11, single buffered']
    #allocation15 [shape = 's32[1]{0}', space=sflag, size = 0x4, scoped, tag = 'scoped memory for tpu_custom_call.1']
    #allocation16 [shape = 'u8[32768]{0}', space=vmem, size = 0x8000, scoped, tag = 'input window, operand 13, single buffered']
    #allocation17 [shape = 'u8[65536]{0}', space=vmem, size = 0x10000, scoped, tag = 'input window, operand 17, single buffered']
    #allocation18 [shape = 's32[1]{0}', space=sflag, size = 0x4, scoped, tag = 'scoped memory for tpu_custom_call.1']
    #allocation19 [shape = 'u8[65536]{0}', space=vmem, size = 0x10000, scoped, tag = 'input window, operand 19, single buffered']
    #allocation20 [shape = 'u8[131072]{0}', space=vmem, size = 0x20000, scoped, tag = 'output window, operand 0']
    %28 = vsyncpa [#allocation3], 0
    %s29 = scalar_lea.sflag [#allocation3], 1
    %30 = vsyncpa %s29, 0
    %31 = vsyncpa [#allocation6], 0
    %32 = vsyncpa [#allocation9], 0
    %33 = vsyncpa [#allocation12], 0
    %34 = vsyncpa [#allocation15], 0
    %35 = vsyncpa [#allocation18], 0
    %36 = vsyncpa [#allocation4], 0
    %s37 = scalar_lea.sflag [#allocation4], 1
    %38 = vsyncpa %s37, 0
    loop: start=0, step=1, limit=4
    $region2: #{tpu_custom_call.1} parent=1 // loop_pre_header
      _
    $region3: #{tpu_custom_call.1} parent=1 // loop_header
      %s40 = sphi 0, %s44
      %p41 = scmp.ge.s32.totalorder %s40, 4
      %s50 = sphi 0, %s52
      %s53 = sphi 0, %s50
      %s54 = sphi 0, %s53
      %s70 = sphi 0, %s54
      %s74 = sphi 0, %s74
      %s76 = sphi 0, %s74
      %s77 = sphi 0, %s76
      %s91 = sphi 0, %s77
      %s95 = sphi 0, %s95
      %s97 = sphi 0, %s95
      %s98 = sphi 0, %s97
      %s112 = sphi 0, %s98
      %s116 = sphi 0, %s116
      %s118 = sphi 0, %s116
      %s119 = sphi 0, %s118
      %s133 = sphi 0, %s119
      %s137 = sphi 0, %s137
      %s139 = sphi 0, %s137
      %s140 = sphi 0, %s139
      %s154 = sphi 0, %s140
      %s158 = sphi 0, %s158
      %s160 = sphi 0, %s158
      %s161 = sphi 0, %s160
      %s175 = sphi 0, %s161
      %s179 = sphi 0, %s179
      %s181 = sphi 0, %s179
      %s182 = sphi 0, %s181
      %s196 = sphi 0, %s182
      %s200 = sphi 0, %s200
      %s202 = sphi 0, %s200
      %s203 = sphi 0, %s202
      %s217 = sphi 0, %s203
      %s221 = sphi 0, %s221
      %s223 = sphi 0, %s221
      %s224 = sphi 0, %s223
      %s238 = sphi 0, %s224
      %s242 = sphi 0, %s242
      %s244 = sphi 0, %s242
      %s245 = sphi 0, %s244
      %s259 = sphi 0, %s245
      %s263 = sphi 0, %s263
      %s265 = sphi 0, %s263
      %s266 = sphi 0, %s265
      %s280 = sphi 0, %s266
      %s284 = sphi 0, %s284
      %s286 = sphi 0, %s284
      %s287 = sphi 0, %s286
      %s301 = sphi 0, %s287
      %s305 = sphi 0, %s305
      %s307 = sphi 0, %s305
      %s308 = sphi 0, %s307
      %s322 = sphi 0, %s308
      %s326 = sphi 0, %s326
      %s328 = sphi 0, %s326
      %s329 = sphi 0, %s328
      %s343 = sphi 0, %s329
      %s347 = sphi 0, %s347
      %s349 = sphi 0, %s347
      %s350 = sphi 0, %s349
      %s364 = sphi 0, %s350
      %s368 = sphi 0, %s368
      %s370 = sphi 0, %s368
      %s371 = sphi 0, %s370
      %s385 = sphi 0, %s371
      %s389 = sphi 0, %s389
      %s391 = sphi 0, %s389
      %s392 = sphi 0, %s391
      %s406 = sphi 0, %s392
      %s410 = sphi 0, %s410
      %s412 = sphi 0, %s410
      %s413 = sphi 0, %s412
      %s427 = sphi 0, %s413
      %s431 = sphi 0, %s431
      %s433 = sphi 0, %s431
      %s434 = sphi 0, %s433
      %s448 = sphi 0, %s434
      %s452 = sphi 0, %s452
      %s454 = sphi 0, %s452
      %s455 = sphi 0, %s454
      %s469 = sphi 0, %s455
      %s473 = sphi 0, %s473
      %s475 = sphi 0, %s473
      %s476 = sphi 0, %s475
      %s490 = sphi 0, %s476
      %s494 = sphi 0, %s494
      %s496 = sphi 0, %s494
      %s497 = sphi 0, %s496
      %s511 = sphi 0, %s497
      %s515 = sphi 0, %s515
      %s517 = sphi 0, %s515
      %s518 = sphi 0, %s517
      %s532 = sphi 0, %s518
      %s538 = sphi 0, %s540
      %s541 = sphi 0, %s538
      %s542 = sphi 0, %s541
      %s558 = sphi 0, %s542
    $region4: #{tpu_custom_call.1} parent=1 // loop_header_branch
      %43 = sbr.rel (%p41) target = $region8
    $region5: #{tpu_custom_call.1} parent=1 // loop_body
      %s45 = ssub.s32 %s40, 1
      %s46 = ssub.s32 %s40, 2
      %s47 = sadd.s32 %s40, 1
      %s48 = ssub.s32 %s40, %s47
      %p49 = scmp.eq.s32.totalorder %s48, 0
      %s51 = sadd.s32 %s50, 1
      %s52 = scalar_select %p49, %s50, %s51
      %p55 = pneg %p49
      %p56 = scmp.eq.s32.totalorder %s40, 1
      %p57 = por %p55, %p56
      %p58 = scmp.ne.s32.totalorder %s50, %s53
      %p59 = scmp.eq.s32.totalorder %s40, 0
      %p60 = por %p58, %p59
      %p61 = scmp.ne.s32.totalorder %s50, %s53
      %p62 = scmp.eq.s32.totalorder %s45, 1
      %p63 = por %p61, %p62
      %p64 = scmp.ne.s32.totalorder %s53, %s54
      %p65 = scmp.eq.s32.totalorder %s45, 0
      %p66 = por %p64, %p65
      %p67 = scmp.ne.s32.totalorder %s53, %s54
      %p68 = scmp.eq.s32.totalorder %s46, 1
      %p69 = por %p67, %p68
      %p71 = scmp.ne.s32.totalorder %s54, %s70
      %p72 = scmp.eq.s32.totalorder %s46, 0
      %p73 = por %p71, %p72
      %s75 = sadd.s32 %s74, 1
      %p78 = scmp.eq.s32.totalorder %s40, 1
      %p79 = scmp.ne.s32.totalorder %s74, %s76
      %p80 = scmp.eq.s32.totalorder %s40, 0
      %p81 = por %p79, %p80
      %p82 = scmp.ne.s32.totalorder %s74, %s76
      %p83 = scmp.eq.s32.totalorder %s45, 1
      %p84 = por %p82, %p83
      %p85 = scmp.ne.s32.totalorder %s76, %s77
      %p86 = scmp.eq.s32.totalorder %s45, 0
      %p87 = por %p85, %p86
      %p88 = scmp.ne.s32.totalorder %s76, %s77
      %p89 = scmp.eq.s32.totalorder %s46, 1
      %p90 = por %p88, %p89
      %p92 = scmp.ne.s32.totalorder %s77, %s91
      %p93 = scmp.eq.s32.totalorder %s46, 0
      %p94 = por %p92, %p93
      %s96 = sadd.s32 %s95, 1
      %p99 = scmp.eq.s32.totalorder %s40, 1
      %p100 = scmp.ne.s32.totalorder %s95, %s97
      %p101 = scmp.eq.s32.totalorder %s40, 0
      %p102 = por %p100, %p101
      %p103 = scmp.ne.s32.totalorder %s95, %s97
      %p104 = scmp.eq.s32.totalorder %s45, 1
      %p105 = por %p103, %p104
      %p106 = scmp.ne.s32.totalorder %s97, %s98
      %p107 = scmp.eq.s32.totalorder %s45, 0
      %p108 = por %p106, %p107
      %p109 = scmp.ne.s32.totalorder %s97, %s98
      %p110 = scmp.eq.s32.totalorder %s46, 1
      %p111 = por %p109, %p110
      %p113 = scmp.ne.s32.totalorder %s98, %s112
      %p114 = scmp.eq.s32.totalorder %s46, 0
      %p115 = por %p113, %p114
      %s117 = sadd.s32 %s116, 1
      %p120 = scmp.eq.s32.totalorder %s40, 1
      %p121 = scmp.ne.s32.totalorder %s116, %s118
      %p122 = scmp.eq.s32.totalorder %s40, 0
      %p123 = por %p121, %p122
      %p124 = scmp.ne.s32.totalorder %s116, %s118
      %p125 = scmp.eq.s32.totalorder %s45, 1
      %p126 = por %p124, %p125
      %p127 = scmp.ne.s32.totalorder %s118, %s119
      %p128 = scmp.eq.s32.totalorder %s45, 0
      %p129 = por %p127, %p128
      %p130 = scmp.ne.s32.totalorder %s118, %s119
      %p131 = scmp.eq.s32.totalorder %s46, 1
      %p132 = por %p130, %p131
      %p134 = scmp.ne.s32.totalorder %s119, %s133
      %p135 = scmp.eq.s32.totalorder %s46, 0
      %p136 = por %p134, %p135
      %s138 = sadd.s32 %s137, 1
      %p141 = scmp.eq.s32.totalorder %s40, 1
      %p142 = scmp.ne.s32.totalorder %s137, %s139
      %p143 = scmp.eq.s32.totalorder %s40, 0
      %p144 = por %p142, %p143
      %p145 = scmp.ne.s32.totalorder %s137, %s139
      %p146 = scmp.eq.s32.totalorder %s45, 1
      %p147 = por %p145, %p146
      %p148 = scmp.ne.s32.totalorder %s139, %s140
      %p149 = scmp.eq.s32.totalorder %s45, 0
      %p150 = por %p148, %p149
      %p151 = scmp.ne.s32.totalorder %s139, %s140
      %p152 = scmp.eq.s32.totalorder %s46, 1
      %p153 = por %p151, %p152
      %p155 = scmp.ne.s32.totalorder %s140, %s154
      %p156 = scmp.eq.s32.totalorder %s46, 0
      %p157 = por %p155, %p156
      %s159 = sadd.s32 %s158, 1
      %p162 = scmp.eq.s32.totalorder %s40, 1
      %p163 = scmp.ne.s32.totalorder %s158, %s160
      %p164 = scmp.eq.s32.totalorder %s40, 0
      %p165 = por %p163, %p164
      %p166 = scmp.ne.s32.totalorder %s158, %s160
      %p167 = scmp.eq.s32.totalorder %s45, 1
      %p168 = por %p166, %p167
      %p169 = scmp.ne.s32.totalorder %s160, %s161
      %p170 = scmp.eq.s32.totalorder %s45, 0
      %p171 = por %p169, %p170
      %p172 = scmp.ne.s32.totalorder %s160, %s161
      %p173 = scmp.eq.s32.totalorder %s46, 1
      %p174 = por %p172, %p173
      %p176 = scmp.ne.s32.totalorder %s161, %s175
      %p177 = scmp.eq.s32.totalorder %s46, 0
      %p178 = por %p176, %p177
      %s180 = sadd.s32 %s179, 1
      %p183 = scmp.eq.s32.totalorder %s40, 1
      %p184 = scmp.ne.s32.totalorder %s179, %s181
      %p185 = scmp.eq.s32.totalorder %s40, 0
      %p186 = por %p184, %p185
      %p187 = scmp.ne.s32.totalorder %s179, %s181
      %p188 = scmp.eq.s32.totalorder %s45, 1
      %p189 = por %p187, %p188
      %p190 = scmp.ne.s32.totalorder %s181, %s182
      %p191 = scmp.eq.s32.totalorder %s45, 0
      %p192 = por %p190, %p191
      %p193 = scmp.ne.s32.totalorder %s181, %s182
      %p194 = scmp.eq.s32.totalorder %s46, 1
      %p195 = por %p193, %p194
      %p197 = scmp.ne.s32.totalorder %s182, %s196
      %p198 = scmp.eq.s32.totalorder %s46, 0
      %p199 = por %p197, %p198
      %s201 = sadd.s32 %s200, 1
      %p204 = scmp.eq.s32.totalorder %s40, 1
      %p205 = scmp.ne.s32.totalorder %s200, %s202
      %p206 = scmp.eq.s32.totalorder %s40, 0
      %p207 = por %p205, %p206
      %p208 = scmp.ne.s32.totalorder %s200, %s202
      %p209 = scmp.eq.s32.totalorder %s45, 1
      %p210 = por %p208, %p209
      %p211 = scmp.ne.s32.totalorder %s202, %s203
      %p212 = scmp.eq.s32.totalorder %s45, 0
      %p213 = por %p211, %p212
      %p214 = scmp.ne.s32.totalorder %s202, %s203
      %p215 = scmp.eq.s32.totalorder %s46, 1
      %p216 = por %p214, %p215
      %p218 = scmp.ne.s32.totalorder %s203, %s217
      %p219 = scmp.eq.s32.totalorder %s46, 0
      %p220 = por %p218, %p219
      %s222 = sadd.s32 %s221, 1
      %p225 = scmp.eq.s32.totalorder %s40, 1
      %p226 = scmp.ne.s32.totalorder %s221, %s223
      %p227 = scmp.eq.s32.totalorder %s40, 0
      %p228 = por %p226, %p227
      %p229 = scmp.ne.s32.totalorder %s221, %s223
      %p230 = scmp.eq.s32.totalorder %s45, 1
      %p231 = por %p229, %p230
      %p232 = scmp.ne.s32.totalorder %s223, %s224
      %p233 = scmp.eq.s32.totalorder %s45, 0
      %p234 = por %p232, %p233
      %p235 = scmp.ne.s32.totalorder %s223, %s224
      %p236 = scmp.eq.s32.totalorder %s46, 1
      %p237 = por %p235, %p236
      %p239 = scmp.ne.s32.totalorder %s224, %s238
      %p240 = scmp.eq.s32.totalorder %s46, 0
      %p241 = por %p239, %p240
      %s243 = sadd.s32 %s242, 1
      %p246 = scmp.eq.s32.totalorder %s40, 1
      %p247 = scmp.ne.s32.totalorder %s242, %s244
      %p248 = scmp.eq.s32.totalorder %s40, 0
      %p249 = por %p247, %p248
      %p250 = scmp.ne.s32.totalorder %s242, %s244
      %p251 = scmp.eq.s32.totalorder %s45, 1
      %p252 = por %p250, %p251
      %p253 = scmp.ne.s32.totalorder %s244, %s245
      %p254 = scmp.eq.s32.totalorder %s45, 0
      %p255 = por %p253, %p254
      %p256 = scmp.ne.s32.totalorder %s244, %s245
      %p257 = scmp.eq.s32.totalorder %s46, 1
      %p258 = por %p256, %p257
      %p260 = scmp.ne.s32.totalorder %s245, %s259
      %p261 = scmp.eq.s32.totalorder %s46, 0
      %p262 = por %p260, %p261
      %s264 = sadd.s32 %s263, 1
      %p267 = scmp.eq.s32.totalorder %s40, 1
      %p268 = scmp.ne.s32.totalorder %s263, %s265
      %p269 = scmp.eq.s32.totalorder %s40, 0
      %p270 = por %p268, %p269
      %p271 = scmp.ne.s32.totalorder %s263, %s265
      %p272 = scmp.eq.s32.totalorder %s45, 1
      %p273 = por %p271, %p272
      %p274 = scmp.ne.s32.totalorder %s265, %s266
      %p275 = scmp.eq.s32.totalorder %s45, 0
      %p276 = por %p274, %p275
      %p277 = scmp.ne.s32.totalorder %s265, %s266
      %p278 = scmp.eq.s32.totalorder %s46, 1
      %p279 = por %p277, %p278
      %p281 = scmp.ne.s32.totalorder %s266, %s280
      %p282 = scmp.eq.s32.totalorder %s46, 0
      %p283 = por %p281, %p282
      %s285 = sadd.s32 %s284, 1
      %p288 = scmp.eq.s32.totalorder %s40, 1
      %p289 = scmp.ne.s32.totalorder %s284, %s286
      %p290 = scmp.eq.s32.totalorder %s40, 0
      %p291 = por %p289, %p290
      %p292 = scmp.ne.s32.totalorder %s284, %s286
      %p293 = scmp.eq.s32.totalorder %s45, 1
      %p294 = por %p292, %p293
      %p295 = scmp.ne.s32.totalorder %s286, %s287
      %p296 = scmp.eq.s32.totalorder %s45, 0
      %p297 = por %p295, %p296
      %p298 = scmp.ne.s32.totalorder %s286, %s287
      %p299 = scmp.eq.s32.totalorder %s46, 1
      %p300 = por %p298, %p299
      %p302 = scmp.ne.s32.totalorder %s287, %s301
      %p303 = scmp.eq.s32.totalorder %s46, 0
      %p304 = por %p302, %p303
      %s306 = sadd.s32 %s305, 1
      %p309 = scmp.eq.s32.totalorder %s40, 1
      %p310 = scmp.ne.s32.totalorder %s305, %s307
      %p311 = scmp.eq.s32.totalorder %s40, 0
      %p312 = por %p310, %p311
      %p313 = scmp.ne.s32.totalorder %s305, %s307
      %p314 = scmp.eq.s32.totalorder %s45, 1
      %p315 = por %p313, %p314
      %p316 = scmp.ne.s32.totalorder %s307, %s308
      %p317 = scmp.eq.s32.totalorder %s45, 0
      %p318 = por %p316, %p317
      %p319 = scmp.ne.s32.totalorder %s307, %s308
      %p320 = scmp.eq.s32.totalorder %s46, 1
      %p321 = por %p319, %p320
      %p323 = scmp.ne.s32.totalorder %s308, %s322
      %p324 = scmp.eq.s32.totalorder %s46, 0
      %p325 = por %p323, %p324
      %s327 = sadd.s32 %s326, 1
      %p330 = scmp.eq.s32.totalorder %s40, 1
      %p331 = scmp.ne.s32.totalorder %s326, %s328
      %p332 = scmp.eq.s32.totalorder %s40, 0
      %p333 = por %p331, %p332
      %p334 = scmp.ne.s32.totalorder %s326, %s328
      %p335 = scmp.eq.s32.totalorder %s45, 1
      %p336 = por %p334, %p335
      %p337 = scmp.ne.s32.totalorder %s328, %s329
      %p338 = scmp.eq.s32.totalorder %s45, 0
      %p339 = por %p337, %p338
      %p340 = scmp.ne.s32.totalorder %s328, %s329
      %p341 = scmp.eq.s32.totalorder %s46, 1
      %p342 = por %p340, %p341
      %p344 = scmp.ne.s32.totalorder %s329, %s343
      %p345 = scmp.eq.s32.totalorder %s46, 0
      %p346 = por %p344, %p345
      %s348 = sadd.s32 %s347, 1
      %p351 = scmp.eq.s32.totalorder %s40, 1
      %p352 = scmp.ne.s32.totalorder %s347, %s349
      %p353 = scmp.eq.s32.totalorder %s40, 0
      %p354 = por %p352, %p353
      %p355 = scmp.ne.s32.totalorder %s347, %s349
      %p356 = scmp.eq.s32.totalorder %s45, 1
      %p357 = por %p355, %p356
      %p358 = scmp.ne.s32.totalorder %s349, %s350
      %p359 = scmp.eq.s32.totalorder %s45, 0
      %p360 = por %p358, %p359
      %p361 = scmp.ne.s32.totalorder %s349, %s350
      %p362 = scmp.eq.s32.totalorder %s46, 1
      %p363 = por %p361, %p362
      %p365 = scmp.ne.s32.totalorder %s350, %s364
      %p366 = scmp.eq.s32.totalorder %s46, 0
      %p367 = por %p365, %p366
      %s369 = sadd.s32 %s368, 1
      %p372 = scmp.eq.s32.totalorder %s40, 1
      %p373 = scmp.ne.s32.totalorder %s368, %s370
      %p374 = scmp.eq.s32.totalorder %s40, 0
      %p375 = por %p373, %p374
      %p376 = scmp.ne.s32.totalorder %s368, %s370
      %p377 = scmp.eq.s32.totalorder %s45, 1
      %p378 = por %p376, %p377
      %p379 = scmp.ne.s32.totalorder %s370, %s371
      %p380 = scmp.eq.s32.totalorder %s45, 0
      %p381 = por %p379, %p380
      %p382 = scmp.ne.s32.totalorder %s370, %s371
      %p383 = scmp.eq.s32.totalorder %s46, 1
      %p384 = por %p382, %p383
      %p386 = scmp.ne.s32.totalorder %s371, %s385
      %p387 = scmp.eq.s32.totalorder %s46, 0
      %p388 = por %p386, %p387
      %s390 = sadd.s32 %s389, 1
      %p393 = scmp.eq.s32.totalorder %s40, 1
      %p394 = scmp.ne.s32.totalorder %s389, %s391
      %p395 = scmp.eq.s32.totalorder %s40, 0
      %p396 = por %p394, %p395
      %p397 = scmp.ne.s32.totalorder %s389, %s391
      %p398 = scmp.eq.s32.totalorder %s45, 1
      %p399 = por %p397, %p398
      %p400 = scmp.ne.s32.totalorder %s391, %s392
      %p401 = scmp.eq.s32.totalorder %s45, 0
      %p402 = por %p400, %p401
      %p403 = scmp.ne.s32.totalorder %s391, %s392
      %p404 = scmp.eq.s32.totalorder %s46, 1
      %p405 = por %p403, %p404
      %p407 = scmp.ne.s32.totalorder %s392, %s406
      %p408 = scmp.eq.s32.totalorder %s46, 0
      %p409 = por %p407, %p408
      %s411 = sadd.s32 %s410, 1
      %p414 = scmp.eq.s32.totalorder %s40, 1
      %p415 = scmp.ne.s32.totalorder %s410, %s412
      %p416 = scmp.eq.s32.totalorder %s40, 0
      %p417 = por %p415, %p416
      %p418 = scmp.ne.s32.totalorder %s410, %s412
      %p419 = scmp.eq.s32.totalorder %s45, 1
      %p420 = por %p418, %p419
      %p421 = scmp.ne.s32.totalorder %s412, %s413
      %p422 = scmp.eq.s32.totalorder %s45, 0
      %p423 = por %p421, %p422
      %p424 = scmp.ne.s32.totalorder %s412, %s413
      %p425 = scmp.eq.s32.totalorder %s46, 1
      %p426 = por %p424, %p425
      %p428 = scmp.ne.s32.totalorder %s413, %s427
      %p429 = scmp.eq.s32.totalorder %s46, 0
      %p430 = por %p428, %p429
      %s432 = sadd.s32 %s431, 1
      %p435 = scmp.eq.s32.totalorder %s40, 1
      %p436 = scmp.ne.s32.totalorder %s431, %s433
      %p437 = scmp.eq.s32.totalorder %s40, 0
      %p438 = por %p436, %p437
      %p439 = scmp.ne.s32.totalorder %s431, %s433
      %p440 = scmp.eq.s32.totalorder %s45, 1
      %p441 = por %p439, %p440
      %p442 = scmp.ne.s32.totalorder %s433, %s434
      %p443 = scmp.eq.s32.totalorder %s45, 0
      %p444 = por %p442, %p443
      %p445 = scmp.ne.s32.totalorder %s433, %s434
      %p446 = scmp.eq.s32.totalorder %s46, 1
      %p447 = por %p445, %p446
      %p449 = scmp.ne.s32.totalorder %s434, %s448
      %p450 = scmp.eq.s32.totalorder %s46, 0
      %p451 = por %p449, %p450
      %s453 = sadd.s32 %s452, 1
      %p456 = scmp.eq.s32.totalorder %s40, 1
      %p457 = scmp.ne.s32.totalorder %s452, %s454
      %p458 = scmp.eq.s32.totalorder %s40, 0
      %p459 = por %p457, %p458
      %p460 = scmp.ne.s32.totalorder %s452, %s454
      %p461 = scmp.eq.s32.totalorder %s45, 1
      %p462 = por %p460, %p461
      %p463 = scmp.ne.s32.totalorder %s454, %s455
      %p464 = scmp.eq.s32.totalorder %s45, 0
      %p465 = por %p463, %p464
      %p466 = scmp.ne.s32.totalorder %s454, %s455
      %p467 = scmp.eq.s32.totalorder %s46, 1
      %p468 = por %p466, %p467
      %p470 = scmp.ne.s32.totalorder %s455, %s469
      %p471 = scmp.eq.s32.totalorder %s46, 0
      %p472 = por %p470, %p471
      %s474 = sadd.s32 %s473, 1
      %p477 = scmp.eq.s32.totalorder %s40, 1
      %p478 = scmp.ne.s32.totalorder %s473, %s475
      %p479 = scmp.eq.s32.totalorder %s40, 0
      %p480 = por %p478, %p479
      %p481 = scmp.ne.s32.totalorder %s473, %s475
      %p482 = scmp.eq.s32.totalorder %s45, 1
      %p483 = por %p481, %p482
      %p484 = scmp.ne.s32.totalorder %s475, %s476
      %p485 = scmp.eq.s32.totalorder %s45, 0
      %p486 = por %p484, %p485
      %p487 = scmp.ne.s32.totalorder %s475, %s476
      %p488 = scmp.eq.s32.totalorder %s46, 1
      %p489 = por %p487, %p488
      %p491 = scmp.ne.s32.totalorder %s476, %s490
      %p492 = scmp.eq.s32.totalorder %s46, 0
      %p493 = por %p491, %p492
      %s495 = sadd.s32 %s494, 1
      %p498 = scmp.eq.s32.totalorder %s40, 1
      %p499 = scmp.ne.s32.totalorder %s494, %s496
      %p500 = scmp.eq.s32.totalorder %s40, 0
      %p501 = por %p499, %p500
      %p502 = scmp.ne.s32.totalorder %s494, %s496
      %p503 = scmp.eq.s32.totalorder %s45, 1
      %p504 = por %p502, %p503
      %p505 = scmp.ne.s32.totalorder %s496, %s497
      %p506 = scmp.eq.s32.totalorder %s45, 0
      %p507 = por %p505, %p506
      %p508 = scmp.ne.s32.totalorder %s496, %s497
      %p509 = scmp.eq.s32.totalorder %s46, 1
      %p510 = por %p508, %p509
      %p512 = scmp.ne.s32.totalorder %s497, %s511
      %p513 = scmp.eq.s32.totalorder %s46, 0
      %p514 = por %p512, %p513
      %s516 = sadd.s32 %s515, 1
      %p519 = scmp.eq.s32.totalorder %s40, 1
      %p520 = scmp.ne.s32.totalorder %s515, %s517
      %p521 = scmp.eq.s32.totalorder %s40, 0
      %p522 = por %p520, %p521
      %p523 = scmp.ne.s32.totalorder %s515, %s517
      %p524 = scmp.eq.s32.totalorder %s45, 1
      %p525 = por %p523, %p524
      %p526 = scmp.ne.s32.totalorder %s517, %s518
      %p527 = scmp.eq.s32.totalorder %s45, 0
      %p528 = por %p526, %p527
      %p529 = scmp.ne.s32.totalorder %s517, %s518
      %p530 = scmp.eq.s32.totalorder %s46, 1
      %p531 = por %p529, %p530
      %p533 = scmp.ne.s32.totalorder %s518, %s532
      %p534 = scmp.eq.s32.totalorder %s46, 0
      %p535 = por %p533, %p534
      %s536 = ssub.s32 %s40, %s47
      %p537 = scmp.eq.s32.totalorder %s536, 0
      %s539 = sadd.s32 %s538, 1
      %s540 = scalar_select %p537, %s538, %s539
      %p543 = pneg %p537
      %p544 = scmp.eq.s32.totalorder %s40, 1
      %p545 = por %p543, %p544
      %p546 = scmp.ne.s32.totalorder %s538, %s541
      %p547 = scmp.eq.s32.totalorder %s40, 0
      %p548 = por %p546, %p547
      %p549 = scmp.ne.s32.totalorder %s538, %s541
      %p550 = scmp.eq.s32.totalorder %s45, 1
      %p551 = por %p549, %p550
      %p552 = scmp.ne.s32.totalorder %s541, %s542
      %p553 = scmp.eq.s32.totalorder %s45, 0
      %p554 = por %p552, %p553
      %p555 = scmp.ne.s32.totalorder %s541, %s542
      %p556 = scmp.eq.s32.totalorder %s46, 1
      %p557 = por %p555, %p556
      %p559 = scmp.ne.s32.totalorder %s542, %s558
      %p560 = scmp.eq.s32.totalorder %s46, 0
      %p561 = por %p559, %p560
      %p562 = scmp.le.s32.totalorder 1, %s40
      %p563 = scmp.lt.s32.totalorder %s40, 3
      %p564 = pnand %p562, %p563
      %p565 = pneg %p564
      // Predicated region
      $region9: #{tpu_custom_call.1} parent=5 // pred_check
        _
      $region10: #{tpu_custom_call.1} parent=5 // pred_check_branch
        %567 = sbr.rel (%p564) target = $region12
      $region11: #{tpu_custom_call.1} parent=5 // pred_region
        %s568 = ssub.s32 %s40, 1
        // Predicated region
        $region13: #{tpu_custom_call.1} parent=11 // pred_check
          %p569 = pneg %p87
        $region14: #{tpu_custom_call.1} parent=11 // pred_check_branch
          %571 = sbr.rel (%p569) target = $region16
        $region15: #{tpu_custom_call.1} parent=11 // pred_region
          %s573 = ssub.s32 2048, 2048
          %574 = vsyncadd [#allocation6], %s573
          %s575 = sshll.u32 [#allocation5], 4
          %s576 = int_to_ptr.vmem [resolvable:$true] %s575
          %581 = dma.hbm_to_vmem [thread:$0]  %s1, 2048, %s576, [#allocation6], 64, 64, 4
        $region16: #{tpu_custom_call.1} parent=11 // pred_fallthru
          _
        // Predicated region
        $region17: #{tpu_custom_call.1} parent=11 // pred_check
          %p582 = pneg %p108
        $region18: #{tpu_custom_call.1} parent=11 // pred_check_branch
          %584 = sbr.rel (%p582) target = $region20
        $region19: #{tpu_custom_call.1} parent=11 // pred_region
          %s586 = ssub.s32 2048, 2048
          %587 = vsyncadd [#allocation6], %s586
          %s588 = sshll.u32 [#allocation7], 4
          %s589 = int_to_ptr.vmem [resolvable:$true] %s588
          %594 = dma.hbm_to_vmem [thread:$0]  %s2, 2048, %s589, [#allocation6], 64, 64, 4
        $region20: #{tpu_custom_call.1} parent=11 // pred_fallthru
          _
        // Predicated region
        $region21: #{tpu_custom_call.1} parent=11 // pred_check
          %p595 = pneg %p129
        $region22: #{tpu_custom_call.1} parent=11 // pred_check_branch
          %597 = sbr.rel (%p595) target = $region24
        $region23: #{tpu_custom_call.1} parent=11 // pred_region
          %s599 = ssub.s32 1024, 1024
          %600 = vsyncadd [#allocation9], %s599
          %s601 = sshll.u32 [#allocation8], 4
          %s602 = int_to_ptr.vmem [resolvable:$true] %s601
          %607 = dma.hbm_to_vmem [thread:$0]  %s3, 1024, %s602, [#allocation9], 64, 64, 4
        $region24: #{tpu_custom_call.1} parent=11 // pred_fallthru
          _
        // Predicated region
        $region25: #{tpu_custom_call.1} parent=11 // pred_check
          %p608 = pneg %p150
        $region26: #{tpu_custom_call.1} parent=11 // pred_check_branch
          %610 = sbr.rel (%p608) target = $region28
        $region27: #{tpu_custom_call.1} parent=11 // pred_region
          %s612 = ssub.s32 1024, 1024
          %613 = vsyncadd [#allocation9], %s612
          %s614 = sshll.u32 [#allocation10], 4
          %s615 = int_to_ptr.vmem [resolvable:$true] %s614
          %620 = dma.hbm_to_vmem [thread:$0]  %s4, 1024, %s615, [#allocation9], 64, 64, 4
        $region28: #{tpu_custom_call.1} parent=11 // pred_fallthru
          _
        // Predicated region
        $region29: #{tpu_custom_call.1} parent=11 // pred_check
          %p621 = pneg %p171
        $region30: #{tpu_custom_call.1} parent=11 // pred_check_branch
          %623 = sbr.rel (%p621) target = $region32
        $region31: #{tpu_custom_call.1} parent=11 // pred_region
          %s625 = ssub.s32 1024, 1024
          %626 = vsyncadd [#allocation12], %s625
          %s627 = sshll.u32 [#allocation11], 4
          %s628 = int_to_ptr.vmem [resolvable:$true] %s627
          %633 = dma.hbm_to_vmem [thread:$0]  %s5, 1024, %s628, [#allocation12], 64, 64, 4
        $region32: #{tpu_custom_call.1} parent=11 // pred_fallthru
          _
        // Predicated region
        $region33: #{tpu_custom_call.1} parent=11 // pred_check
          %p634 = pneg %p192
        $region34: #{tpu_custom_call.1} parent=11 // pred_check_branch
          %636 = sbr.rel (%p634) target = $region36
        $region35: #{tpu_custom_call.1} parent=11 // pred_region
          _
        $region36: #{tpu_custom_call.1} parent=11 // pred_fallthru
          _
        // Predicated region
        $region37: #{tpu_custom_call.1} parent=11 // pred_check
          %p637 = pneg %p213
        $region38: #{tpu_custom_call.1} parent=11 // pred_check_branch
          %639 = sbr.rel (%p637) target = $region40
        $region39: #{tpu_custom_call.1} parent=11 // pred_region
          %s641 = ssub.s32 1024, 1024
          %642 = vsyncadd [#allocation12], %s641
          %s643 = sshll.u32 [#allocation13], 4
          %s644 = int_to_ptr.vmem [resolvable:$true] %s643
          %649 = dma.hbm_to_vmem [thread:$0]  %s7, 1024, %s644, [#allocation12], 64, 64, 4
        $region40: #{tpu_custom_call.1} parent=11 // pred_fallthru
          _
        // Predicated region
        $region41: #{tpu_custom_call.1} parent=11 // pred_check
          %p650 = pneg %p234
        $region42: #{tpu_custom_call.1} parent=11 // pred_check_branch
          %652 = sbr.rel (%p650) target = $region44
        $region43: #{tpu_custom_call.1} parent=11 // pred_region
          _
        $region44: #{tpu_custom_call.1} parent=11 // pred_fallthru
          _
        // Predicated region
        $region45: #{tpu_custom_call.1} parent=11 // pred_check
          %p653 = pneg %p255
        $region46: #{tpu_custom_call.1} parent=11 // pred_check_branch
          %655 = sbr.rel (%p653) target = $region48
        $region47: #{tpu_custom_call.1} parent=11 // pred_region
          _
        $region48: #{tpu_custom_call.1} parent=11 // pred_fallthru
          _
        // Predicated region
        $region49: #{tpu_custom_call.1} parent=11 // pred_check
          %p656 = pneg %p276
        $region50: #{tpu_custom_call.1} parent=11 // pred_check_branch
          %658 = sbr.rel (%p656) target = $region52
        $region51: #{tpu_custom_call.1} parent=11 // pred_region
          _
        $region52: #{tpu_custom_call.1} parent=11 // pred_fallthru
          _
        // Predicated region
        $region53: #{tpu_custom_call.1} parent=11 // pred_check
          %p659 = pneg %p297
        $region54: #{tpu_custom_call.1} parent=11 // pred_check_branch
          %661 = sbr.rel (%p659) target = $region56
        $region55: #{tpu_custom_call.1} parent=11 // pred_region
          %s663 = ssub.s32 1024, 1024
          %664 = vsyncadd [#allocation15], %s663
          %s665 = sshll.u32 [#allocation14], 4
          %s666 = int_to_ptr.vmem [resolvable:$true] %s665
          %671 = dma.hbm_to_vmem [thread:$0]  %s11, 1024, %s666, [#allocation15], 64, 64, 4
        $region56: #{tpu_custom_call.1} parent=11 // pred_fallthru
          _
        // Predicated region
        $region57: #{tpu_custom_call.1} parent=11 // pred_check
          %p672 = pneg %p318
        $region58: #{tpu_custom_call.1} parent=11 // pred_check_branch
          %674 = sbr.rel (%p672) target = $region60
        $region59: #{tpu_custom_call.1} parent=11 // pred_region
          _
        $region60: #{tpu_custom_call.1} parent=11 // pred_fallthru
          _
        // Predicated region
        $region61: #{tpu_custom_call.1} parent=11 // pred_check
          %p675 = pneg %p339
        $region62: #{tpu_custom_call.1} parent=11 // pred_check_branch
          %677 = sbr.rel (%p675) target = $region64
        $region63: #{tpu_custom_call.1} parent=11 // pred_region
          %s679 = ssub.s32 1024, 1024
          %680 = vsyncadd [#allocation15], %s679
          %s681 = sshll.u32 [#allocation16], 4
          %s682 = int_to_ptr.vmem [resolvable:$true] %s681
          %687 = dma.hbm_to_vmem [thread:$0]  %s13, 1024, %s682, [#allocation15], 64, 64, 4
        $region64: #{tpu_custom_call.1} parent=11 // pred_fallthru
          _
        // Predicated region
        $region65: #{tpu_custom_call.1} parent=11 // pred_check
          %p688 = pneg %p360
        $region66: #{tpu_custom_call.1} parent=11 // pred_check_branch
          %690 = sbr.rel (%p688) target = $region68
        $region67: #{tpu_custom_call.1} parent=11 // pred_region
          _
        $region68: #{tpu_custom_call.1} parent=11 // pred_fallthru
          _
        // Predicated region
        $region69: #{tpu_custom_call.1} parent=11 // pred_check
          %p691 = pneg %p381
        $region70: #{tpu_custom_call.1} parent=11 // pred_check_branch
          %693 = sbr.rel (%p691) target = $region72
        $region71: #{tpu_custom_call.1} parent=11 // pred_region
          _
        $region72: #{tpu_custom_call.1} parent=11 // pred_fallthru
          _
        // Predicated region
        $region73: #{tpu_custom_call.1} parent=11 // pred_check
          %p694 = pneg %p402
        $region74: #{tpu_custom_call.1} parent=11 // pred_check_branch
          %696 = sbr.rel (%p694) target = $region76
        $region75: #{tpu_custom_call.1} parent=11 // pred_region
          _
        $region76: #{tpu_custom_call.1} parent=11 // pred_fallthru
          _
        // Predicated region
        $region77: #{tpu_custom_call.1} parent=11 // pred_check
          %p697 = pneg %p423
        $region78: #{tpu_custom_call.1} parent=11 // pred_check_branch
          %699 = sbr.rel (%p697) target = $region80
        $region79: #{tpu_custom_call.1} parent=11 // pred_region
          %s701 = ssub.s32 2048, 2048
          %702 = vsyncadd [#allocation18], %s701
          %s703 = sshll.u32 [#allocation17], 4
          %s704 = int_to_ptr.vmem [resolvable:$true] %s703
          %709 = dma.hbm_to_vmem [thread:$0]  %s17, 2048, %s704, [#allocation18], 128, 128, 8
        $region80: #{tpu_custom_call.1} parent=11 // pred_fallthru
          _
        // Predicated region
        $region81: #{tpu_custom_call.1} parent=11 // pred_check
          %p710 = pneg %p444
        $region82: #{tpu_custom_call.1} parent=11 // pred_check_branch
          %712 = sbr.rel (%p710) target = $region84
        $region83: #{tpu_custom_call.1} parent=11 // pred_region
          _
        $region84: #{tpu_custom_call.1} parent=11 // pred_fallthru
          _
        // Predicated region
        $region85: #{tpu_custom_call.1} parent=11 // pred_check
          %p713 = pneg %p465
        $region86: #{tpu_custom_call.1} parent=11 // pred_check_branch
          %715 = sbr.rel (%p713) target = $region88
        $region87: #{tpu_custom_call.1} parent=11 // pred_region
          %s717 = ssub.s32 2048, 2048
          %718 = vsyncadd [#allocation18], %s717
          %s719 = sshll.u32 [#allocation19], 4
          %s720 = int_to_ptr.vmem [resolvable:$true] %s719
          %725 = dma.hbm_to_vmem [thread:$0]  %s19, 2048, %s720, [#allocation18], 64, 64, 4
        $region88: #{tpu_custom_call.1} parent=11 // pred_fallthru
          _
        // Predicated region
        $region89: #{tpu_custom_call.1} parent=11 // pred_check
          %p726 = pneg %p486
        $region90: #{tpu_custom_call.1} parent=11 // pred_check_branch
          %728 = sbr.rel (%p726) target = $region92
        $region91: #{tpu_custom_call.1} parent=11 // pred_region
          _
        $region92: #{tpu_custom_call.1} parent=11 // pred_fallthru
          _
        // Predicated region
        $region93: #{tpu_custom_call.1} parent=11 // pred_check
          %p729 = pneg %p507
        $region94: #{tpu_custom_call.1} parent=11 // pred_check_branch
          %731 = sbr.rel (%p729) target = $region96
        $region95: #{tpu_custom_call.1} parent=11 // pred_region
          _
        $region96: #{tpu_custom_call.1} parent=11 // pred_fallthru
          _
        // Predicated region
        $region97: #{tpu_custom_call.1} parent=11 // pred_check
          %p732 = pneg %p528
        $region98: #{tpu_custom_call.1} parent=11 // pred_check_branch
          %734 = sbr.rel (%p732) target = $region100
        $region99: #{tpu_custom_call.1} parent=11 // pred_region
          _
        $region100: #{tpu_custom_call.1} parent=11 // pred_fallthru
          _
      $region12: #{tpu_custom_call.1} parent=5 // pred_fallthru
        _
      %p735 = scmp.lt.s32.totalorder %s40, 2
      // Predicated region
      $region101: #{tpu_custom_call.1} parent=5 // pred_check
        %p736 = pneg %p735
      $region102: #{tpu_custom_call.1} parent=5 // pred_check_branch
        %738 = sbr.rel (%p736) target = $region104
      $region103: #{tpu_custom_call.1} parent=5 // pred_region
        // Predicated region
        $region105: #{tpu_custom_call.1} parent=103 // pred_check
          %p739 = pneg %p60
        $region106: #{tpu_custom_call.1} parent=103 // pred_check_branch
          %741 = sbr.rel (%p739) target = $region108
        $region107: #{tpu_custom_call.1} parent=103 // pred_region
          %s742 = sand.u32 %s50, 1
          %s743 = scalar_lea.sflag [#allocation3], %s742
          %s744 = sand.u32 %s50, 1
          %s745 = smul.addr %s744, 128
          %s746 = scalar_lea.vmem [#allocation2], %s745
          %s747 = smul.u32 16, %s40
          %s749 = ssub.s32 2048, 2048
          %750 = vsyncadd %s743, %s749
          %s751 = smul.addr %s747, 128
          %s752 = scalar_lea.hbm %s0, %s751
          %s753 = sshll.u32 %s746, 4
          %s754 = int_to_ptr.vmem [resolvable:$true] %s753
          %759 = dma.hbm_to_vmem [thread:$0]  %s752, 2048, %s754, %s743, 128, 128, 8
        $region108: #{tpu_custom_call.1} parent=103 // pred_fallthru
          _
      $region104: #{tpu_custom_call.1} parent=5 // pred_fallthru
        _
      %p760 = scmp.le.s32.totalorder 1, %s40
      %p761 = scmp.lt.s32.totalorder %s40, 3
      %p762 = pnand %p760, %p761
      %p763 = pneg %p762
      // Predicated region
      $region109: #{tpu_custom_call.1} parent=5 // pred_check
        _
      $region110: #{tpu_custom_call.1} parent=5 // pred_check_branch
        %765 = sbr.rel (%p762) target = $region112
      $region111: #{tpu_custom_call.1} parent=5 // pred_region
        %s766 = ssub.s32 %s40, 1
        %s767 = sand.u32 %s53, 1
        %s768 = scalar_lea.sflag [#allocation3], %s767
        %s769 = sand.u32 %s53, 1
        %s770 = smul.addr %s769, 128
        %s771 = scalar_lea.vmem [#allocation2], %s770
        // Predicated region
        $region113: #{tpu_custom_call.1} parent=111 // pred_check
          %p772 = pneg %p66
        $region114: #{tpu_custom_call.1} parent=111 // pred_check_branch
          %774 = sbr.rel (%p772) target = $region116
        $region115: #{tpu_custom_call.1} parent=111 // pred_region
          %775 = dma.done %s768, 2048
        $region116: #{tpu_custom_call.1} parent=111 // pred_fallthru
          _
        // Predicated region
        $region117: #{tpu_custom_call.1} parent=111 // pred_check
          %p776 = pneg %p87
        $region118: #{tpu_custom_call.1} parent=111 // pred_check_branch
          %778 = sbr.rel (%p776) target = $region120
        $region119: #{tpu_custom_call.1} parent=111 // pred_region
          %779 = dma.done [#allocation6], 2048
        $region120: #{tpu_custom_call.1} parent=111 // pred_fallthru
          _
        // Predicated region
        $region121: #{tpu_custom_call.1} parent=111 // pred_check
          %p780 = pneg %p108
        $region122: #{tpu_custom_call.1} parent=111 // pred_check_branch
          %782 = sbr.rel (%p780) target = $region124
        $region123: #{tpu_custom_call.1} parent=111 // pred_region
          %783 = dma.done [#allocation6], 2048
        $region124: #{tpu_custom_call.1} parent=111 // pred_fallthru
          _
        // Predicated region
        $region125: #{tpu_custom_call.1} parent=111 // pred_check
          %p784 = pneg %p129
        $region126: #{tpu_custom_call.1} parent=111 // pred_check_branch
          %786 = sbr.rel (%p784) target = $region128
        $region127: #{tpu_custom_call.1} parent=111 // pred_region
          %787 = dma.done [#allocation9], 1024
        $region128: #{tpu_custom_call.1} parent=111 // pred_fallthru
          _
        // Predicated region
        $region129: #{tpu_custom_call.1} parent=111 // pred_check
          %p788 = pneg %p150
        $region130: #{tpu_custom_call.1} parent=111 // pred_check_branch
          %790 = sbr.rel (%p788) target = $region132
        $region131: #{tpu_custom_call.1} parent=111 // pred_region
          %791 = dma.done [#allocation9], 1024
        $region132: #{tpu_custom_call.1} parent=111 // pred_fallthru
          _
        // Predicated region
        $region133: #{tpu_custom_call.1} parent=111 // pred_check
          %p792 = pneg %p171
        $region134: #{tpu_custom_call.1} parent=111 // pred_check_branch
          %794 = sbr.rel (%p792) target = $region136
        $region135: #{tpu_custom_call.1} parent=111 // pred_region
          %795 = dma.done [#allocation12], 1024
        $region136: #{tpu_custom_call.1} parent=111 // pred_fallthru
          _
        // Predicated region
        $region137: #{tpu_custom_call.1} parent=111 // pred_check
          %p796 = pneg %p213
        $region138: #{tpu_custom_call.1} parent=111 // pred_check_branch
          %798 = sbr.rel (%p796) target = $region140
        $region139: #{tpu_custom_call.1} parent=111 // pred_region
          %799 = dma.done [#allocation12], 1024
        $region140: #{tpu_custom_call.1} parent=111 // pred_fallthru
          _
        // Predicated region
        $region141: #{tpu_custom_call.1} parent=111 // pred_check
          %p800 = pneg %p297
        $region142: #{tpu_custom_call.1} parent=111 // pred_check_branch
          %802 = sbr.rel (%p800) target = $region144
        $region143: #{tpu_custom_call.1} parent=111 // pred_region
          %803 = dma.done [#allocation15], 1024
        $region144: #{tpu_custom_call.1} parent=111 // pred_fallthru
          _
        // Predicated region
        $region145: #{tpu_custom_call.1} parent=111 // pred_check
          %p804 = pneg %p339
        $region146: #{tpu_custom_call.1} parent=111 // pred_check_branch
          %806 = sbr.rel (%p804) target = $region148
        $region147: #{tpu_custom_call.1} parent=111 // pred_region
          %807 = dma.done [#allocation15], 1024
        $region148: #{tpu_custom_call.1} parent=111 // pred_fallthru
          _
        // Predicated region
        $region149: #{tpu_custom_call.1} parent=111 // pred_check
          %p808 = pneg %p423
        $region150: #{tpu_custom_call.1} parent=111 // pred_check_branch
          %810 = sbr.rel (%p808) target = $region152
        $region151: #{tpu_custom_call.1} parent=111 // pred_region
          %811 = dma.done [#allocation18], 2048
        $region152: #{tpu_custom_call.1} parent=111 // pred_fallthru
          _
        // Predicated region
        $region153: #{tpu_custom_call.1} parent=111 // pred_check
          %p812 = pneg %p465
        $region154: #{tpu_custom_call.1} parent=111 // pred_check_branch
          %814 = sbr.rel (%p812) target = $region156
        $region155: #{tpu_custom_call.1} parent=111 // pred_region
          %815 = dma.done [#allocation18], 2048
        $region156: #{tpu_custom_call.1} parent=111 // pred_fallthru
          _
        %s816 = sand.u32 %s53, 1
        %s817 = scalar_lea.sflag [#allocation3], %s816
        %s818 = sand.u32 %s53, 1
        %s819 = smul.addr %s818, 128
        %s820 = scalar_lea.vmem [#allocation2], %s819
        %p821 = pneg %p66
        %p822 = pneg %p63
        %p823 = pneg %p87
        %p824 = pneg %p84
        %p825 = pneg %p108
        %p826 = pneg %p105
        %p827 = pneg %p129
        %p828 = pneg %p126
        %p829 = pneg %p150
        %p830 = pneg %p147
        %p831 = pneg %p171
        %p832 = pneg %p168
        %p833 = pneg %p192
        %p834 = pneg %p189
        %p835 = pneg %p213
        %p836 = pneg %p210
        %p837 = pneg %p234
        %p838 = pneg %p231
        %p839 = pneg %p255
        %p840 = pneg %p252
        %p841 = pneg %p276
        %p842 = pneg %p273
        %p843 = pneg %p297
        %p844 = pneg %p294
        %p845 = pneg %p318
        %p846 = pneg %p315
        %p847 = pneg %p339
        %p848 = pneg %p336
        %p849 = pneg %p360
        %p850 = pneg %p357
        %p851 = pneg %p381
        %p852 = pneg %p378
        %p853 = pneg %p402
        %p854 = pneg %p399
        %p855 = pneg %p423
        %p856 = pneg %p420
        %p857 = pneg %p444
        %p858 = pneg %p441
        %p859 = pneg %p465
        %p860 = pneg %p462
        %p861 = pneg %p486
        %p862 = pneg %p483
        %p863 = pneg %p507
        %p864 = pneg %p504
        %p865 = pneg %p528
        %p866 = pneg %p525
        %p867 = pneg %p554
        %p868 = pneg %p551
        %s869 = sand.u32 %s541, 1
        %s870 = scalar_lea.sflag [#allocation4], %s869
        %s871 = sand.u32 %s541, 1
        %s872 = smul.addr %s871, 128
        %s873 = scalar_lea.vmem [#allocation20], %s872
        %s874 = smul.u32 16, %s45
        %s875 = smul.u32 16, %s45
        %s877 = smul.u32 %s45, 128
        %v878 = vld [vmem:[%s771] sm:$0xff]
        %v879 = vld [vmem:[%s771 + $0x8] sm:$0xff]
        %v880 = vld [vmem:[%s771 + $0x10] sm:$0xff]
        %v881 = vld [vmem:[%s771 + $0x18] sm:$0xff]
        %v882 = vld [vmem:[%s771 + $0x20] sm:$0xff]
        %v883 = vld [vmem:[%s771 + $0x28] sm:$0xff]
        %v884 = vld [vmem:[%s771 + $0x30] sm:$0xff]
        %v885 = vld [vmem:[%s771 + $0x38] sm:$0xff]
        %v886 = vld [vmem:[%s771 + $0x40] sm:$0xff]
        %v887 = vld [vmem:[%s771 + $0x48] sm:$0xff]
        %v888 = vld [vmem:[%s771 + $0x50] sm:$0xff]
        %v889 = vld [vmem:[%s771 + $0x58] sm:$0xff]
        %v890 = vld [vmem:[%s771 + $0x60] sm:$0xff]
        %v891 = vld [vmem:[%s771 + $0x68] sm:$0xff]
        %v892 = vld [vmem:[%s771 + $0x70] sm:$0xff]
        %v893 = vld [vmem:[%s771 + $0x78] sm:$0xff]
        %v894 = vpack.c.bf16 %v879, %v878
        %v895 = vpack.c.bf16 %v881, %v880
        %v896 = vpack.c.bf16 %v883, %v882
        %v897 = vpack.c.bf16 %v885, %v884
        %v898 = vpack.c.bf16 %v887, %v886
        %v899 = vpack.c.bf16 %v889, %v888
        %v900 = vpack.c.bf16 %v891, %v890
        %v901 = vpack.c.bf16 %v893, %v892
        %v902 = vld [vmem:[#allocation11] sm:$0xf]
        %v903 = vld [vmem:[#allocation11 + $0x4] sm:$0xf]
        %v904 = vld [vmem:[#allocation11 + $0x8] sm:$0xf]
        %v905 = vld [vmem:[#allocation11 + $0xc] sm:$0xf]
        %v906 = vld [vmem:[#allocation11 + $0x10] sm:$0xf]
        %v907 = vld [vmem:[#allocation11 + $0x14] sm:$0xf]
        %v908 = vld [vmem:[#allocation11 + $0x18] sm:$0xf]
        %v909 = vld [vmem:[#allocation11 + $0x1c] sm:$0xf]
        %v910 = vld [vmem:[#allocation11 + $0x20] sm:$0xf]
        %v911 = vld [vmem:[#allocation11 + $0x24] sm:$0xf]
        %v912 = vld [vmem:[#allocation11 + $0x28] sm:$0xf]
        %v913 = vld [vmem:[#allocation11 + $0x2c] sm:$0xf]
        %v914 = vld [vmem:[#allocation11 + $0x30] sm:$0xf]
        %v915 = vld [vmem:[#allocation11 + $0x34] sm:$0xf]
        %v916 = vld [vmem:[#allocation11 + $0x38] sm:$0xf]
        %v917 = vld [vmem:[#allocation11 + $0x3c] sm:$0xf]
        %v918 = vld [vmem:[%s6] sm:$0x1]
        %v920 = vlaneseq
        %v921 = vshrl.u32 %v920, 7
        %v922 = vsub.s32 0, %v921
        %v923 = vrot.slane %v918, %v922
        %v941 = vunpack.c.l.b16 %v902
        %v942 = vunpack.c.l.b16 %v903
        %v943 = vunpack.c.l.b16 %v904
        %v944 = vunpack.c.l.b16 %v905
        %v945 = vunpack.c.l.b16 %v906
        %v946 = vunpack.c.l.b16 %v907
        %v947 = vunpack.c.l.b16 %v908
        %v948 = vunpack.c.l.b16 %v909
        %v949 = vunpack.c.l.b16 %v910
        %v950 = vunpack.c.l.b16 %v911
        %v951 = vunpack.c.l.b16 %v912
        %v952 = vunpack.c.l.b16 %v913
        %v953 = vunpack.c.l.b16 %v914
        %v954 = vunpack.c.l.b16 %v915
        %v955 = vunpack.c.l.b16 %v916
        %v956 = vunpack.c.l.b16 %v917
        %v957 = vpack.c.b16 %v942, %v941
        %v958 = vpack.c.b16 %v944, %v943
        %v959 = vpack.c.b16 %v946, %v945
        %v960 = vpack.c.b16 %v948, %v947
        %v961 = vpack.c.b16 %v950, %v949
        %v962 = vpack.c.b16 %v952, %v951
        %v963 = vpack.c.b16 %v954, %v953
        %v964 = vpack.c.b16 %v956, %v955
        %973 = vmatprep.subr.bf16.mxu0 0
        %974 = vmatpush1.bf16.msra.mxu0 %v957
        %975 = vmatprep.subr.bf16.mxu0 0
        %976 = vmatpush1.bf16.msra.mxu0 %v958
        %977 = vmatprep.subr.bf16.mxu0 0
        %978 = vmatpush1.bf16.msra.mxu0 %v959
        %979 = vmatprep.subr.bf16.mxu0 0
        %980 = vmatpush1.bf16.msra.mxu0 %v960
        %981 = vmatprep.subr.bf16.mxu0 0
        %982 = vmatpush1.bf16.msra.mxu0 %v961
        %983 = vmatprep.subr.bf16.mxu0 0
        %984 = vmatpush1.bf16.msra.mxu0 %v962
        %985 = vmatprep.subr.bf16.mxu0 0
        %986 = vmatpush1.bf16.msra.mxu0 %v963
        %987 = vmatprep.subr.bf16.mxu0 0
        %988 = vmatpush1.bf16.msra.mxu0 %v964
        %989 = vmatprep.subr.bf16.mxu0 0
        %990 = vmatpush1.bf16.msra.mxu0 0
        %991 = vmatprep.subr.bf16.mxu0 0
        %992 = vmatpush1.bf16.msra.mxu0 0
        %993 = vmatprep.subr.bf16.mxu0 0
        %994 = vmatpush1.bf16.msra.mxu0 0
        %995 = vmatprep.subr.bf16.mxu0 0
        %996 = vmatpush1.bf16.msra.mxu0 0
        %997 = vmatprep.subr.bf16.mxu0 0
        %998 = vmatpush1.bf16.msra.mxu0 0
        %999 = vmatprep.subr.bf16.mxu0 0
        %1000 = vmatpush1.bf16.msra.mxu0 0
        %1001 = vmatprep.subr.bf16.mxu0 0
        %1002 = vmatpush1.bf16.msra.mxu0 0
        %1003 = vmatprep.subr.bf16.mxu0 0
        %1004 = vmatpush1.bf16.msra.mxu0 0
        %1005 = vmatprep.mubr.bf16.mxu0 0
        %1006 = vmatmul.mubr.bf16.gmra.mrb[0].mxu0 %v894
        %v1007 = vpop.f32.mrb[0].mxu0
        %v1008 = vadd.f32 %v923, %v1007
        %v1009 = vpop.f32.mrb[0].mxu0
        %v1010 = vpop.f32.mrb[0].mxu0
        %v1011 = vadd.f32 %v923, %v1010
        %v1012 = vpop.f32.mrb[0].mxu0
        %1013 = vmatprep.mubr.bf16.mxu0 0
        %1014 = vmatmul.mubr.bf16.gmra.mrb[0].mxu0 %v895
        %v1015 = vpop.f32.mrb[0].mxu0
        %v1016 = vadd.f32 %v923, %v1015
        %v1017 = vpop.f32.mrb[0].mxu0
        %v1018 = vpop.f32.mrb[0].mxu0
        %v1019 = vadd.f32 %v923, %v1018
        %v1020 = vpop.f32.mrb[0].mxu0
        %1021 = vmatprep.mubr.bf16.mxu0 0
        %1022 = vmatmul.mubr.bf16.gmra.mrb[0].mxu0 %v896
        %v1023 = vpop.f32.mrb[0].mxu0
        %v1024 = vadd.f32 %v923, %v1023
        %v1025 = vpop.f32.mrb[0].mxu0
        %v1026 = vpop.f32.mrb[0].mxu0
        %v1027 = vadd.f32 %v923, %v1026
        %v1028 = vpop.f32.mrb[0].mxu0
        %1029 = vmatprep.mubr.bf16.mxu0 0
        %1030 = vmatmul.mubr.bf16.gmra.mrb[0].mxu0 %v897
        %v1031 = vpop.f32.mrb[0].mxu0
        %v1032 = vadd.f32 %v923, %v1031
        %v1033 = vpop.f32.mrb[0].mxu0
        %v1034 = vpop.f32.mrb[0].mxu0
        %v1035 = vadd.f32 %v923, %v1034
        %v1036 = vpop.f32.mrb[0].mxu0
        %1037 = vmatprep.mubr.bf16.mxu0 0
        %1038 = vmatmul.mubr.bf16.gmra.mrb[0].mxu0 %v898
        %v1039 = vpop.f32.mrb[0].mxu0
        %v1040 = vadd.f32 %v923, %v1039
        %v1041 = vpop.f32.mrb[0].mxu0
        %v1042 = vpop.f32.mrb[0].mxu0
        %v1043 = vadd.f32 %v923, %v1042
        %v1044 = vpop.f32.mrb[0].mxu0
        %1045 = vmatprep.mubr.bf16.mxu0 0
        %1046 = vmatmul.mubr.bf16.gmra.mrb[0].mxu0 %v899
        %v1047 = vpop.f32.mrb[0].mxu0
        %v1048 = vadd.f32 %v923, %v1047
        %v1049 = vpop.f32.mrb[0].mxu0
        %v1050 = vpop.f32.mrb[0].mxu0
        %v1051 = vadd.f32 %v923, %v1050
        %v1052 = vpop.f32.mrb[0].mxu0
        %1053 = vmatprep.mubr.bf16.mxu0 0
        %1054 = vmatmul.mubr.bf16.gmra.mrb[0].mxu0 %v900
        %v1055 = vpop.f32.mrb[0].mxu0
        %v1056 = vadd.f32 %v923, %v1055
        %v1057 = vpop.f32.mrb[0].mxu0
        %v1058 = vpop.f32.mrb[0].mxu0
        %v1059 = vadd.f32 %v923, %v1058
        %v1060 = vpop.f32.mrb[0].mxu0
        %1061 = vmatprep.mubr.bf16.mxu0 0
        %1062 = vmatmul.mubr.bf16.gmra.mrb[0].mxu0 %v901
        %v1063 = vpop.f32.mrb[0].mxu0
        %v1064 = vadd.f32 %v923, %v1063
        %v1065 = vpop.f32.mrb[0].mxu0
        %v1066 = vpop.f32.mrb[0].mxu0
        %v1067 = vadd.f32 %v923, %v1066
        %v1068 = vpop.f32.mrb[0].mxu0
        %1069 = vdwg.mxu0
        %v1070 = vmul.f32 %v1008, 0.088388346
        %v1071 = vmul.f32 %v1011, 0.088388346
        %v1072 = vmul.f32 %v1016, 0.088388346
        %v1073 = vmul.f32 %v1019, 0.088388346
        %v1074 = vmul.f32 %v1024, 0.088388346
        %v1075 = vmul.f32 %v1027, 0.088388346
        %v1076 = vmul.f32 %v1032, 0.088388346
        %v1077 = vmul.f32 %v1035, 0.088388346
        %v1078 = vmul.f32 %v1040, 0.088388346
        %v1079 = vmul.f32 %v1043, 0.088388346
        %v1080 = vmul.f32 %v1048, 0.088388346
        %v1081 = vmul.f32 %v1051, 0.088388346
        %v1082 = vmul.f32 %v1056, 0.088388346
        %v1083 = vmul.f32 %v1059, 0.088388346
        %v1084 = vmul.f32 %v1064, 0.088388346
        %v1085 = vmul.f32 %v1067, 0.088388346
        %v1086 = vpack.c.bf16 %v1071, %v1070
        %v1087 = vpack.c.bf16 %v1073, %v1072
        %v1088 = vpack.c.bf16 %v1075, %v1074
        %v1089 = vpack.c.bf16 %v1077, %v1076
        %v1090 = vpack.c.bf16 %v1079, %v1078
        %v1091 = vpack.c.bf16 %v1081, %v1080
        %v1092 = vpack.c.bf16 %v1083, %v1082
        %v1093 = vpack.c.bf16 %v1085, %v1084
        %v1094 = vlaneseq
        %v1095 = vshrl.u32 %v1094, 7
        %v1096 = vadd.s32 %v1095, 8
        %v1097 = vadd.s32 %v1095, 16
        %v1098 = vadd.s32 %v1095, 24
        %v1099 = vadd.s32 %v1095, 32
        %v1100 = vadd.s32 %v1095, 40
        %v1101 = vadd.s32 %v1095, 48
        %v1102 = vadd.s32 %v1095, 56
        %v1103 = vadd.s32 %v1095, 64
        %v1104 = vadd.s32 %v1095, 72
        %v1105 = vadd.s32 %v1095, 80
        %v1106 = vadd.s32 %v1095, 88
        %v1107 = vadd.s32 %v1095, 96
        %v1108 = vadd.s32 %v1095, 104
        %v1109 = vadd.s32 %v1095, 112
        %v1110 = vadd.s32 %v1095, 120
        %v1111 = vstv %s877
        %v1112 = vadd.s32 %v1095, %v1111
        %v1113 = vadd.s32 %v1096, %v1111
        %v1114 = vadd.s32 %v1097, %v1111
        %v1115 = vadd.s32 %v1098, %v1111
        %v1116 = vadd.s32 %v1099, %v1111
        %v1117 = vadd.s32 %v1100, %v1111
        %v1118 = vadd.s32 %v1101, %v1111
        %v1119 = vadd.s32 %v1102, %v1111
        %v1120 = vadd.s32 %v1103, %v1111
        %v1121 = vadd.s32 %v1104, %v1111
        %v1122 = vadd.s32 %v1105, %v1111
        %v1123 = vadd.s32 %v1106, %v1111
        %v1124 = vadd.s32 %v1107, %v1111
        %v1125 = vadd.s32 %v1108, %v1111
        %v1126 = vadd.s32 %v1109, %v1111
        %v1127 = vadd.s32 %v1110, %v1111
        %s1128 = sadd.s32 %s45, 1
        // While loop
        $region157: #{tpu_custom_call.1} parent=111 // loop_pre_header
          _
        $region158: #{tpu_custom_call.1} parent=111 // loop_header
          %s1130 = sphi 0, %s1132
          %p1131 = scmp.ge.s32.totalorder %s1130, %s1128
          %v1135 = vphi -1e+30, %v1435
          %v1136 = vphi -1e+30, %v1436
          %v1137 = vphi -1e+30, %v1437
          %v1138 = vphi -1e+30, %v1438
          %v1139 = vphi -1e+30, %v1439
          %v1140 = vphi -1e+30, %v1440
          %v1141 = vphi -1e+30, %v1441
          %v1142 = vphi -1e+30, %v1442
          %v1143 = vphi -1e+30, %v1443
          %v1144 = vphi -1e+30, %v1444
          %v1145 = vphi -1e+30, %v1445
          %v1146 = vphi -1e+30, %v1446
          %v1147 = vphi -1e+30, %v1447
          %v1148 = vphi -1e+30, %v1448
          %v1149 = vphi -1e+30, %v1449
          %v1150 = vphi -1e+30, %v1450
          %v1151 = vphi 0.0, %v1595
          %v1152 = vphi 0.0, %v1596
          %v1153 = vphi 0.0, %v1597
          %v1154 = vphi 0.0, %v1598
          %v1155 = vphi 0.0, %v1599
          %v1156 = vphi 0.0, %v1600
          %v1157 = vphi 0.0, %v1601
          %v1158 = vphi 0.0, %v1602
          %v1159 = vphi 0.0, %v1603
          %v1160 = vphi 0.0, %v1604
          %v1161 = vphi 0.0, %v1605
          %v1162 = vphi 0.0, %v1606
          %v1163 = vphi 0.0, %v1607
          %v1164 = vphi 0.0, %v1608
          %v1165 = vphi 0.0, %v1609
          %v1166 = vphi 0.0, %v1610
          %v1167 = vphi 0.0, %v1780
          %v1168 = vphi 0.0, %v1781
          %v1169 = vphi 0.0, %v1782
          %v1170 = vphi 0.0, %v1783
          %v1171 = vphi 0.0, %v1784
          %v1172 = vphi 0.0, %v1785
          %v1173 = vphi 0.0, %v1786
          %v1174 = vphi 0.0, %v1787
          %v1175 = vphi 0.0, %v1788
          %v1176 = vphi 0.0, %v1789
          %v1177 = vphi 0.0, %v1790
          %v1178 = vphi 0.0, %v1791
          %v1179 = vphi 0.0, %v1792
          %v1180 = vphi 0.0, %v1793
          %v1181 = vphi 0.0, %v1794
          %v1182 = vphi 0.0, %v1795
        $region159: #{tpu_custom_call.1} parent=111 // loop_header_branch
          %1134 = sbr.rel (%p1131) target = $region163
        $region160: #{tpu_custom_call.1} parent=111 // loop_body
          %s1183 = smul.u32 %s1130, 128
          %s1184 = sshra.s32 %s1183, 3
          %s1185 = sand.u32 %s1183, 7
          %s1186 = smul.addr %s1184, 4
          %s1187 = scalar_lea.vmem [#allocation5], %s1186
          %v1188 = vld [vmem:[%s1187] sm:$0xf]
          %v1189 = vld [vmem:[%s1187 + $0x4] sm:$0xf]
          %v1190 = vld [vmem:[%s1187 + $0x8] sm:$0xf]
          %v1191 = vld [vmem:[%s1187 + $0xc] sm:$0xf]
          %v1192 = vld [vmem:[%s1187 + $0x10] sm:$0xf]
          %v1193 = vld [vmem:[%s1187 + $0x14] sm:$0xf]
          %v1194 = vld [vmem:[%s1187 + $0x18] sm:$0xf]
          %v1195 = vld [vmem:[%s1187 + $0x1c] sm:$0xf]
          %v1196 = vld [vmem:[%s1187 + $0x20] sm:$0xf]
          %v1197 = vld [vmem:[%s1187 + $0x24] sm:$0xf]
          %v1198 = vld [vmem:[%s1187 + $0x28] sm:$0xf]
          %v1199 = vld [vmem:[%s1187 + $0x2c] sm:$0xf]
          %v1200 = vld [vmem:[%s1187 + $0x30] sm:$0xf]
          %v1201 = vld [vmem:[%s1187 + $0x34] sm:$0xf]
          %v1202 = vld [vmem:[%s1187 + $0x38] sm:$0xf]
          %v1203 = vld [vmem:[%s1187 + $0x3c] sm:$0xf]
          %s1204 = smul.addr %s1184, 4
          %s1205 = scalar_lea.vmem [#allocation7], %s1204
          %v1206 = vld [vmem:[%s1205] sm:$0xf]
          %v1207 = vld [vmem:[%s1205 + $0x4] sm:$0xf]
          %v1208 = vld [vmem:[%s1205 + $0x8] sm:$0xf]
          %v1209 = vld [vmem:[%s1205 + $0xc] sm:$0xf]
          %v1210 = vld [vmem:[%s1205 + $0x10] sm:$0xf]
          %v1211 = vld [vmem:[%s1205 + $0x14] sm:$0xf]
          %v1212 = vld [vmem:[%s1205 + $0x18] sm:$0xf]
          %v1213 = vld [vmem:[%s1205 + $0x1c] sm:$0xf]
          %v1214 = vld [vmem:[%s1205 + $0x20] sm:$0xf]
          %v1215 = vld [vmem:[%s1205 + $0x24] sm:$0xf]
          %v1216 = vld [vmem:[%s1205 + $0x28] sm:$0xf]
          %v1217 = vld [vmem:[%s1205 + $0x2c] sm:$0xf]
          %v1218 = vld [vmem:[%s1205 + $0x30] sm:$0xf]
          %v1219 = vld [vmem:[%s1205 + $0x34] sm:$0xf]
          %v1220 = vld [vmem:[%s1205 + $0x38] sm:$0xf]
          %v1221 = vld [vmem:[%s1205 + $0x3c] sm:$0xf]
          %v1238 = vunpack.c.l.b16 %v1188
          %v1239 = vunpack.c.l.b16 %v1189
          %v1240 = vunpack.c.l.b16 %v1190
          %v1241 = vunpack.c.l.b16 %v1191
          %v1242 = vunpack.c.l.b16 %v1192
          %v1243 = vunpack.c.l.b16 %v1193
          %v1244 = vunpack.c.l.b16 %v1194
          %v1245 = vunpack.c.l.b16 %v1195
          %v1246 = vunpack.c.l.b16 %v1196
          %v1247 = vunpack.c.l.b16 %v1197
          %v1248 = vunpack.c.l.b16 %v1198
          %v1249 = vunpack.c.l.b16 %v1199
          %v1250 = vunpack.c.l.b16 %v1200
          %v1251 = vunpack.c.l.b16 %v1201
          %v1252 = vunpack.c.l.b16 %v1202
          %v1253 = vunpack.c.l.b16 %v1203
          %v1254 = vpack.c.b16 %v1239, %v1238
          %v1255 = vpack.c.b16 %v1241, %v1240
          %v1256 = vpack.c.b16 %v1243, %v1242
          %v1257 = vpack.c.b16 %v1245, %v1244
          %v1258 = vpack.c.b16 %v1247, %v1246
          %v1259 = vpack.c.b16 %v1249, %v1248
          %v1260 = vpack.c.b16 %v1251, %v1250
          %v1261 = vpack.c.b16 %v1253, %v1252
          %1270 = vmatprep.subr.bf16.mxu0 0
          %1271 = vmatpush1.bf16.xpose.msra.mxu0 %v1254
          %1272 = vmatprep.subr.bf16.mxu0 0
          %1273 = vmatpush1.bf16.xpose.msra.mxu0 %v1255
          %1274 = vmatprep.subr.bf16.mxu0 0
          %1275 = vmatpush1.bf16.xpose.msra.mxu0 %v1256
          %1276 = vmatprep.subr.bf16.mxu0 0
          %1277 = vmatpush1.bf16.xpose.msra.mxu0 %v1257
          %1278 = vmatprep.subr.bf16.mxu0 0
          %1279 = vmatpush1.bf16.xpose.msra.mxu0 %v1258
          %1280 = vmatprep.subr.bf16.mxu0 0
          %1281 = vmatpush1.bf16.xpose.msra.mxu0 %v1259
          %1282 = vmatprep.subr.bf16.mxu0 0
          %1283 = vmatpush1.bf16.xpose.msra.mxu0 %v1260
          %1284 = vmatprep.subr.bf16.mxu0 0
          %1285 = vmatpush1.bf16.xpose.msra.mxu0 %v1261
          %1286 = vmatprep.subr.bf16.mxu0 0
          %1287 = vmatpush1.bf16.xpose.msra.mxu0 0
          %1288 = vmatprep.subr.bf16.mxu0 0
          %1289 = vmatpush1.bf16.xpose.msra.mxu0 0
          %1290 = vmatprep.subr.bf16.mxu0 0
          %1291 = vmatpush1.bf16.xpose.msra.mxu0 0
          %1292 = vmatprep.subr.bf16.mxu0 0
          %1293 = vmatpush1.bf16.xpose.msra.mxu0 0
          %1294 = vmatprep.subr.bf16.mxu0 0
          %1295 = vmatpush1.bf16.xpose.msra.mxu0 0
          %1296 = vmatprep.subr.bf16.mxu0 0
          %1297 = vmatpush1.bf16.xpose.msra.mxu0 0
          %1298 = vmatprep.subr.bf16.mxu0 0
          %1299 = vmatpush1.bf16.xpose.msra.mxu0 0
          %1300 = vmatprep.subr.bf16.mxu0 0
          %1301 = vmatpush1.bf16.xpose.msra.mxu0 0
          %1302 = vmatprep.mubr.bf16.mxu0 0
          %1303 = vmatmul.mubr.bf16.gmra.mrb[0].mxu0 %v1086
          %v1304 = vpop.f32.mrb[0].mxu0
          %v1305 = vadd.f32 0.0, %v1304
          %v1306 = vpop.f32.mrb[0].mxu0
          %v1307 = vpop.f32.mrb[0].mxu0
          %v1308 = vadd.f32 0.0, %v1307
          %v1309 = vpop.f32.mrb[0].mxu0
          %1310 = vmatprep.mubr.bf16.mxu0 0
          %1311 = vmatmul.mubr.bf16.gmra.mrb[0].mxu0 %v1087
          %v1312 = vpop.f32.mrb[0].mxu0
          %v1313 = vadd.f32 0.0, %v1312
          %v1314 = vpop.f32.mrb[0].mxu0
          %v1315 = vpop.f32.mrb[0].mxu0
          %v1316 = vadd.f32 0.0, %v1315
          %v1317 = vpop.f32.mrb[0].mxu0
          %1318 = vmatprep.mubr.bf16.mxu0 0
          %1319 = vmatmul.mubr.bf16.gmra.mrb[0].mxu0 %v1088
          %v1320 = vpop.f32.mrb[0].mxu0
          %v1321 = vadd.f32 0.0, %v1320
          %v1322 = vpop.f32.mrb[0].mxu0
          %v1323 = vpop.f32.mrb[0].mxu0
          %v1324 = vadd.f32 0.0, %v1323
          %v1325 = vpop.f32.mrb[0].mxu0
          %1326 = vmatprep.mubr.bf16.mxu0 0
          %1327 = vmatmul.mubr.bf16.gmra.mrb[0].mxu0 %v1089
          %v1328 = vpop.f32.mrb[0].mxu0
          %v1329 = vadd.f32 0.0, %v1328
          %v1330 = vpop.f32.mrb[0].mxu0
          %v1331 = vpop.f32.mrb[0].mxu0
          %v1332 = vadd.f32 0.0, %v1331
          %v1333 = vpop.f32.mrb[0].mxu0
          %1334 = vmatprep.mubr.bf16.mxu0 0
          %1335 = vmatmul.mubr.bf16.gmra.mrb[0].mxu0 %v1090
          %v1336 = vpop.f32.mrb[0].mxu0
          %v1337 = vadd.f32 0.0, %v1336
          %v1338 = vpop.f32.mrb[0].mxu0
          %v1339 = vpop.f32.mrb[0].mxu0
          %v1340 = vadd.f32 0.0, %v1339
          %v1341 = vpop.f32.mrb[0].mxu0
          %1342 = vmatprep.mubr.bf16.mxu0 0
          %1343 = vmatmul.mubr.bf16.gmra.mrb[0].mxu0 %v1091
          %v1344 = vpop.f32.mrb[0].mxu0
          %v1345 = vadd.f32 0.0, %v1344
          %v1346 = vpop.f32.mrb[0].mxu0
          %v1347 = vpop.f32.mrb[0].mxu0
          %v1348 = vadd.f32 0.0, %v1347
          %v1349 = vpop.f32.mrb[0].mxu0
          %1350 = vmatprep.mubr.bf16.mxu0 0
          %1351 = vmatmul.mubr.bf16.gmra.mrb[0].mxu0 %v1092
          %v1352 = vpop.f32.mrb[0].mxu0
          %v1353 = vadd.f32 0.0, %v1352
          %v1354 = vpop.f32.mrb[0].mxu0
          %v1355 = vpop.f32.mrb[0].mxu0
          %v1356 = vadd.f32 0.0, %v1355
          %v1357 = vpop.f32.mrb[0].mxu0
          %1358 = vmatprep.mubr.bf16.mxu0 0
          %1359 = vmatmul.mubr.bf16.gmra.mrb[0].mxu0 %v1093
          %v1360 = vpop.f32.mrb[0].mxu0
          %v1361 = vadd.f32 0.0, %v1360
          %v1362 = vpop.f32.mrb[0].mxu0
          %v1363 = vpop.f32.mrb[0].mxu0
          %v1364 = vadd.f32 0.0, %v1363
          %v1365 = vpop.f32.mrb[0].mxu0
          %1366 = vdwg.mxu0
          %v1367 = vlaneseq
          %v1368 = vand.u32 %v1367, 127
          %v1369 = vstv %s1183
          %v1370 = vadd.s32 %v1368, %v1369
          %vm1371 = vcmp.le.s32.totalorder %v1370, %v1112
          %vm1372 = vcmp.le.s32.totalorder %v1370, %v1113
          %vm1373 = vcmp.le.s32.totalorder %v1370, %v1114
          %vm1374 = vcmp.le.s32.totalorder %v1370, %v1115
          %vm1375 = vcmp.le.s32.totalorder %v1370, %v1116
          %vm1376 = vcmp.le.s32.totalorder %v1370, %v1117
          %vm1377 = vcmp.le.s32.totalorder %v1370, %v1118
          %vm1378 = vcmp.le.s32.totalorder %v1370, %v1119
          %vm1379 = vcmp.le.s32.totalorder %v1370, %v1120
          %vm1380 = vcmp.le.s32.totalorder %v1370, %v1121
          %vm1381 = vcmp.le.s32.totalorder %v1370, %v1122
          %vm1382 = vcmp.le.s32.totalorder %v1370, %v1123
          %vm1383 = vcmp.le.s32.totalorder %v1370, %v1124
          %vm1384 = vcmp.le.s32.totalorder %v1370, %v1125
          %vm1385 = vcmp.le.s32.totalorder %v1370, %v1126
          %vm1386 = vcmp.le.s32.totalorder %v1370, %v1127
          %v1387 = vsel %vm1371, %v1305, -1e+30
          %v1388 = vsel %vm1372, %v1308, -1e+30
          %v1389 = vsel %vm1373, %v1313, -1e+30
          %v1390 = vsel %vm1374, %v1316, -1e+30
          %v1391 = vsel %vm1375, %v1321, -1e+30
          %v1392 = vsel %vm1376, %v1324, -1e+30
          %v1393 = vsel %vm1377, %v1329, -1e+30
          %v1394 = vsel %vm1378, %v1332, -1e+30
          %v1395 = vsel %vm1379, %v1337, -1e+30
          %v1396 = vsel %vm1380, %v1340, -1e+30
          %v1397 = vsel %vm1381, %v1345, -1e+30
          %v1398 = vsel %vm1382, %v1348, -1e+30
          %v1399 = vsel %vm1383, %v1353, -1e+30
          %v1400 = vsel %vm1384, %v1356, -1e+30
          %v1401 = vsel %vm1385, %v1361, -1e+30
          %v1402 = vsel %vm1386, %v1364, -1e+30
          %1403 = vmax.xlane.f32.xlu0 %v1387
          %v1404 = vpop.xlane.xlu0 %1403
          %1405 = vmax.xlane.f32.xlu0 %v1388
          %v1406 = vpop.xlane.xlu0 %1405
          %1407 = vmax.xlane.f32.xlu0 %v1389
          %v1408 = vpop.xlane.xlu0 %1407
          %1409 = vmax.xlane.f32.xlu0 %v1390
          %v1410 = vpop.xlane.xlu0 %1409
          %1411 = vmax.xlane.f32.xlu0 %v1391
          %v1412 = vpop.xlane.xlu0 %1411
          %1413 = vmax.xlane.f32.xlu0 %v1392
          %v1414 = vpop.xlane.xlu0 %1413
          %1415 = vmax.xlane.f32.xlu0 %v1393
          %v1416 = vpop.xlane.xlu0 %1415
          %1417 = vmax.xlane.f32.xlu0 %v1394
          %v1418 = vpop.xlane.xlu0 %1417
          %1419 = vmax.xlane.f32.xlu0 %v1395
          %v1420 = vpop.xlane.xlu0 %1419
          %1421 = vmax.xlane.f32.xlu0 %v1396
          %v1422 = vpop.xlane.xlu0 %1421
          %1423 = vmax.xlane.f32.xlu0 %v1397
          %v1424 = vpop.xlane.xlu0 %1423
          %1425 = vmax.xlane.f32.xlu0 %v1398
          %v1426 = vpop.xlane.xlu0 %1425
          %1427 = vmax.xlane.f32.xlu0 %v1399
          %v1428 = vpop.xlane.xlu0 %1427
          %1429 = vmax.xlane.f32.xlu0 %v1400
          %v1430 = vpop.xlane.xlu0 %1429
          %1431 = vmax.xlane.f32.xlu0 %v1401
          %v1432 = vpop.xlane.xlu0 %1431
          %1433 = vmax.xlane.f32.xlu0 %v1402
          %v1434 = vpop.xlane.xlu0 %1433
          %v1435 = vmax.f32 %v1135, %v1404
          %v1436 = vmax.f32 %v1136, %v1406
          %v1437 = vmax.f32 %v1137, %v1408
          %v1438 = vmax.f32 %v1138, %v1410
          %v1439 = vmax.f32 %v1139, %v1412
          %v1440 = vmax.f32 %v1140, %v1414
          %v1441 = vmax.f32 %v1141, %v1416
          %v1442 = vmax.f32 %v1142, %v1418
          %v1443 = vmax.f32 %v1143, %v1420
          %v1444 = vmax.f32 %v1144, %v1422
          %v1445 = vmax.f32 %v1145, %v1424
          %v1446 = vmax.f32 %v1146, %v1426
          %v1447 = vmax.f32 %v1147, %v1428
          %v1448 = vmax.f32 %v1148, %v1430
          %v1449 = vmax.f32 %v1149, %v1432
          %v1450 = vmax.f32 %v1150, %v1434
          %v1451 = vsub.f32 %v1135, %v1435
          %v1452 = vsub.f32 %v1136, %v1436
          %v1453 = vsub.f32 %v1137, %v1437
          %v1454 = vsub.f32 %v1138, %v1438
          %v1455 = vsub.f32 %v1139, %v1439
          %v1456 = vsub.f32 %v1140, %v1440
          %v1457 = vsub.f32 %v1141, %v1441
          %v1458 = vsub.f32 %v1142, %v1442
          %v1459 = vsub.f32 %v1143, %v1443
          %v1460 = vsub.f32 %v1144, %v1444
          %v1461 = vsub.f32 %v1145, %v1445
          %v1462 = vsub.f32 %v1146, %v1446
          %v1463 = vsub.f32 %v1147, %v1447
          %v1464 = vsub.f32 %v1148, %v1448
          %v1465 = vsub.f32 %v1149, %v1449
          %v1466 = vsub.f32 %v1150, %v1450
          %v1467 = vmul.f32 %v1451, 1.442695
          %v1468 = vpow.pop %v1467
          %v1469 = vmul.f32 %v1452, 1.442695
          %v1470 = vpow.pop %v1469
          %v1471 = vmul.f32 %v1453, 1.442695
          %v1472 = vpow.pop %v1471
          %v1473 = vmul.f32 %v1454, 1.442695
          %v1474 = vpow.pop %v1473
          %v1475 = vmul.f32 %v1455, 1.442695
          %v1476 = vpow.pop %v1475
          %v1477 = vmul.f32 %v1456, 1.442695
          %v1478 = vpow.pop %v1477
          %v1479 = vmul.f32 %v1457, 1.442695
          %v1480 = vpow.pop %v1479
          %v1481 = vmul.f32 %v1458, 1.442695
          %v1482 = vpow.pop %v1481
          %v1483 = vmul.f32 %v1459, 1.442695
          %v1484 = vpow.pop %v1483
          %v1485 = vmul.f32 %v1460, 1.442695
          %v1486 = vpow.pop %v1485
          %v1487 = vmul.f32 %v1461, 1.442695
          %v1488 = vpow.pop %v1487
          %v1489 = vmul.f32 %v1462, 1.442695
          %v1490 = vpow.pop %v1489
          %v1491 = vmul.f32 %v1463, 1.442695
          %v1492 = vpow.pop %v1491
          %v1493 = vmul.f32 %v1464, 1.442695
          %v1494 = vpow.pop %v1493
          %v1495 = vmul.f32 %v1465, 1.442695
          %v1496 = vpow.pop %v1495
          %v1497 = vmul.f32 %v1466, 1.442695
          %v1498 = vpow.pop %v1497
          %v1499 = vsub.f32 %v1387, %v1435
          %v1500 = vsub.f32 %v1388, %v1436
          %v1501 = vsub.f32 %v1389, %v1437
          %v1502 = vsub.f32 %v1390, %v1438
          %v1503 = vsub.f32 %v1391, %v1439
          %v1504 = vsub.f32 %v1392, %v1440
          %v1505 = vsub.f32 %v1393, %v1441
          %v1506 = vsub.f32 %v1394, %v1442
          %v1507 = vsub.f32 %v1395, %v1443
          %v1508 = vsub.f32 %v1396, %v1444
          %v1509 = vsub.f32 %v1397, %v1445
          %v1510 = vsub.f32 %v1398, %v1446
          %v1511 = vsub.f32 %v1399, %v1447
          %v1512 = vsub.f32 %v1400, %v1448
          %v1513 = vsub.f32 %v1401, %v1449
          %v1514 = vsub.f32 %v1402, %v1450
          %v1515 = vmul.f32 %v1499, 1.442695
          %v1516 = vpow.pop %v1515
          %v1517 = vmul.f32 %v1500, 1.442695
          %v1518 = vpow.pop %v1517
          %v1519 = vmul.f32 %v1501, 1.442695
          %v1520 = vpow.pop %v1519
          %v1521 = vmul.f32 %v1502, 1.442695
          %v1522 = vpow.pop %v1521
          %v1523 = vmul.f32 %v1503, 1.442695
          %v1524 = vpow.pop %v1523
          %v1525 = vmul.f32 %v1504, 1.442695
          %v1526 = vpow.pop %v1525
          %v1527 = vmul.f32 %v1505, 1.442695
          %v1528 = vpow.pop %v1527
          %v1529 = vmul.f32 %v1506, 1.442695
          %v1530 = vpow.pop %v1529
          %v1531 = vmul.f32 %v1507, 1.442695
          %v1532 = vpow.pop %v1531
          %v1533 = vmul.f32 %v1508, 1.442695
          %v1534 = vpow.pop %v1533
          %v1535 = vmul.f32 %v1509, 1.442695
          %v1536 = vpow.pop %v1535
          %v1537 = vmul.f32 %v1510, 1.442695
          %v1538 = vpow.pop %v1537
          %v1539 = vmul.f32 %v1511, 1.442695
          %v1540 = vpow.pop %v1539
          %v1541 = vmul.f32 %v1512, 1.442695
          %v1542 = vpow.pop %v1541
          %v1543 = vmul.f32 %v1513, 1.442695
          %v1544 = vpow.pop %v1543
          %v1545 = vmul.f32 %v1514, 1.442695
          %v1546 = vpow.pop %v1545
          %v1547 = vmul.f32 %v1468, %v1151
          %v1548 = vmul.f32 %v1470, %v1152
          %v1549 = vmul.f32 %v1472, %v1153
          %v1550 = vmul.f32 %v1474, %v1154
          %v1551 = vmul.f32 %v1476, %v1155
          %v1552 = vmul.f32 %v1478, %v1156
          %v1553 = vmul.f32 %v1480, %v1157
          %v1554 = vmul.f32 %v1482, %v1158
          %v1555 = vmul.f32 %v1484, %v1159
          %v1556 = vmul.f32 %v1486, %v1160
          %v1557 = vmul.f32 %v1488, %v1161
          %v1558 = vmul.f32 %v1490, %v1162
          %v1559 = vmul.f32 %v1492, %v1163
          %v1560 = vmul.f32 %v1494, %v1164
          %v1561 = vmul.f32 %v1496, %v1165
          %v1562 = vmul.f32 %v1498, %v1166
          %1563 = vadd.xlane.f32.xlu0 %v1516
          %v1564 = vpop.xlane.xlu0 %1563
          %1565 = vadd.xlane.f32.xlu0 %v1518
          %v1566 = vpop.xlane.xlu0 %1565
          %1567 = vadd.xlane.f32.xlu0 %v1520
          %v1568 = vpop.xlane.xlu0 %1567
          %1569 = vadd.xlane.f32.xlu0 %v1522
          %v1570 = vpop.xlane.xlu0 %1569
          %1571 = vadd.xlane.f32.xlu0 %v1524
          %v1572 = vpop.xlane.xlu0 %1571
          %1573 = vadd.xlane.f32.xlu0 %v1526
          %v1574 = vpop.xlane.xlu0 %1573
          %1575 = vadd.xlane.f32.xlu0 %v1528
          %v1576 = vpop.xlane.xlu0 %1575
          %1577 = vadd.xlane.f32.xlu0 %v1530
          %v1578 = vpop.xlane.xlu0 %1577
          %1579 = vadd.xlane.f32.xlu0 %v1532
          %v1580 = vpop.xlane.xlu0 %1579
          %1581 = vadd.xlane.f32.xlu0 %v1534
          %v1582 = vpop.xlane.xlu0 %1581
          %1583 = vadd.xlane.f32.xlu0 %v1536
          %v1584 = vpop.xlane.xlu0 %1583
          %1585 = vadd.xlane.f32.xlu0 %v1538
          %v1586 = vpop.xlane.xlu0 %1585
          %1587 = vadd.xlane.f32.xlu0 %v1540
          %v1588 = vpop.xlane.xlu0 %1587
          %1589 = vadd.xlane.f32.xlu0 %v1542
          %v1590 = vpop.xlane.xlu0 %1589
          %1591 = vadd.xlane.f32.xlu0 %v1544
          %v1592 = vpop.xlane.xlu0 %1591
          %1593 = vadd.xlane.f32.xlu0 %v1546
          %v1594 = vpop.xlane.xlu0 %1593
          %v1595 = vadd.f32 %v1547, %v1564
          %v1596 = vadd.f32 %v1548, %v1566
          %v1597 = vadd.f32 %v1549, %v1568
          %v1598 = vadd.f32 %v1550, %v1570
          %v1599 = vadd.f32 %v1551, %v1572
          %v1600 = vadd.f32 %v1552, %v1574
          %v1601 = vadd.f32 %v1553, %v1576
          %v1602 = vadd.f32 %v1554, %v1578
          %v1603 = vadd.f32 %v1555, %v1580
          %v1604 = vadd.f32 %v1556, %v1582
          %v1605 = vadd.f32 %v1557, %v1584
          %v1606 = vadd.f32 %v1558, %v1586
          %v1607 = vadd.f32 %v1559, %v1588
          %v1608 = vadd.f32 %v1560, %v1590
          %v1609 = vadd.f32 %v1561, %v1592
          %v1610 = vadd.f32 %v1562, %v1594
          %v1611 = vmul.f32 %v1468, %v1167
          %v1612 = vmul.f32 %v1470, %v1168
          %v1613 = vmul.f32 %v1472, %v1169
          %v1614 = vmul.f32 %v1474, %v1170
          %v1615 = vmul.f32 %v1476, %v1171
          %v1616 = vmul.f32 %v1478, %v1172
          %v1617 = vmul.f32 %v1480, %v1173
          %v1618 = vmul.f32 %v1482, %v1174
          %v1619 = vmul.f32 %v1484, %v1175
          %v1620 = vmul.f32 %v1486, %v1176
          %v1621 = vmul.f32 %v1488, %v1177
          %v1622 = vmul.f32 %v1490, %v1178
          %v1623 = vmul.f32 %v1492, %v1179
          %v1624 = vmul.f32 %v1494, %v1180
          %v1625 = vmul.f32 %v1496, %v1181
          %v1626 = vmul.f32 %v1498, %v1182
          %v1627 = vpack.c.bf16 %v1518, %v1516
          %v1628 = vpack.c.bf16 %v1522, %v1520
          %v1629 = vpack.c.bf16 %v1526, %v1524
          %v1630 = vpack.c.bf16 %v1530, %v1528
          %v1631 = vpack.c.bf16 %v1534, %v1532
          %v1632 = vpack.c.bf16 %v1538, %v1536
          %v1633 = vpack.c.bf16 %v1542, %v1540
          %v1634 = vpack.c.bf16 %v1546, %v1544
          %v1651 = vunpack.c.l.b16 %v1206
          %v1652 = vunpack.c.l.b16 %v1207
          %v1653 = vunpack.c.l.b16 %v1208
          %v1654 = vunpack.c.l.b16 %v1209
          %v1655 = vunpack.c.l.b16 %v1210
          %v1656 = vunpack.c.l.b16 %v1211
          %v1657 = vunpack.c.l.b16 %v1212
          %v1658 = vunpack.c.l.b16 %v1213
          %v1659 = vunpack.c.l.b16 %v1214
          %v1660 = vunpack.c.l.b16 %v1215
          %v1661 = vunpack.c.l.b16 %v1216
          %v1662 = vunpack.c.l.b16 %v1217
          %v1663 = vunpack.c.l.b16 %v1218
          %v1664 = vunpack.c.l.b16 %v1219
          %v1665 = vunpack.c.l.b16 %v1220
          %v1666 = vunpack.c.l.b16 %v1221
          %v1667 = vpack.c.b16 %v1652, %v1651
          %v1668 = vpack.c.b16 %v1654, %v1653
          %v1669 = vpack.c.b16 %v1656, %v1655
          %v1670 = vpack.c.b16 %v1658, %v1657
          %v1671 = vpack.c.b16 %v1660, %v1659
          %v1672 = vpack.c.b16 %v1662, %v1661
          %v1673 = vpack.c.b16 %v1664, %v1663
          %v1674 = vpack.c.b16 %v1666, %v1665
          %1683 = vmatprep.subr.bf16.mxu0 0
          %1684 = vmatpush1.bf16.msra.mxu0 %v1667
          %1685 = vmatprep.subr.bf16.mxu0 0
          %1686 = vmatpush1.bf16.msra.mxu0 %v1668
          %1687 = vmatprep.subr.bf16.mxu0 0
          %1688 = vmatpush1.bf16.msra.mxu0 %v1669
          %1689 = vmatprep.subr.bf16.mxu0 0
          %1690 = vmatpush1.bf16.msra.mxu0 %v1670
          %1691 = vmatprep.subr.bf16.mxu0 0
          %1692 = vmatpush1.bf16.msra.mxu0 %v1671
          %1693 = vmatprep.subr.bf16.mxu0 0
          %1694 = vmatpush1.bf16.msra.mxu0 %v1672
          %1695 = vmatprep.subr.bf16.mxu0 0
          %1696 = vmatpush1.bf16.msra.mxu0 %v1673
          %1697 = vmatprep.subr.bf16.mxu0 0
          %1698 = vmatpush1.bf16.msra.mxu0 %v1674
          %1699 = vmatprep.subr.bf16.mxu0 0
          %1700 = vmatpush1.bf16.msra.mxu0 0
          %1701 = vmatprep.subr.bf16.mxu0 0
          %1702 = vmatpush1.bf16.msra.mxu0 0
          %1703 = vmatprep.subr.bf16.mxu0 0
          %1704 = vmatpush1.bf16.msra.mxu0 0
          %1705 = vmatprep.subr.bf16.mxu0 0
          %1706 = vmatpush1.bf16.msra.mxu0 0
          %1707 = vmatprep.subr.bf16.mxu0 0
          %1708 = vmatpush1.bf16.msra.mxu0 0
          %1709 = vmatprep.subr.bf16.mxu0 0
          %1710 = vmatpush1.bf16.msra.mxu0 0
          %1711 = vmatprep.subr.bf16.mxu0 0
          %1712 = vmatpush1.bf16.msra.mxu0 0
          %1713 = vmatprep.subr.bf16.mxu0 0
          %1714 = vmatpush1.bf16.msra.mxu0 0
          %1715 = vmatprep.mubr.bf16.mxu0 0
          %1716 = vmatmul.mubr.bf16.gmra.mrb[0].mxu0 %v1627
          %v1717 = vpop.f32.mrb[0].mxu0
          %v1718 = vadd.f32 0.0, %v1717
          %v1719 = vpop.f32.mrb[0].mxu0
          %v1720 = vpop.f32.mrb[0].mxu0
          %v1721 = vadd.f32 0.0, %v1720
          %v1722 = vpop.f32.mrb[0].mxu0
          %1723 = vmatprep.mubr.bf16.mxu0 0
          %1724 = vmatmul.mubr.bf16.gmra.mrb[0].mxu0 %v1628
          %v1725 = vpop.f32.mrb[0].mxu0
          %v1726 = vadd.f32 0.0, %v1725
          %v1727 = vpop.f32.mrb[0].mxu0
          %v1728 = vpop.f32.mrb[0].mxu0
          %v1729 = vadd.f32 0.0, %v1728
          %v1730 = vpop.f32.mrb[0].mxu0
          %1731 = vmatprep.mubr.bf16.mxu0 0
          %1732 = vmatmul.mubr.bf16.gmra.mrb[0].mxu0 %v1629
          %v1733 = vpop.f32.mrb[0].mxu0
          %v1734 = vadd.f32 0.0, %v1733
          %v1735 = vpop.f32.mrb[0].mxu0
          %v1736 = vpop.f32.mrb[0].mxu0
          %v1737 = vadd.f32 0.0, %v1736
          %v1738 = vpop.f32.mrb[0].mxu0
          %1739 = vmatprep.mubr.bf16.mxu0 0
          %1740 = vmatmul.mubr.bf16.gmra.mrb[0].mxu0 %v1630
          %v1741 = vpop.f32.mrb[0].mxu0
          %v1742 = vadd.f32 0.0, %v1741
          %v1743 = vpop.f32.mrb[0].mxu0
          %v1744 = vpop.f32.mrb[0].mxu0
          %v1745 = vadd.f32 0.0, %v1744
          %v1746 = vpop.f32.mrb[0].mxu0
          %1747 = vmatprep.mubr.bf16.mxu0 0
          %1748 = vmatmul.mubr.bf16.gmra.mrb[0].mxu0 %v1631
          %v1749 = vpop.f32.mrb[0].mxu0
          %v1750 = vadd.f32 0.0, %v1749
          %v1751 = vpop.f32.mrb[0].mxu0
          %v1752 = vpop.f32.mrb[0].mxu0
          %v1753 = vadd.f32 0.0, %v1752
          %v1754 = vpop.f32.mrb[0].mxu0
          %1755 = vmatprep.mubr.bf16.mxu0 0
          %1756 = vmatmul.mubr.bf16.gmra.mrb[0].mxu0 %v1632
          %v1757 = vpop.f32.mrb[0].mxu0
          %v1758 = vadd.f32 0.0, %v1757
          %v1759 = vpop.f32.mrb[0].mxu0
          %v1760 = vpop.f32.mrb[0].mxu0
          %v1761 = vadd.f32 0.0, %v1760
          %v1762 = vpop.f32.mrb[0].mxu0
          %1763 = vmatprep.mubr.bf16.mxu0 0
          %1764 = vmatmul.mubr.bf16.gmra.mrb[0].mxu0 %v1633
          %v1765 = vpop.f32.mrb[0].mxu0
          %v1766 = vadd.f32 0.0, %v1765
          %v1767 = vpop.f32.mrb[0].mxu0
          %v1768 = vpop.f32.mrb[0].mxu0
          %v1769 = vadd.f32 0.0, %v1768
          %v1770 = vpop.f32.mrb[0].mxu0
          %1771 = vmatprep.mubr.bf16.mxu0 0
          %1772 = vmatmul.mubr.bf16.gmra.mrb[0].mxu0 %v1634
          %v1773 = vpop.f32.mrb[0].mxu0
          %v1774 = vadd.f32 0.0, %v1773
          %v1775 = vpop.f32.mrb[0].mxu0
          %v1776 = vpop.f32.mrb[0].mxu0
          %v1777 = vadd.f32 0.0, %v1776
          %v1778 = vpop.f32.mrb[0].mxu0
          %1779 = vdwg.mxu0
          %v1780 = vadd.f32 %v1611, %v1718
          %v1781 = vadd.f32 %v1612, %v1721
          %v1782 = vadd.f32 %v1613, %v1726
          %v1783 = vadd.f32 %v1614, %v1729
          %v1784 = vadd.f32 %v1615, %v1734
          %v1785 = vadd.f32 %v1616, %v1737
          %v1786 = vadd.f32 %v1617, %v1742
          %v1787 = vadd.f32 %v1618, %v1745
          %v1788 = vadd.f32 %v1619, %v1750
          %v1789 = vadd.f32 %v1620, %v1753
          %v1790 = vadd.f32 %v1621, %v1758
          %v1791 = vadd.f32 %v1622, %v1761
          %v1792 = vadd.f32 %v1623, %v1766
          %v1793 = vadd.f32 %v1624, %v1769
          %v1794 = vadd.f32 %v1625, %v1774
          %v1795 = vadd.f32 %v1626, %v1777
        $region161: #{tpu_custom_call.1} parent=111 // loop_footer
          %s1132 = sadd.s32 %s1130, 1
        $region162: #{tpu_custom_call.1} parent=111 // loop_footer_branch
          %1129 = sbr.rel target = $region158
        $region163: #{tpu_custom_call.1} parent=111 // loop_exit
          _
        %v1796 = vrcp.pop %v1151
        %v1797 = vrcp.pop %v1152
        %v1798 = vrcp.pop %v1153
        %v1799 = vrcp.pop %v1154
        %v1800 = vrcp.pop %v1155
        %v1801 = vrcp.pop %v1156
        %v1802 = vrcp.pop %v1157
        %v1803 = vrcp.pop %v1158
        %v1804 = vrcp.pop %v1159
        %v1805 = vrcp.pop %v1160
        %v1806 = vrcp.pop %v1161
        %v1807 = vrcp.pop %v1162
        %v1808 = vrcp.pop %v1163
        %v1809 = vrcp.pop %v1164
        %v1810 = vrcp.pop %v1165
        %v1811 = vrcp.pop %v1166
        %v1812 = vmul.f32 %v1167, %v1796
        %v1813 = vmul.f32 %v1168, %v1797
        %v1814 = vmul.f32 %v1169, %v1798
        %v1815 = vmul.f32 %v1170, %v1799
        %v1816 = vmul.f32 %v1171, %v1800
        %v1817 = vmul.f32 %v1172, %v1801
        %v1818 = vmul.f32 %v1173, %v1802
        %v1819 = vmul.f32 %v1174, %v1803
        %v1820 = vmul.f32 %v1175, %v1804
        %v1821 = vmul.f32 %v1176, %v1805
        %v1822 = vmul.f32 %v1177, %v1806
        %v1823 = vmul.f32 %v1178, %v1807
        %v1824 = vmul.f32 %v1179, %v1808
        %v1825 = vmul.f32 %v1180, %v1809
        %v1826 = vmul.f32 %v1181, %v1810
        %v1827 = vmul.f32 %v1182, %v1811
        %v1828 = vpack.c.bf16 %v1813, %v1812
        %v1829 = vpack.c.bf16 %v1815, %v1814
        %v1830 = vpack.c.bf16 %v1817, %v1816
        %v1831 = vpack.c.bf16 %v1819, %v1818
        %v1832 = vpack.c.bf16 %v1821, %v1820
        %v1833 = vpack.c.bf16 %v1823, %v1822
        %v1834 = vpack.c.bf16 %v1825, %v1824
        %v1835 = vpack.c.bf16 %v1827, %v1826
        %v1836 = vld [vmem:[#allocation13] sm:$0xf]
        %v1837 = vld [vmem:[#allocation13 + $0x4] sm:$0xf]
        %v1838 = vld [vmem:[#allocation13 + $0x8] sm:$0xf]
        %v1839 = vld [vmem:[#allocation13 + $0xc] sm:$0xf]
        %v1840 = vld [vmem:[#allocation13 + $0x10] sm:$0xf]
        %v1841 = vld [vmem:[#allocation13 + $0x14] sm:$0xf]
        %v1842 = vld [vmem:[#allocation13 + $0x18] sm:$0xf]
        %v1843 = vld [vmem:[#allocation13 + $0x1c] sm:$0xf]
        %v1844 = vld [vmem:[#allocation13 + $0x20] sm:$0xf]
        %v1845 = vld [vmem:[#allocation13 + $0x24] sm:$0xf]
        %v1846 = vld [vmem:[#allocation13 + $0x28] sm:$0xf]
        %v1847 = vld [vmem:[#allocation13 + $0x2c] sm:$0xf]
        %v1848 = vld [vmem:[#allocation13 + $0x30] sm:$0xf]
        %v1849 = vld [vmem:[#allocation13 + $0x34] sm:$0xf]
        %v1850 = vld [vmem:[#allocation13 + $0x38] sm:$0xf]
        %v1851 = vld [vmem:[#allocation13 + $0x3c] sm:$0xf]
        %v1852 = vld [vmem:[%s8] sm:$0x1]
        %v1854 = vlaneseq
        %v1855 = vshrl.u32 %v1854, 7
        %v1856 = vsub.s32 0, %v1855
        %v1857 = vrot.slane %v1852, %v1856
        %v1875 = vunpack.c.l.b16 %v1836
        %v1876 = vunpack.c.l.b16 %v1837
        %v1877 = vunpack.c.l.b16 %v1838
        %v1878 = vunpack.c.l.b16 %v1839
        %v1879 = vunpack.c.l.b16 %v1840
        %v1880 = vunpack.c.l.b16 %v1841
        %v1881 = vunpack.c.l.b16 %v1842
        %v1882 = vunpack.c.l.b16 %v1843
        %v1883 = vunpack.c.l.b16 %v1844
        %v1884 = vunpack.c.l.b16 %v1845
        %v1885 = vunpack.c.l.b16 %v1846
        %v1886 = vunpack.c.l.b16 %v1847
        %v1887 = vunpack.c.l.b16 %v1848
        %v1888 = vunpack.c.l.b16 %v1849
        %v1889 = vunpack.c.l.b16 %v1850
        %v1890 = vunpack.c.l.b16 %v1851
        %v1891 = vpack.c.b16 %v1876, %v1875
        %v1892 = vpack.c.b16 %v1878, %v1877
        %v1893 = vpack.c.b16 %v1880, %v1879
        %v1894 = vpack.c.b16 %v1882, %v1881
        %v1895 = vpack.c.b16 %v1884, %v1883
        %v1896 = vpack.c.b16 %v1886, %v1885
        %v1897 = vpack.c.b16 %v1888, %v1887
        %v1898 = vpack.c.b16 %v1890, %v1889
        %1907 = vmatprep.subr.bf16.mxu0 0
        %1908 = vmatpush1.bf16.msra.mxu0 %v1891
        %1909 = vmatprep.subr.bf16.mxu0 0
        %1910 = vmatpush1.bf16.msra.mxu0 %v1892
        %1911 = vmatprep.subr.bf16.mxu0 0
        %1912 = vmatpush1.bf16.msra.mxu0 %v1893
        %1913 = vmatprep.subr.bf16.mxu0 0
        %1914 = vmatpush1.bf16.msra.mxu0 %v1894
        %1915 = vmatprep.subr.bf16.mxu0 0
        %1916 = vmatpush1.bf16.msra.mxu0 %v1895
        %1917 = vmatprep.subr.bf16.mxu0 0
        %1918 = vmatpush1.bf16.msra.mxu0 %v1896
        %1919 = vmatprep.subr.bf16.mxu0 0
        %1920 = vmatpush1.bf16.msra.mxu0 %v1897
        %1921 = vmatprep.subr.bf16.mxu0 0
        %1922 = vmatpush1.bf16.msra.mxu0 %v1898
        %1923 = vmatprep.subr.bf16.mxu0 0
        %1924 = vmatpush1.bf16.msra.mxu0 0
        %1925 = vmatprep.subr.bf16.mxu0 0
        %1926 = vmatpush1.bf16.msra.mxu0 0
        %1927 = vmatprep.subr.bf16.mxu0 0
        %1928 = vmatpush1.bf16.msra.mxu0 0
        %1929 = vmatprep.subr.bf16.mxu0 0
        %1930 = vmatpush1.bf16.msra.mxu0 0
        %1931 = vmatprep.subr.bf16.mxu0 0
        %1932 = vmatpush1.bf16.msra.mxu0 0
        %1933 = vmatprep.subr.bf16.mxu0 0
        %1934 = vmatpush1.bf16.msra.mxu0 0
        %1935 = vmatprep.subr.bf16.mxu0 0
        %1936 = vmatpush1.bf16.msra.mxu0 0
        %1937 = vmatprep.subr.bf16.mxu0 0
        %1938 = vmatpush1.bf16.msra.mxu0 0
        %1939 = vmatprep.mubr.bf16.mxu0 0
        %1940 = vmatmul.mubr.bf16.gmra.mrb[0].mxu0 %v1828
        %v1941 = vpop.f32.mrb[0].mxu0
        %v1942 = vadd.f32 %v1857, %v1941
        %v1943 = vpop.f32.mrb[0].mxu0
        %v1944 = vpop.f32.mrb[0].mxu0
        %v1945 = vadd.f32 %v1857, %v1944
        %v1946 = vpop.f32.mrb[0].mxu0
        %1947 = vmatprep.mubr.bf16.mxu0 0
        %1948 = vmatmul.mubr.bf16.gmra.mrb[0].mxu0 %v1829
        %v1949 = vpop.f32.mrb[0].mxu0
        %v1950 = vadd.f32 %v1857, %v1949
        %v1951 = vpop.f32.mrb[0].mxu0
        %v1952 = vpop.f32.mrb[0].mxu0
        %v1953 = vadd.f32 %v1857, %v1952
        %v1954 = vpop.f32.mrb[0].mxu0
        %1955 = vmatprep.mubr.bf16.mxu0 0
        %1956 = vmatmul.mubr.bf16.gmra.mrb[0].mxu0 %v1830
        %v1957 = vpop.f32.mrb[0].mxu0
        %v1958 = vadd.f32 %v1857, %v1957
        %v1959 = vpop.f32.mrb[0].mxu0
        %v1960 = vpop.f32.mrb[0].mxu0
        %v1961 = vadd.f32 %v1857, %v1960
        %v1962 = vpop.f32.mrb[0].mxu0
        %1963 = vmatprep.mubr.bf16.mxu0 0
        %1964 = vmatmul.mubr.bf16.gmra.mrb[0].mxu0 %v1831
        %v1965 = vpop.f32.mrb[0].mxu0
        %v1966 = vadd.f32 %v1857, %v1965
        %v1967 = vpop.f32.mrb[0].mxu0
        %v1968 = vpop.f32.mrb[0].mxu0
        %v1969 = vadd.f32 %v1857, %v1968
        %v1970 = vpop.f32.mrb[0].mxu0
        %1971 = vmatprep.mubr.bf16.mxu0 0
        %1972 = vmatmul.mubr.bf16.gmra.mrb[0].mxu0 %v1832
        %v1973 = vpop.f32.mrb[0].mxu0
        %v1974 = vadd.f32 %v1857, %v1973
        %v1975 = vpop.f32.mrb[0].mxu0
        %v1976 = vpop.f32.mrb[0].mxu0
        %v1977 = vadd.f32 %v1857, %v1976
        %v1978 = vpop.f32.mrb[0].mxu0
        %1979 = vmatprep.mubr.bf16.mxu0 0
        %1980 = vmatmul.mubr.bf16.gmra.mrb[0].mxu0 %v1833
        %v1981 = vpop.f32.mrb[0].mxu0
        %v1982 = vadd.f32 %v1857, %v1981
        %v1983 = vpop.f32.mrb[0].mxu0
        %v1984 = vpop.f32.mrb[0].mxu0
        %v1985 = vadd.f32 %v1857, %v1984
        %v1986 = vpop.f32.mrb[0].mxu0
        %1987 = vmatprep.mubr.bf16.mxu0 0
        %1988 = vmatmul.mubr.bf16.gmra.mrb[0].mxu0 %v1834
        %v1989 = vpop.f32.mrb[0].mxu0
        %v1990 = vadd.f32 %v1857, %v1989
        %v1991 = vpop.f32.mrb[0].mxu0
        %v1992 = vpop.f32.mrb[0].mxu0
        %v1993 = vadd.f32 %v1857, %v1992
        %v1994 = vpop.f32.mrb[0].mxu0
        %1995 = vmatprep.mubr.bf16.mxu0 0
        %1996 = vmatmul.mubr.bf16.gmra.mrb[0].mxu0 %v1835
        %v1997 = vpop.f32.mrb[0].mxu0
        %v1998 = vadd.f32 %v1857, %v1997
        %v1999 = vpop.f32.mrb[0].mxu0
        %v2000 = vpop.f32.mrb[0].mxu0
        %v2001 = vadd.f32 %v1857, %v2000
        %v2002 = vpop.f32.mrb[0].mxu0
        %2003 = vdwg.mxu0
        %v2004 = vadd.f32 %v1942, %v878
        %v2005 = vadd.f32 %v1945, %v879
        %v2006 = vadd.f32 %v1950, %v880
        %v2007 = vadd.f32 %v1953, %v881
        %v2008 = vadd.f32 %v1958, %v882
        %v2009 = vadd.f32 %v1961, %v883
        %v2010 = vadd.f32 %v1966, %v884
        %v2011 = vadd.f32 %v1969, %v885
        %v2012 = vadd.f32 %v1974, %v886
        %v2013 = vadd.f32 %v1977, %v887
        %v2014 = vadd.f32 %v1982, %v888
        %v2015 = vadd.f32 %v1985, %v889
        %v2016 = vadd.f32 %v1990, %v890
        %v2017 = vadd.f32 %v1993, %v891
        %v2018 = vadd.f32 %v1998, %v892
        %v2019 = vadd.f32 %v2001, %v893
        %2020 = vadd.xlane.f32.xlu0 %v2004
        %v2021 = vpop.xlane.xlu0 %2020
        %2022 = vadd.xlane.f32.xlu0 %v2005
        %v2023 = vpop.xlane.xlu0 %2022
        %2024 = vadd.xlane.f32.xlu0 %v2006
        %v2025 = vpop.xlane.xlu0 %2024
        %2026 = vadd.xlane.f32.xlu0 %v2007
        %v2027 = vpop.xlane.xlu0 %2026
        %2028 = vadd.xlane.f32.xlu0 %v2008
        %v2029 = vpop.xlane.xlu0 %2028
        %2030 = vadd.xlane.f32.xlu0 %v2009
        %v2031 = vpop.xlane.xlu0 %2030
        %2032 = vadd.xlane.f32.xlu0 %v2010
        %v2033 = vpop.xlane.xlu0 %2032
        %2034 = vadd.xlane.f32.xlu0 %v2011
        %v2035 = vpop.xlane.xlu0 %2034
        %2036 = vadd.xlane.f32.xlu0 %v2012
        %v2037 = vpop.xlane.xlu0 %2036
        %2038 = vadd.xlane.f32.xlu0 %v2013
        %v2039 = vpop.xlane.xlu0 %2038
        %2040 = vadd.xlane.f32.xlu0 %v2014
        %v2041 = vpop.xlane.xlu0 %2040
        %2042 = vadd.xlane.f32.xlu0 %v2015
        %v2043 = vpop.xlane.xlu0 %2042
        %2044 = vadd.xlane.f32.xlu0 %v2016
        %v2045 = vpop.xlane.xlu0 %2044
        %2046 = vadd.xlane.f32.xlu0 %v2017
        %v2047 = vpop.xlane.xlu0 %2046
        %2048 = vadd.xlane.f32.xlu0 %v2018
        %v2049 = vpop.xlane.xlu0 %2048
        %2050 = vadd.xlane.f32.xlu0 %v2019
        %v2051 = vpop.xlane.xlu0 %2050
        %v2052 = vrcp.pop 128.0
        %v2053 = vmul.f32 %v2021, %v2052
        %v2054 = vmul.f32 %v2023, %v2052
        %v2055 = vmul.f32 %v2025, %v2052
        %v2056 = vmul.f32 %v2027, %v2052
        %v2057 = vmul.f32 %v2029, %v2052
        %v2058 = vmul.f32 %v2031, %v2052
        %v2059 = vmul.f32 %v2033, %v2052
        %v2060 = vmul.f32 %v2035, %v2052
        %v2061 = vmul.f32 %v2037, %v2052
        %v2062 = vmul.f32 %v2039, %v2052
        %v2063 = vmul.f32 %v2041, %v2052
        %v2064 = vmul.f32 %v2043, %v2052
        %v2065 = vmul.f32 %v2045, %v2052
        %v2066 = vmul.f32 %v2047, %v2052
        %v2067 = vmul.f32 %v2049, %v2052
        %v2068 = vmul.f32 %v2051, %v2052
        %v2069 = vsub.f32 %v2004, %v2053
        %v2070 = vsub.f32 %v2005, %v2054
        %v2071 = vsub.f32 %v2006, %v2055
        %v2072 = vsub.f32 %v2007, %v2056
        %v2073 = vsub.f32 %v2008, %v2057
        %v2074 = vsub.f32 %v2009, %v2058
        %v2075 = vsub.f32 %v2010, %v2059
        %v2076 = vsub.f32 %v2011, %v2060
        %v2077 = vsub.f32 %v2012, %v2061
        %v2078 = vsub.f32 %v2013, %v2062
        %v2079 = vsub.f32 %v2014, %v2063
        %v2080 = vsub.f32 %v2015, %v2064
        %v2081 = vsub.f32 %v2016, %v2065
        %v2082 = vsub.f32 %v2017, %v2066
        %v2083 = vsub.f32 %v2018, %v2067
        %v2084 = vsub.f32 %v2019, %v2068
        %v2085 = vmul.f32 %v2069, %v2069
        %v2086 = vmul.f32 %v2070, %v2070
        %v2087 = vmul.f32 %v2071, %v2071
        %v2088 = vmul.f32 %v2072, %v2072
        %v2089 = vmul.f32 %v2073, %v2073
        %v2090 = vmul.f32 %v2074, %v2074
        %v2091 = vmul.f32 %v2075, %v2075
        %v2092 = vmul.f32 %v2076, %v2076
        %v2093 = vmul.f32 %v2077, %v2077
        %v2094 = vmul.f32 %v2078, %v2078
        %v2095 = vmul.f32 %v2079, %v2079
        %v2096 = vmul.f32 %v2080, %v2080
        %v2097 = vmul.f32 %v2081, %v2081
        %v2098 = vmul.f32 %v2082, %v2082
        %v2099 = vmul.f32 %v2083, %v2083
        %v2100 = vmul.f32 %v2084, %v2084
        %2101 = vadd.xlane.f32.xlu0 %v2085
        %v2102 = vpop.xlane.xlu0 %2101
        %2103 = vadd.xlane.f32.xlu0 %v2086
        %v2104 = vpop.xlane.xlu0 %2103
        %2105 = vadd.xlane.f32.xlu0 %v2087
        %v2106 = vpop.xlane.xlu0 %2105
        %2107 = vadd.xlane.f32.xlu0 %v2088
        %v2108 = vpop.xlane.xlu0 %2107
        %2109 = vadd.xlane.f32.xlu0 %v2089
        %v2110 = vpop.xlane.xlu0 %2109
        %2111 = vadd.xlane.f32.xlu0 %v2090
        %v2112 = vpop.xlane.xlu0 %2111
        %2113 = vadd.xlane.f32.xlu0 %v2091
        %v2114 = vpop.xlane.xlu0 %2113
        %2115 = vadd.xlane.f32.xlu0 %v2092
        %v2116 = vpop.xlane.xlu0 %2115
        %2117 = vadd.xlane.f32.xlu0 %v2093
        %v2118 = vpop.xlane.xlu0 %2117
        %2119 = vadd.xlane.f32.xlu0 %v2094
        %v2120 = vpop.xlane.xlu0 %2119
        %2121 = vadd.xlane.f32.xlu0 %v2095
        %v2122 = vpop.xlane.xlu0 %2121
        %2123 = vadd.xlane.f32.xlu0 %v2096
        %v2124 = vpop.xlane.xlu0 %2123
        %2125 = vadd.xlane.f32.xlu0 %v2097
        %v2126 = vpop.xlane.xlu0 %2125
        %2127 = vadd.xlane.f32.xlu0 %v2098
        %v2128 = vpop.xlane.xlu0 %2127
        %2129 = vadd.xlane.f32.xlu0 %v2099
        %v2130 = vpop.xlane.xlu0 %2129
        %2131 = vadd.xlane.f32.xlu0 %v2100
        %v2132 = vpop.xlane.xlu0 %2131
        %v2133 = vmul.f32 %v2102, %v2052
        %v2134 = vmul.f32 %v2104, %v2052
        %v2135 = vmul.f32 %v2106, %v2052
        %v2136 = vmul.f32 %v2108, %v2052
        %v2137 = vmul.f32 %v2110, %v2052
        %v2138 = vmul.f32 %v2112, %v2052
        %v2139 = vmul.f32 %v2114, %v2052
        %v2140 = vmul.f32 %v2116, %v2052
        %v2141 = vmul.f32 %v2118, %v2052
        %v2142 = vmul.f32 %v2120, %v2052
        %v2143 = vmul.f32 %v2122, %v2052
        %v2144 = vmul.f32 %v2124, %v2052
        %v2145 = vmul.f32 %v2126, %v2052
        %v2146 = vmul.f32 %v2128, %v2052
        %v2147 = vmul.f32 %v2130, %v2052
        %v2148 = vmul.f32 %v2132, %v2052
        %v2149 = vadd.f32 %v2133, 1e-05
        %v2150 = vadd.f32 %v2134, 1e-05
        %v2151 = vadd.f32 %v2135, 1e-05
        %v2152 = vadd.f32 %v2136, 1e-05
        %v2153 = vadd.f32 %v2137, 1e-05
        %v2154 = vadd.f32 %v2138, 1e-05
        %v2155 = vadd.f32 %v2139, 1e-05
        %v2156 = vadd.f32 %v2140, 1e-05
        %v2157 = vadd.f32 %v2141, 1e-05
        %v2158 = vadd.f32 %v2142, 1e-05
        %v2159 = vadd.f32 %v2143, 1e-05
        %v2160 = vadd.f32 %v2144, 1e-05
        %v2161 = vadd.f32 %v2145, 1e-05
        %v2162 = vadd.f32 %v2146, 1e-05
        %v2163 = vadd.f32 %v2147, 1e-05
        %v2164 = vadd.f32 %v2148, 1e-05
        %v2165 = vrsqrt.pop %v2149
        %v2166 = vrsqrt.pop %v2150
        %v2167 = vrsqrt.pop %v2151
        %v2168 = vrsqrt.pop %v2152
        %v2169 = vrsqrt.pop %v2153
        %v2170 = vrsqrt.pop %v2154
        %v2171 = vrsqrt.pop %v2155
        %v2172 = vrsqrt.pop %v2156
        %v2173 = vrsqrt.pop %v2157
        %v2174 = vrsqrt.pop %v2158
        %v2175 = vrsqrt.pop %v2159
        %v2176 = vrsqrt.pop %v2160
        %v2177 = vrsqrt.pop %v2161
        %v2178 = vrsqrt.pop %v2162
        %v2179 = vrsqrt.pop %v2163
        %v2180 = vrsqrt.pop %v2164
        %v2181 = vmul.f32 %v2069, %v2165
        %v2182 = vmul.f32 %v2070, %v2166
        %v2183 = vmul.f32 %v2071, %v2167
        %v2184 = vmul.f32 %v2072, %v2168
        %v2185 = vmul.f32 %v2073, %v2169
        %v2186 = vmul.f32 %v2074, %v2170
        %v2187 = vmul.f32 %v2075, %v2171
        %v2188 = vmul.f32 %v2076, %v2172
        %v2189 = vmul.f32 %v2077, %v2173
        %v2190 = vmul.f32 %v2078, %v2174
        %v2191 = vmul.f32 %v2079, %v2175
        %v2192 = vmul.f32 %v2080, %v2176
        %v2193 = vmul.f32 %v2081, %v2177
        %v2194 = vmul.f32 %v2082, %v2178
        %v2195 = vmul.f32 %v2083, %v2179
        %v2196 = vmul.f32 %v2084, %v2180
        %v2197 = vld [vmem:[%s9] sm:$0x1]
        %v2199 = vlaneseq
        %v2200 = vshrl.u32 %v2199, 7
        %v2201 = vsub.s32 0, %v2200
        %v2202 = vrot.slane %v2197, %v2201
        %v2204 = vmul.f32 %v2181, %v2202
        %v2205 = vmul.f32 %v2182, %v2202
        %v2206 = vmul.f32 %v2183, %v2202
        %v2207 = vmul.f32 %v2184, %v2202
        %v2208 = vmul.f32 %v2185, %v2202
        %v2209 = vmul.f32 %v2186, %v2202
        %v2210 = vmul.f32 %v2187, %v2202
        %v2211 = vmul.f32 %v2188, %v2202
        %v2212 = vmul.f32 %v2189, %v2202
        %v2213 = vmul.f32 %v2190, %v2202
        %v2214 = vmul.f32 %v2191, %v2202
        %v2215 = vmul.f32 %v2192, %v2202
        %v2216 = vmul.f32 %v2193, %v2202
        %v2217 = vmul.f32 %v2194, %v2202
        %v2218 = vmul.f32 %v2195, %v2202
        %v2219 = vmul.f32 %v2196, %v2202
        %v2220 = vld [vmem:[%s10] sm:$0x1]
        %v2222 = vlaneseq
        %v2223 = vshrl.u32 %v2222, 7
        %v2224 = vsub.s32 0, %v2223
        %v2225 = vrot.slane %v2220, %v2224
        %v2227 = vadd.f32 %v2204, %v2225
        %v2228 = vadd.f32 %v2205, %v2225
        %v2229 = vadd.f32 %v2206, %v2225
        %v2230 = vadd.f32 %v2207, %v2225
        %v2231 = vadd.f32 %v2208, %v2225
        %v2232 = vadd.f32 %v2209, %v2225
        %v2233 = vadd.f32 %v2210, %v2225
        %v2234 = vadd.f32 %v2211, %v2225
        %v2235 = vadd.f32 %v2212, %v2225
        %v2236 = vadd.f32 %v2213, %v2225
        %v2237 = vadd.f32 %v2214, %v2225
        %v2238 = vadd.f32 %v2215, %v2225
        %v2239 = vadd.f32 %v2216, %v2225
        %v2240 = vadd.f32 %v2217, %v2225
        %v2241 = vadd.f32 %v2218, %v2225
        %v2242 = vadd.f32 %v2219, %v2225
        %v2243 = vpack.c.bf16 %v2228, %v2227
        %v2244 = vpack.c.bf16 %v2230, %v2229
        %v2245 = vpack.c.bf16 %v2232, %v2231
        %v2246 = vpack.c.bf16 %v2234, %v2233
        %v2247 = vpack.c.bf16 %v2236, %v2235
        %v2248 = vpack.c.bf16 %v2238, %v2237
        %v2249 = vpack.c.bf16 %v2240, %v2239
        %v2250 = vpack.c.bf16 %v2242, %v2241
        %v2251 = vld [vmem:[#allocation14] sm:$0xf]
        %v2252 = vld [vmem:[#allocation14 + $0x4] sm:$0xf]
        %v2253 = vld [vmem:[#allocation14 + $0x8] sm:$0xf]
        %v2254 = vld [vmem:[#allocation14 + $0xc] sm:$0xf]
        %v2255 = vld [vmem:[#allocation14 + $0x10] sm:$0xf]
        %v2256 = vld [vmem:[#allocation14 + $0x14] sm:$0xf]
        %v2257 = vld [vmem:[#allocation14 + $0x18] sm:$0xf]
        %v2258 = vld [vmem:[#allocation14 + $0x1c] sm:$0xf]
        %v2259 = vld [vmem:[#allocation14 + $0x20] sm:$0xf]
        %v2260 = vld [vmem:[#allocation14 + $0x24] sm:$0xf]
        %v2261 = vld [vmem:[#allocation14 + $0x28] sm:$0xf]
        %v2262 = vld [vmem:[#allocation14 + $0x2c] sm:$0xf]
        %v2263 = vld [vmem:[#allocation14 + $0x30] sm:$0xf]
        %v2264 = vld [vmem:[#allocation14 + $0x34] sm:$0xf]
        %v2265 = vld [vmem:[#allocation14 + $0x38] sm:$0xf]
        %v2266 = vld [vmem:[#allocation14 + $0x3c] sm:$0xf]
        %v2267 = vld [vmem:[%s12] sm:$0x1]
        %v2269 = vlaneseq
        %v2270 = vshrl.u32 %v2269, 7
        %v2271 = vsub.s32 0, %v2270
        %v2272 = vrot.slane %v2267, %v2271
        %v2290 = vunpack.c.l.b16 %v2251
        %v2291 = vunpack.c.l.b16 %v2252
        %v2292 = vunpack.c.l.b16 %v2253
        %v2293 = vunpack.c.l.b16 %v2254
        %v2294 = vunpack.c.l.b16 %v2255
        %v2295 = vunpack.c.l.b16 %v2256
        %v2296 = vunpack.c.l.b16 %v2257
        %v2297 = vunpack.c.l.b16 %v2258
        %v2298 = vunpack.c.l.b16 %v2259
        %v2299 = vunpack.c.l.b16 %v2260
        %v2300 = vunpack.c.l.b16 %v2261
        %v2301 = vunpack.c.l.b16 %v2262
        %v2302 = vunpack.c.l.b16 %v2263
        %v2303 = vunpack.c.l.b16 %v2264
        %v2304 = vunpack.c.l.b16 %v2265
        %v2305 = vunpack.c.l.b16 %v2266
        %v2306 = vpack.c.b16 %v2291, %v2290
        %v2307 = vpack.c.b16 %v2293, %v2292
        %v2308 = vpack.c.b16 %v2295, %v2294
        %v2309 = vpack.c.b16 %v2297, %v2296
        %v2310 = vpack.c.b16 %v2299, %v2298
        %v2311 = vpack.c.b16 %v2301, %v2300
        %v2312 = vpack.c.b16 %v2303, %v2302
        %v2313 = vpack.c.b16 %v2305, %v2304
        %2322 = vmatprep.subr.bf16.mxu0 0
        %2323 = vmatpush1.bf16.msra.mxu0 %v2306
        %2324 = vmatprep.subr.bf16.mxu0 0
        %2325 = vmatpush1.bf16.msra.mxu0 %v2307
        %2326 = vmatprep.subr.bf16.mxu0 0
        %2327 = vmatpush1.bf16.msra.mxu0 %v2308
        %2328 = vmatprep.subr.bf16.mxu0 0
        %2329 = vmatpush1.bf16.msra.mxu0 %v2309
        %2330 = vmatprep.subr.bf16.mxu0 0
        %2331 = vmatpush1.bf16.msra.mxu0 %v2310
        %2332 = vmatprep.subr.bf16.mxu0 0
        %2333 = vmatpush1.bf16.msra.mxu0 %v2311
        %2334 = vmatprep.subr.bf16.mxu0 0
        %2335 = vmatpush1.bf16.msra.mxu0 %v2312
        %2336 = vmatprep.subr.bf16.mxu0 0
        %2337 = vmatpush1.bf16.msra.mxu0 %v2313
        %2338 = vmatprep.subr.bf16.mxu0 0
        %2339 = vmatpush1.bf16.msra.mxu0 0
        %2340 = vmatprep.subr.bf16.mxu0 0
        %2341 = vmatpush1.bf16.msra.mxu0 0
        %2342 = vmatprep.subr.bf16.mxu0 0
        %2343 = vmatpush1.bf16.msra.mxu0 0
        %2344 = vmatprep.subr.bf16.mxu0 0
        %2345 = vmatpush1.bf16.msra.mxu0 0
        %2346 = vmatprep.subr.bf16.mxu0 0
        %2347 = vmatpush1.bf16.msra.mxu0 0
        %2348 = vmatprep.subr.bf16.mxu0 0
        %2349 = vmatpush1.bf16.msra.mxu0 0
        %2350 = vmatprep.subr.bf16.mxu0 0
        %2351 = vmatpush1.bf16.msra.mxu0 0
        %2352 = vmatprep.subr.bf16.mxu0 0
        %2353 = vmatpush1.bf16.msra.mxu0 0
        %2354 = vmatprep.mubr.bf16.mxu0 0
        %2355 = vmatmul.mubr.bf16.gmra.mrb[0].mxu0 %v2243
        %v2356 = vpop.f32.mrb[0].mxu0
        %v2357 = vadd.f32 %v2272, %v2356
        %v2358 = vpop.f32.mrb[0].mxu0
        %v2359 = vpop.f32.mrb[0].mxu0
        %v2360 = vadd.f32 %v2272, %v2359
        %v2361 = vpop.f32.mrb[0].mxu0
        %2362 = vmatprep.mubr.bf16.mxu0 0
        %2363 = vmatmul.mubr.bf16.gmra.mrb[0].mxu0 %v2244
        %v2364 = vpop.f32.mrb[0].mxu0
        %v2365 = vadd.f32 %v2272, %v2364
        %v2366 = vpop.f32.mrb[0].mxu0
        %v2367 = vpop.f32.mrb[0].mxu0
        %v2368 = vadd.f32 %v2272, %v2367
        %v2369 = vpop.f32.mrb[0].mxu0
        %2370 = vmatprep.mubr.bf16.mxu0 0
        %2371 = vmatmul.mubr.bf16.gmra.mrb[0].mxu0 %v2245
        %v2372 = vpop.f32.mrb[0].mxu0
        %v2373 = vadd.f32 %v2272, %v2372
        %v2374 = vpop.f32.mrb[0].mxu0
        %v2375 = vpop.f32.mrb[0].mxu0
        %v2376 = vadd.f32 %v2272, %v2375
        %v2377 = vpop.f32.mrb[0].mxu0
        %2378 = vmatprep.mubr.bf16.mxu0 0
        %2379 = vmatmul.mubr.bf16.gmra.mrb[0].mxu0 %v2246
        %v2380 = vpop.f32.mrb[0].mxu0
        %v2381 = vadd.f32 %v2272, %v2380
        %v2382 = vpop.f32.mrb[0].mxu0
        %v2383 = vpop.f32.mrb[0].mxu0
        %v2384 = vadd.f32 %v2272, %v2383
        %v2385 = vpop.f32.mrb[0].mxu0
        %2386 = vmatprep.mubr.bf16.mxu0 0
        %2387 = vmatmul.mubr.bf16.gmra.mrb[0].mxu0 %v2247
        %v2388 = vpop.f32.mrb[0].mxu0
        %v2389 = vadd.f32 %v2272, %v2388
        %v2390 = vpop.f32.mrb[0].mxu0
        %v2391 = vpop.f32.mrb[0].mxu0
        %v2392 = vadd.f32 %v2272, %v2391
        %v2393 = vpop.f32.mrb[0].mxu0
        %2394 = vmatprep.mubr.bf16.mxu0 0
        %2395 = vmatmul.mubr.bf16.gmra.mrb[0].mxu0 %v2248
        %v2396 = vpop.f32.mrb[0].mxu0
        %v2397 = vadd.f32 %v2272, %v2396
        %v2398 = vpop.f32.mrb[0].mxu0
        %v2399 = vpop.f32.mrb[0].mxu0
        %v2400 = vadd.f32 %v2272, %v2399
        %v2401 = vpop.f32.mrb[0].mxu0
        %2402 = vmatprep.mubr.bf16.mxu0 0
        %2403 = vmatmul.mubr.bf16.gmra.mrb[0].mxu0 %v2249
        %v2404 = vpop.f32.mrb[0].mxu0
        %v2405 = vadd.f32 %v2272, %v2404
        %v2406 = vpop.f32.mrb[0].mxu0
        %v2407 = vpop.f32.mrb[0].mxu0
        %v2408 = vadd.f32 %v2272, %v2407
        %v2409 = vpop.f32.mrb[0].mxu0
        %2410 = vmatprep.mubr.bf16.mxu0 0
        %2411 = vmatmul.mubr.bf16.gmra.mrb[0].mxu0 %v2250
        %v2412 = vpop.f32.mrb[0].mxu0
        %v2413 = vadd.f32 %v2272, %v2412
        %v2414 = vpop.f32.mrb[0].mxu0
        %v2415 = vpop.f32.mrb[0].mxu0
        %v2416 = vadd.f32 %v2272, %v2415
        %v2417 = vpop.f32.mrb[0].mxu0
        %2418 = vdwg.mxu0
        %v2419 = vmul.f32 %v2357, 0.088388346
        %v2420 = vmul.f32 %v2360, 0.088388346
        %v2421 = vmul.f32 %v2365, 0.088388346
        %v2422 = vmul.f32 %v2368, 0.088388346
        %v2423 = vmul.f32 %v2373, 0.088388346
        %v2424 = vmul.f32 %v2376, 0.088388346
        %v2425 = vmul.f32 %v2381, 0.088388346
        %v2426 = vmul.f32 %v2384, 0.088388346
        %v2427 = vmul.f32 %v2389, 0.088388346
        %v2428 = vmul.f32 %v2392, 0.088388346
        %v2429 = vmul.f32 %v2397, 0.088388346
        %v2430 = vmul.f32 %v2400, 0.088388346
        %v2431 = vmul.f32 %v2405, 0.088388346
        %v2432 = vmul.f32 %v2408, 0.088388346
        %v2433 = vmul.f32 %v2413, 0.088388346
        %v2434 = vmul.f32 %v2416, 0.088388346
        %v2435 = vpack.c.bf16 %v2420, %v2419
        %v2436 = vpack.c.bf16 %v2422, %v2421
        %v2437 = vpack.c.bf16 %v2424, %v2423
        %v2438 = vpack.c.bf16 %v2426, %v2425
        %v2439 = vpack.c.bf16 %v2428, %v2427
        %v2440 = vpack.c.bf16 %v2430, %v2429
        %v2441 = vpack.c.bf16 %v2432, %v2431
        %v2442 = vpack.c.bf16 %v2434, %v2433
        %v2443 = vld [vmem:[#allocation8] sm:$0xf]
        %v2444 = vld [vmem:[#allocation8 + $0x4] sm:$0xf]
        %v2445 = vld [vmem:[#allocation8 + $0x8] sm:$0xf]
        %v2446 = vld [vmem:[#allocation8 + $0xc] sm:$0xf]
        %v2447 = vld [vmem:[#allocation8 + $0x10] sm:$0xf]
        %v2448 = vld [vmem:[#allocation8 + $0x14] sm:$0xf]
        %v2449 = vld [vmem:[#allocation8 + $0x18] sm:$0xf]
        %v2450 = vld [vmem:[#allocation8 + $0x1c] sm:$0xf]
        %v2451 = vld [vmem:[#allocation8 + $0x20] sm:$0xf]
        %v2452 = vld [vmem:[#allocation8 + $0x24] sm:$0xf]
        %v2453 = vld [vmem:[#allocation8 + $0x28] sm:$0xf]
        %v2454 = vld [vmem:[#allocation8 + $0x2c] sm:$0xf]
        %v2455 = vld [vmem:[#allocation8 + $0x30] sm:$0xf]
        %v2456 = vld [vmem:[#allocation8 + $0x34] sm:$0xf]
        %v2457 = vld [vmem:[#allocation8 + $0x38] sm:$0xf]
        %v2458 = vld [vmem:[#allocation8 + $0x3c] sm:$0xf]
        %v2475 = vunpack.c.l.b16 %v2443
        %v2476 = vunpack.c.l.b16 %v2444
        %v2477 = vunpack.c.l.b16 %v2445
        %v2478 = vunpack.c.l.b16 %v2446
        %v2479 = vunpack.c.l.b16 %v2447
        %v2480 = vunpack.c.l.b16 %v2448
        %v2481 = vunpack.c.l.b16 %v2449
        %v2482 = vunpack.c.l.b16 %v2450
        %v2483 = vunpack.c.l.b16 %v2451
        %v2484 = vunpack.c.l.b16 %v2452
        %v2485 = vunpack.c.l.b16 %v2453
        %v2486 = vunpack.c.l.b16 %v2454
        %v2487 = vunpack.c.l.b16 %v2455
        %v2488 = vunpack.c.l.b16 %v2456
        %v2489 = vunpack.c.l.b16 %v2457
        %v2490 = vunpack.c.l.b16 %v2458
        %v2491 = vpack.c.b16 %v2476, %v2475
        %v2492 = vpack.c.b16 %v2478, %v2477
        %v2493 = vpack.c.b16 %v2480, %v2479
        %v2494 = vpack.c.b16 %v2482, %v2481
        %v2495 = vpack.c.b16 %v2484, %v2483
        %v2496 = vpack.c.b16 %v2486, %v2485
        %v2497 = vpack.c.b16 %v2488, %v2487
        %v2498 = vpack.c.b16 %v2490, %v2489
        %2507 = vmatprep.subr.bf16.mxu0 0
        %2508 = vmatpush1.bf16.xpose.msra.mxu0 %v2491
        %2509 = vmatprep.subr.bf16.mxu0 0
        %2510 = vmatpush1.bf16.xpose.msra.mxu0 %v2492
        %2511 = vmatprep.subr.bf16.mxu0 0
        %2512 = vmatpush1.bf16.xpose.msra.mxu0 %v2493
        %2513 = vmatprep.subr.bf16.mxu0 0
        %2514 = vmatpush1.bf16.xpose.msra.mxu0 %v2494
        %2515 = vmatprep.subr.bf16.mxu0 0
        %2516 = vmatpush1.bf16.xpose.msra.mxu0 %v2495
        %2517 = vmatprep.subr.bf16.mxu0 0
        %2518 = vmatpush1.bf16.xpose.msra.mxu0 %v2496
        %2519 = vmatprep.subr.bf16.mxu0 0
        %2520 = vmatpush1.bf16.xpose.msra.mxu0 %v2497
        %2521 = vmatprep.subr.bf16.mxu0 0
        %2522 = vmatpush1.bf16.xpose.msra.mxu0 %v2498
        %2523 = vmatprep.subr.bf16.mxu0 0
        %2524 = vmatpush1.bf16.xpose.msra.mxu0 0
        %2525 = vmatprep.subr.bf16.mxu0 0
        %2526 = vmatpush1.bf16.xpose.msra.mxu0 0
        %2527 = vmatprep.subr.bf16.mxu0 0
        %2528 = vmatpush1.bf16.xpose.msra.mxu0 0
        %2529 = vmatprep.subr.bf16.mxu0 0
        %2530 = vmatpush1.bf16.xpose.msra.mxu0 0
        %2531 = vmatprep.subr.bf16.mxu0 0
        %2532 = vmatpush1.bf16.xpose.msra.mxu0 0
        %2533 = vmatprep.subr.bf16.mxu0 0
        %2534 = vmatpush1.bf16.xpose.msra.mxu0 0
        %2535 = vmatprep.subr.bf16.mxu0 0
        %2536 = vmatpush1.bf16.xpose.msra.mxu0 0
        %2537 = vmatprep.subr.bf16.mxu0 0
        %2538 = vmatpush1.bf16.xpose.msra.mxu0 0
        %2539 = vmatprep.mubr.bf16.mxu0 0
        %2540 = vmatmul.mubr.bf16.gmra.mrb[0].mxu0 %v2435
        %v2541 = vpop.f32.mrb[0].mxu0
        %v2542 = vadd.f32 0.0, %v2541
        %v2543 = vpop.f32.mrb[0].mxu0
        %v2544 = vpop.f32.mrb[0].mxu0
        %v2545 = vadd.f32 0.0, %v2544
        %v2546 = vpop.f32.mrb[0].mxu0
        %2547 = vmatprep.mubr.bf16.mxu0 0
        %2548 = vmatmul.mubr.bf16.gmra.mrb[0].mxu0 %v2436
        %v2549 = vpop.f32.mrb[0].mxu0
        %v2550 = vadd.f32 0.0, %v2549
        %v2551 = vpop.f32.mrb[0].mxu0
        %v2552 = vpop.f32.mrb[0].mxu0
        %v2553 = vadd.f32 0.0, %v2552
        %v2554 = vpop.f32.mrb[0].mxu0
        %2555 = vmatprep.mubr.bf16.mxu0 0
        %2556 = vmatmul.mubr.bf16.gmra.mrb[0].mxu0 %v2437
        %v2557 = vpop.f32.mrb[0].mxu0
        %v2558 = vadd.f32 0.0, %v2557
        %v2559 = vpop.f32.mrb[0].mxu0
        %v2560 = vpop.f32.mrb[0].mxu0
        %v2561 = vadd.f32 0.0, %v2560
        %v2562 = vpop.f32.mrb[0].mxu0
        %2563 = vmatprep.mubr.bf16.mxu0 0
        %2564 = vmatmul.mubr.bf16.gmra.mrb[0].mxu0 %v2438
        %v2565 = vpop.f32.mrb[0].mxu0
        %v2566 = vadd.f32 0.0, %v2565
        %v2567 = vpop.f32.mrb[0].mxu0
        %v2568 = vpop.f32.mrb[0].mxu0
        %v2569 = vadd.f32 0.0, %v2568
        %v2570 = vpop.f32.mrb[0].mxu0
        %2571 = vmatprep.mubr.bf16.mxu0 0
        %2572 = vmatmul.mubr.bf16.gmra.mrb[0].mxu0 %v2439
        %v2573 = vpop.f32.mrb[0].mxu0
        %v2574 = vadd.f32 0.0, %v2573
        %v2575 = vpop.f32.mrb[0].mxu0
        %v2576 = vpop.f32.mrb[0].mxu0
        %v2577 = vadd.f32 0.0, %v2576
        %v2578 = vpop.f32.mrb[0].mxu0
        %2579 = vmatprep.mubr.bf16.mxu0 0
        %2580 = vmatmul.mubr.bf16.gmra.mrb[0].mxu0 %v2440
        %v2581 = vpop.f32.mrb[0].mxu0
        %v2582 = vadd.f32 0.0, %v2581
        %v2583 = vpop.f32.mrb[0].mxu0
        %v2584 = vpop.f32.mrb[0].mxu0
        %v2585 = vadd.f32 0.0, %v2584
        %v2586 = vpop.f32.mrb[0].mxu0
        %2587 = vmatprep.mubr.bf16.mxu0 0
        %2588 = vmatmul.mubr.bf16.gmra.mrb[0].mxu0 %v2441
        %v2589 = vpop.f32.mrb[0].mxu0
        %v2590 = vadd.f32 0.0, %v2589
        %v2591 = vpop.f32.mrb[0].mxu0
        %v2592 = vpop.f32.mrb[0].mxu0
        %v2593 = vadd.f32 0.0, %v2592
        %v2594 = vpop.f32.mrb[0].mxu0
        %2595 = vmatprep.mubr.bf16.mxu0 0
        %2596 = vmatmul.mubr.bf16.gmra.mrb[0].mxu0 %v2442
        %v2597 = vpop.f32.mrb[0].mxu0
        %v2598 = vadd.f32 0.0, %v2597
        %v2599 = vpop.f32.mrb[0].mxu0
        %v2600 = vpop.f32.mrb[0].mxu0
        %v2601 = vadd.f32 0.0, %v2600
        %v2602 = vpop.f32.mrb[0].mxu0
        %2603 = vdwg.mxu0
        %2604 = vmax.xlane.f32.xlu0 %v2542
        %v2605 = vpop.xlane.xlu0 %2604
        %2606 = vmax.xlane.f32.xlu0 %v2545
        %v2607 = vpop.xlane.xlu0 %2606
        %2608 = vmax.xlane.f32.xlu0 %v2550
        %v2609 = vpop.xlane.xlu0 %2608
        %2610 = vmax.xlane.f32.xlu0 %v2553
        %v2611 = vpop.xlane.xlu0 %2610
        %2612 = vmax.xlane.f32.xlu0 %v2558
        %v2613 = vpop.xlane.xlu0 %2612
        %2614 = vmax.xlane.f32.xlu0 %v2561
        %v2615 = vpop.xlane.xlu0 %2614
        %2616 = vmax.xlane.f32.xlu0 %v2566
        %v2617 = vpop.xlane.xlu0 %2616
        %2618 = vmax.xlane.f32.xlu0 %v2569
        %v2619 = vpop.xlane.xlu0 %2618
        %2620 = vmax.xlane.f32.xlu0 %v2574
        %v2621 = vpop.xlane.xlu0 %2620
        %2622 = vmax.xlane.f32.xlu0 %v2577
        %v2623 = vpop.xlane.xlu0 %2622
        %2624 = vmax.xlane.f32.xlu0 %v2582
        %v2625 = vpop.xlane.xlu0 %2624
        %2626 = vmax.xlane.f32.xlu0 %v2585
        %v2627 = vpop.xlane.xlu0 %2626
        %2628 = vmax.xlane.f32.xlu0 %v2590
        %v2629 = vpop.xlane.xlu0 %2628
        %2630 = vmax.xlane.f32.xlu0 %v2593
        %v2631 = vpop.xlane.xlu0 %2630
        %2632 = vmax.xlane.f32.xlu0 %v2598
        %v2633 = vpop.xlane.xlu0 %2632
        %2634 = vmax.xlane.f32.xlu0 %v2601
        %v2635 = vpop.xlane.xlu0 %2634
        %v2636 = vsub.f32 %v2542, %v2605
        %v2637 = vsub.f32 %v2545, %v2607
        %v2638 = vsub.f32 %v2550, %v2609
        %v2639 = vsub.f32 %v2553, %v2611
        %v2640 = vsub.f32 %v2558, %v2613
        %v2641 = vsub.f32 %v2561, %v2615
        %v2642 = vsub.f32 %v2566, %v2617
        %v2643 = vsub.f32 %v2569, %v2619
        %v2644 = vsub.f32 %v2574, %v2621
        %v2645 = vsub.f32 %v2577, %v2623
        %v2646 = vsub.f32 %v2582, %v2625
        %v2647 = vsub.f32 %v2585, %v2627
        %v2648 = vsub.f32 %v2590, %v2629
        %v2649 = vsub.f32 %v2593, %v2631
        %v2650 = vsub.f32 %v2598, %v2633
        %v2651 = vsub.f32 %v2601, %v2635
        %v2652 = vmul.f32 %v2636, 1.442695
        %v2653 = vpow.pop %v2652
        %v2654 = vmul.f32 %v2637, 1.442695
        %v2655 = vpow.pop %v2654
        %v2656 = vmul.f32 %v2638, 1.442695
        %v2657 = vpow.pop %v2656
        %v2658 = vmul.f32 %v2639, 1.442695
        %v2659 = vpow.pop %v2658
        %v2660 = vmul.f32 %v2640, 1.442695
        %v2661 = vpow.pop %v2660
        %v2662 = vmul.f32 %v2641, 1.442695
        %v2663 = vpow.pop %v2662
        %v2664 = vmul.f32 %v2642, 1.442695
        %v2665 = vpow.pop %v2664
        %v2666 = vmul.f32 %v2643, 1.442695
        %v2667 = vpow.pop %v2666
        %v2668 = vmul.f32 %v2644, 1.442695
        %v2669 = vpow.pop %v2668
        %v2670 = vmul.f32 %v2645, 1.442695
        %v2671 = vpow.pop %v2670
        %v2672 = vmul.f32 %v2646, 1.442695
        %v2673 = vpow.pop %v2672
        %v2674 = vmul.f32 %v2647, 1.442695
        %v2675 = vpow.pop %v2674
        %v2676 = vmul.f32 %v2648, 1.442695
        %v2677 = vpow.pop %v2676
        %v2678 = vmul.f32 %v2649, 1.442695
        %v2679 = vpow.pop %v2678
        %v2680 = vmul.f32 %v2650, 1.442695
        %v2681 = vpow.pop %v2680
        %v2682 = vmul.f32 %v2651, 1.442695
        %v2683 = vpow.pop %v2682
        %2684 = vadd.xlane.f32.xlu0 %v2653
        %v2685 = vpop.xlane.xlu0 %2684
        %2686 = vadd.xlane.f32.xlu0 %v2655
        %v2687 = vpop.xlane.xlu0 %2686
        %2688 = vadd.xlane.f32.xlu0 %v2657
        %v2689 = vpop.xlane.xlu0 %2688
        %2690 = vadd.xlane.f32.xlu0 %v2659
        %v2691 = vpop.xlane.xlu0 %2690
        %2692 = vadd.xlane.f32.xlu0 %v2661
        %v2693 = vpop.xlane.xlu0 %2692
        %2694 = vadd.xlane.f32.xlu0 %v2663
        %v2695 = vpop.xlane.xlu0 %2694
        %2696 = vadd.xlane.f32.xlu0 %v2665
        %v2697 = vpop.xlane.xlu0 %2696
        %2698 = vadd.xlane.f32.xlu0 %v2667
        %v2699 = vpop.xlane.xlu0 %2698
        %2700 = vadd.xlane.f32.xlu0 %v2669
        %v2701 = vpop.xlane.xlu0 %2700
        %2702 = vadd.xlane.f32.xlu0 %v2671
        %v2703 = vpop.xlane.xlu0 %2702
        %2704 = vadd.xlane.f32.xlu0 %v2673
        %v2705 = vpop.xlane.xlu0 %2704
        %2706 = vadd.xlane.f32.xlu0 %v2675
        %v2707 = vpop.xlane.xlu0 %2706
        %2708 = vadd.xlane.f32.xlu0 %v2677
        %v2709 = vpop.xlane.xlu0 %2708
        %2710 = vadd.xlane.f32.xlu0 %v2679
        %v2711 = vpop.xlane.xlu0 %2710
        %2712 = vadd.xlane.f32.xlu0 %v2681
        %v2713 = vpop.xlane.xlu0 %2712
        %2714 = vadd.xlane.f32.xlu0 %v2683
        %v2715 = vpop.xlane.xlu0 %2714
        %v2716 = vrcp.pop %v2685
        %v2717 = vrcp.pop %v2687
        %v2718 = vrcp.pop %v2689
        %v2719 = vrcp.pop %v2691
        %v2720 = vrcp.pop %v2693
        %v2721 = vrcp.pop %v2695
        %v2722 = vrcp.pop %v2697
        %v2723 = vrcp.pop %v2699
        %v2724 = vrcp.pop %v2701
        %v2725 = vrcp.pop %v2703
        %v2726 = vrcp.pop %v2705
        %v2727 = vrcp.pop %v2707
        %v2728 = vrcp.pop %v2709
        %v2729 = vrcp.pop %v2711
        %v2730 = vrcp.pop %v2713
        %v2731 = vrcp.pop %v2715
        %v2732 = vmul.f32 %v2653, %v2716
        %v2733 = vmul.f32 %v2655, %v2717
        %v2734 = vmul.f32 %v2657, %v2718
        %v2735 = vmul.f32 %v2659, %v2719
        %v2736 = vmul.f32 %v2661, %v2720
        %v2737 = vmul.f32 %v2663, %v2721
        %v2738 = vmul.f32 %v2665, %v2722
        %v2739 = vmul.f32 %v2667, %v2723
        %v2740 = vmul.f32 %v2669, %v2724
        %v2741 = vmul.f32 %v2671, %v2725
        %v2742 = vmul.f32 %v2673, %v2726
        %v2743 = vmul.f32 %v2675, %v2727
        %v2744 = vmul.f32 %v2677, %v2728
        %v2745 = vmul.f32 %v2679, %v2729
        %v2746 = vmul.f32 %v2681, %v2730
        %v2747 = vmul.f32 %v2683, %v2731
        %v2748 = vpack.c.bf16 %v2733, %v2732
        %v2749 = vpack.c.bf16 %v2735, %v2734
        %v2750 = vpack.c.bf16 %v2737, %v2736
        %v2751 = vpack.c.bf16 %v2739, %v2738
        %v2752 = vpack.c.bf16 %v2741, %v2740
        %v2753 = vpack.c.bf16 %v2743, %v2742
        %v2754 = vpack.c.bf16 %v2745, %v2744
        %v2755 = vpack.c.bf16 %v2747, %v2746
        %v2756 = vld [vmem:[#allocation10] sm:$0xf]
        %v2757 = vld [vmem:[#allocation10 + $0x4] sm:$0xf]
        %v2758 = vld [vmem:[#allocation10 + $0x8] sm:$0xf]
        %v2759 = vld [vmem:[#allocation10 + $0xc] sm:$0xf]
        %v2760 = vld [vmem:[#allocation10 + $0x10] sm:$0xf]
        %v2761 = vld [vmem:[#allocation10 + $0x14] sm:$0xf]
        %v2762 = vld [vmem:[#allocation10 + $0x18] sm:$0xf]
        %v2763 = vld [vmem:[#allocation10 + $0x1c] sm:$0xf]
        %v2764 = vld [vmem:[#allocation10 + $0x20] sm:$0xf]
        %v2765 = vld [vmem:[#allocation10 + $0x24] sm:$0xf]
        %v2766 = vld [vmem:[#allocation10 + $0x28] sm:$0xf]
        %v2767 = vld [vmem:[#allocation10 + $0x2c] sm:$0xf]
        %v2768 = vld [vmem:[#allocation10 + $0x30] sm:$0xf]
        %v2769 = vld [vmem:[#allocation10 + $0x34] sm:$0xf]
        %v2770 = vld [vmem:[#allocation10 + $0x38] sm:$0xf]
        %v2771 = vld [vmem:[#allocation10 + $0x3c] sm:$0xf]
        %v2788 = vunpack.c.l.b16 %v2756
        %v2789 = vunpack.c.l.b16 %v2757
        %v2790 = vunpack.c.l.b16 %v2758
        %v2791 = vunpack.c.l.b16 %v2759
        %v2792 = vunpack.c.l.b16 %v2760
        %v2793 = vunpack.c.l.b16 %v2761
        %v2794 = vunpack.c.l.b16 %v2762
        %v2795 = vunpack.c.l.b16 %v2763
        %v2796 = vunpack.c.l.b16 %v2764
        %v2797 = vunpack.c.l.b16 %v2765
        %v2798 = vunpack.c.l.b16 %v2766
        %v2799 = vunpack.c.l.b16 %v2767
        %v2800 = vunpack.c.l.b16 %v2768
        %v2801 = vunpack.c.l.b16 %v2769
        %v2802 = vunpack.c.l.b16 %v2770
        %v2803 = vunpack.c.l.b16 %v2771
        %v2804 = vpack.c.b16 %v2789, %v2788
        %v2805 = vpack.c.b16 %v2791, %v2790
        %v2806 = vpack.c.b16 %v2793, %v2792
        %v2807 = vpack.c.b16 %v2795, %v2794
        %v2808 = vpack.c.b16 %v2797, %v2796
        %v2809 = vpack.c.b16 %v2799, %v2798
        %v2810 = vpack.c.b16 %v2801, %v2800
        %v2811 = vpack.c.b16 %v2803, %v2802
        %2820 = vmatprep.subr.bf16.mxu0 0
        %2821 = vmatpush1.bf16.msra.mxu0 %v2804
        %2822 = vmatprep.subr.bf16.mxu0 0
        %2823 = vmatpush1.bf16.msra.mxu0 %v2805
        %2824 = vmatprep.subr.bf16.mxu0 0
        %2825 = vmatpush1.bf16.msra.mxu0 %v2806
        %2826 = vmatprep.subr.bf16.mxu0 0
        %2827 = vmatpush1.bf16.msra.mxu0 %v2807
        %2828 = vmatprep.subr.bf16.mxu0 0
        %2829 = vmatpush1.bf16.msra.mxu0 %v2808
        %2830 = vmatprep.subr.bf16.mxu0 0
        %2831 = vmatpush1.bf16.msra.mxu0 %v2809
        %2832 = vmatprep.subr.bf16.mxu0 0
        %2833 = vmatpush1.bf16.msra.mxu0 %v2810
        %2834 = vmatprep.subr.bf16.mxu0 0
        %2835 = vmatpush1.bf16.msra.mxu0 %v2811
        %2836 = vmatprep.subr.bf16.mxu0 0
        %2837 = vmatpush1.bf16.msra.mxu0 0
        %2838 = vmatprep.subr.bf16.mxu0 0
        %2839 = vmatpush1.bf16.msra.mxu0 0
        %2840 = vmatprep.subr.bf16.mxu0 0
        %2841 = vmatpush1.bf16.msra.mxu0 0
        %2842 = vmatprep.subr.bf16.mxu0 0
        %2843 = vmatpush1.bf16.msra.mxu0 0
        %2844 = vmatprep.subr.bf16.mxu0 0
        %2845 = vmatpush1.bf16.msra.mxu0 0
        %2846 = vmatprep.subr.bf16.mxu0 0
        %2847 = vmatpush1.bf16.msra.mxu0 0
        %2848 = vmatprep.subr.bf16.mxu0 0
        %2849 = vmatpush1.bf16.msra.mxu0 0
        %2850 = vmatprep.subr.bf16.mxu0 0
        %2851 = vmatpush1.bf16.msra.mxu0 0
        %2852 = vmatprep.mubr.bf16.mxu0 0
        %2853 = vmatmul.mubr.bf16.gmra.mrb[0].mxu0 %v2748
        %v2854 = vpop.f32.mrb[0].mxu0
        %v2855 = vadd.f32 0.0, %v2854
        %v2856 = vpop.f32.mrb[0].mxu0
        %v2857 = vpop.f32.mrb[0].mxu0
        %v2858 = vadd.f32 0.0, %v2857
        %v2859 = vpop.f32.mrb[0].mxu0
        %2860 = vmatprep.mubr.bf16.mxu0 0
        %2861 = vmatmul.mubr.bf16.gmra.mrb[0].mxu0 %v2749
        %v2862 = vpop.f32.mrb[0].mxu0
        %v2863 = vadd.f32 0.0, %v2862
        %v2864 = vpop.f32.mrb[0].mxu0
        %v2865 = vpop.f32.mrb[0].mxu0
        %v2866 = vadd.f32 0.0, %v2865
        %v2867 = vpop.f32.mrb[0].mxu0
        %2868 = vmatprep.mubr.bf16.mxu0 0
        %2869 = vmatmul.mubr.bf16.gmra.mrb[0].mxu0 %v2750
        %v2870 = vpop.f32.mrb[0].mxu0
        %v2871 = vadd.f32 0.0, %v2870
        %v2872 = vpop.f32.mrb[0].mxu0
        %v2873 = vpop.f32.mrb[0].mxu0
        %v2874 = vadd.f32 0.0, %v2873
        %v2875 = vpop.f32.mrb[0].mxu0
        %2876 = vmatprep.mubr.bf16.mxu0 0
        %2877 = vmatmul.mubr.bf16.gmra.mrb[0].mxu0 %v2751
        %v2878 = vpop.f32.mrb[0].mxu0
        %v2879 = vadd.f32 0.0, %v2878
        %v2880 = vpop.f32.mrb[0].mxu0
        %v2881 = vpop.f32.mrb[0].mxu0
        %v2882 = vadd.f32 0.0, %v2881
        %v2883 = vpop.f32.mrb[0].mxu0
        %2884 = vmatprep.mubr.bf16.mxu0 0
        %2885 = vmatmul.mubr.bf16.gmra.mrb[0].mxu0 %v2752
        %v2886 = vpop.f32.mrb[0].mxu0
        %v2887 = vadd.f32 0.0, %v2886
        %v2888 = vpop.f32.mrb[0].mxu0
        %v2889 = vpop.f32.mrb[0].mxu0
        %v2890 = vadd.f32 0.0, %v2889
        %v2891 = vpop.f32.mrb[0].mxu0
        %2892 = vmatprep.mubr.bf16.mxu0 0
        %2893 = vmatmul.mubr.bf16.gmra.mrb[0].mxu0 %v2753
        %v2894 = vpop.f32.mrb[0].mxu0
        %v2895 = vadd.f32 0.0, %v2894
        %v2896 = vpop.f32.mrb[0].mxu0
        %v2897 = vpop.f32.mrb[0].mxu0
        %v2898 = vadd.f32 0.0, %v2897
        %v2899 = vpop.f32.mrb[0].mxu0
        %2900 = vmatprep.mubr.bf16.mxu0 0
        %2901 = vmatmul.mubr.bf16.gmra.mrb[0].mxu0 %v2754
        %v2902 = vpop.f32.mrb[0].mxu0
        %v2903 = vadd.f32 0.0, %v2902
        %v2904 = vpop.f32.mrb[0].mxu0
        %v2905 = vpop.f32.mrb[0].mxu0
        %v2906 = vadd.f32 0.0, %v2905
        %v2907 = vpop.f32.mrb[0].mxu0
        %2908 = vmatprep.mubr.bf16.mxu0 0
        %2909 = vmatmul.mubr.bf16.gmra.mrb[0].mxu0 %v2755
        %v2910 = vpop.f32.mrb[0].mxu0
        %v2911 = vadd.f32 0.0, %v2910
        %v2912 = vpop.f32.mrb[0].mxu0
        %v2913 = vpop.f32.mrb[0].mxu0
        %v2914 = vadd.f32 0.0, %v2913
        %v2915 = vpop.f32.mrb[0].mxu0
        %2916 = vdwg.mxu0
        %v2917 = vpack.c.bf16 %v2858, %v2855
        %v2918 = vpack.c.bf16 %v2866, %v2863
        %v2919 = vpack.c.bf16 %v2874, %v2871
        %v2920 = vpack.c.bf16 %v2882, %v2879
        %v2921 = vpack.c.bf16 %v2890, %v2887
        %v2922 = vpack.c.bf16 %v2898, %v2895
        %v2923 = vpack.c.bf16 %v2906, %v2903
        %v2924 = vpack.c.bf16 %v2914, %v2911
        %v2925 = vld [vmem:[#allocation16] sm:$0xf]
        %v2926 = vld [vmem:[#allocation16 + $0x4] sm:$0xf]
        %v2927 = vld [vmem:[#allocation16 + $0x8] sm:$0xf]
        %v2928 = vld [vmem:[#allocation16 + $0xc] sm:$0xf]
        %v2929 = vld [vmem:[#allocation16 + $0x10] sm:$0xf]
        %v2930 = vld [vmem:[#allocation16 + $0x14] sm:$0xf]
        %v2931 = vld [vmem:[#allocation16 + $0x18] sm:$0xf]
        %v2932 = vld [vmem:[#allocation16 + $0x1c] sm:$0xf]
        %v2933 = vld [vmem:[#allocation16 + $0x20] sm:$0xf]
        %v2934 = vld [vmem:[#allocation16 + $0x24] sm:$0xf]
        %v2935 = vld [vmem:[#allocation16 + $0x28] sm:$0xf]
        %v2936 = vld [vmem:[#allocation16 + $0x2c] sm:$0xf]
        %v2937 = vld [vmem:[#allocation16 + $0x30] sm:$0xf]
        %v2938 = vld [vmem:[#allocation16 + $0x34] sm:$0xf]
        %v2939 = vld [vmem:[#allocation16 + $0x38] sm:$0xf]
        %v2940 = vld [vmem:[#allocation16 + $0x3c] sm:$0xf]
        %v2941 = vld [vmem:[%s14] sm:$0x1]
        %v2943 = vlaneseq
        %v2944 = vshrl.u32 %v2943, 7
        %v2945 = vsub.s32 0, %v2944
        %v2946 = vrot.slane %v2941, %v2945
        %v2964 = vunpack.c.l.b16 %v2925
        %v2965 = vunpack.c.l.b16 %v2926
        %v2966 = vunpack.c.l.b16 %v2927
        %v2967 = vunpack.c.l.b16 %v2928
        %v2968 = vunpack.c.l.b16 %v2929
        %v2969 = vunpack.c.l.b16 %v2930
        %v2970 = vunpack.c.l.b16 %v2931
        %v2971 = vunpack.c.l.b16 %v2932
        %v2972 = vunpack.c.l.b16 %v2933
        %v2973 = vunpack.c.l.b16 %v2934
        %v2974 = vunpack.c.l.b16 %v2935
        %v2975 = vunpack.c.l.b16 %v2936
        %v2976 = vunpack.c.l.b16 %v2937
        %v2977 = vunpack.c.l.b16 %v2938
        %v2978 = vunpack.c.l.b16 %v2939
        %v2979 = vunpack.c.l.b16 %v2940
        %v2980 = vpack.c.b16 %v2965, %v2964
        %v2981 = vpack.c.b16 %v2967, %v2966
        %v2982 = vpack.c.b16 %v2969, %v2968
        %v2983 = vpack.c.b16 %v2971, %v2970
        %v2984 = vpack.c.b16 %v2973, %v2972
        %v2985 = vpack.c.b16 %v2975, %v2974
        %v2986 = vpack.c.b16 %v2977, %v2976
        %v2987 = vpack.c.b16 %v2979, %v2978
        %2996 = vmatprep.subr.bf16.mxu0 0
        %2997 = vmatpush1.bf16.msra.mxu0 %v2980
        %2998 = vmatprep.subr.bf16.mxu0 0
        %2999 = vmatpush1.bf16.msra.mxu0 %v2981
        %3000 = vmatprep.subr.bf16.mxu0 0
        %3001 = vmatpush1.bf16.msra.mxu0 %v2982
        %3002 = vmatprep.subr.bf16.mxu0 0
        %3003 = vmatpush1.bf16.msra.mxu0 %v2983
        %3004 = vmatprep.subr.bf16.mxu0 0
        %3005 = vmatpush1.bf16.msra.mxu0 %v2984
        %3006 = vmatprep.subr.bf16.mxu0 0
        %3007 = vmatpush1.bf16.msra.mxu0 %v2985
        %3008 = vmatprep.subr.bf16.mxu0 0
        %3009 = vmatpush1.bf16.msra.mxu0 %v2986
        %3010 = vmatprep.subr.bf16.mxu0 0
        %3011 = vmatpush1.bf16.msra.mxu0 %v2987
        %3012 = vmatprep.subr.bf16.mxu0 0
        %3013 = vmatpush1.bf16.msra.mxu0 0
        %3014 = vmatprep.subr.bf16.mxu0 0
        %3015 = vmatpush1.bf16.msra.mxu0 0
        %3016 = vmatprep.subr.bf16.mxu0 0
        %3017 = vmatpush1.bf16.msra.mxu0 0
        %3018 = vmatprep.subr.bf16.mxu0 0
        %3019 = vmatpush1.bf16.msra.mxu0 0
        %3020 = vmatprep.subr.bf16.mxu0 0
        %3021 = vmatpush1.bf16.msra.mxu0 0
        %3022 = vmatprep.subr.bf16.mxu0 0
        %3023 = vmatpush1.bf16.msra.mxu0 0
        %3024 = vmatprep.subr.bf16.mxu0 0
        %3025 = vmatpush1.bf16.msra.mxu0 0
        %3026 = vmatprep.subr.bf16.mxu0 0
        %3027 = vmatpush1.bf16.msra.mxu0 0
        %3028 = vmatprep.mubr.bf16.mxu0 0
        %3029 = vmatmul.mubr.bf16.gmra.mrb[0].mxu0 %v2917
        %v3030 = vpop.f32.mrb[0].mxu0
        %v3031 = vadd.f32 %v2946, %v3030
        %v3032 = vpop.f32.mrb[0].mxu0
        %v3033 = vpop.f32.mrb[0].mxu0
        %v3034 = vadd.f32 %v2946, %v3033
        %v3035 = vpop.f32.mrb[0].mxu0
        %3036 = vmatprep.mubr.bf16.mxu0 0
        %3037 = vmatmul.mubr.bf16.gmra.mrb[0].mxu0 %v2918
        %v3038 = vpop.f32.mrb[0].mxu0
        %v3039 = vadd.f32 %v2946, %v3038
        %v3040 = vpop.f32.mrb[0].mxu0
        %v3041 = vpop.f32.mrb[0].mxu0
        %v3042 = vadd.f32 %v2946, %v3041
        %v3043 = vpop.f32.mrb[0].mxu0
        %3044 = vmatprep.mubr.bf16.mxu0 0
        %3045 = vmatmul.mubr.bf16.gmra.mrb[0].mxu0 %v2919
        %v3046 = vpop.f32.mrb[0].mxu0
        %v3047 = vadd.f32 %v2946, %v3046
        %v3048 = vpop.f32.mrb[0].mxu0
        %v3049 = vpop.f32.mrb[0].mxu0
        %v3050 = vadd.f32 %v2946, %v3049
        %v3051 = vpop.f32.mrb[0].mxu0
        %3052 = vmatprep.mubr.bf16.mxu0 0
        %3053 = vmatmul.mubr.bf16.gmra.mrb[0].mxu0 %v2920
        %v3054 = vpop.f32.mrb[0].mxu0
        %v3055 = vadd.f32 %v2946, %v3054
        %v3056 = vpop.f32.mrb[0].mxu0
        %v3057 = vpop.f32.mrb[0].mxu0
        %v3058 = vadd.f32 %v2946, %v3057
        %v3059 = vpop.f32.mrb[0].mxu0
        %3060 = vmatprep.mubr.bf16.mxu0 0
        %3061 = vmatmul.mubr.bf16.gmra.mrb[0].mxu0 %v2921
        %v3062 = vpop.f32.mrb[0].mxu0
        %v3063 = vadd.f32 %v2946, %v3062
        %v3064 = vpop.f32.mrb[0].mxu0
        %v3065 = vpop.f32.mrb[0].mxu0
        %v3066 = vadd.f32 %v2946, %v3065
        %v3067 = vpop.f32.mrb[0].mxu0
        %3068 = vmatprep.mubr.bf16.mxu0 0
        %3069 = vmatmul.mubr.bf16.gmra.mrb[0].mxu0 %v2922
        %v3070 = vpop.f32.mrb[0].mxu0
        %v3071 = vadd.f32 %v2946, %v3070
        %v3072 = vpop.f32.mrb[0].mxu0
        %v3073 = vpop.f32.mrb[0].mxu0
        %v3074 = vadd.f32 %v2946, %v3073
        %v3075 = vpop.f32.mrb[0].mxu0
        %3076 = vmatprep.mubr.bf16.mxu0 0
        %3077 = vmatmul.mubr.bf16.gmra.mrb[0].mxu0 %v2923
        %v3078 = vpop.f32.mrb[0].mxu0
        %v3079 = vadd.f32 %v2946, %v3078
        %v3080 = vpop.f32.mrb[0].mxu0
        %v3081 = vpop.f32.mrb[0].mxu0
        %v3082 = vadd.f32 %v2946, %v3081
        %v3083 = vpop.f32.mrb[0].mxu0
        %3084 = vmatprep.mubr.bf16.mxu0 0
        %3085 = vmatmul.mubr.bf16.gmra.mrb[0].mxu0 %v2924
        %v3086 = vpop.f32.mrb[0].mxu0
        %v3087 = vadd.f32 %v2946, %v3086
        %v3088 = vpop.f32.mrb[0].mxu0
        %v3089 = vpop.f32.mrb[0].mxu0
        %v3090 = vadd.f32 %v2946, %v3089
        %v3091 = vpop.f32.mrb[0].mxu0
        %3092 = vdwg.mxu0
        %v3093 = vadd.f32 %v3031, %v2227
        %v3094 = vadd.f32 %v3034, %v2228
        %v3095 = vadd.f32 %v3039, %v2229
        %v3096 = vadd.f32 %v3042, %v2230
        %v3097 = vadd.f32 %v3047, %v2231
        %v3098 = vadd.f32 %v3050, %v2232
        %v3099 = vadd.f32 %v3055, %v2233
        %v3100 = vadd.f32 %v3058, %v2234
        %v3101 = vadd.f32 %v3063, %v2235
        %v3102 = vadd.f32 %v3066, %v2236
        %v3103 = vadd.f32 %v3071, %v2237
        %v3104 = vadd.f32 %v3074, %v2238
        %v3105 = vadd.f32 %v3079, %v2239
        %v3106 = vadd.f32 %v3082, %v2240
        %v3107 = vadd.f32 %v3087, %v2241
        %v3108 = vadd.f32 %v3090, %v2242
        %3109 = vadd.xlane.f32.xlu0 %v3093
        %v3110 = vpop.xlane.xlu0 %3109
        %3111 = vadd.xlane.f32.xlu0 %v3094
        %v3112 = vpop.xlane.xlu0 %3111
        %3113 = vadd.xlane.f32.xlu0 %v3095
        %v3114 = vpop.xlane.xlu0 %3113
        %3115 = vadd.xlane.f32.xlu0 %v3096
        %v3116 = vpop.xlane.xlu0 %3115
        %3117 = vadd.xlane.f32.xlu0 %v3097
        %v3118 = vpop.xlane.xlu0 %3117
        %3119 = vadd.xlane.f32.xlu0 %v3098
        %v3120 = vpop.xlane.xlu0 %3119
        %3121 = vadd.xlane.f32.xlu0 %v3099
        %v3122 = vpop.xlane.xlu0 %3121
        %3123 = vadd.xlane.f32.xlu0 %v3100
        %v3124 = vpop.xlane.xlu0 %3123
        %3125 = vadd.xlane.f32.xlu0 %v3101
        %v3126 = vpop.xlane.xlu0 %3125
        %3127 = vadd.xlane.f32.xlu0 %v3102
        %v3128 = vpop.xlane.xlu0 %3127
        %3129 = vadd.xlane.f32.xlu0 %v3103
        %v3130 = vpop.xlane.xlu0 %3129
        %3131 = vadd.xlane.f32.xlu0 %v3104
        %v3132 = vpop.xlane.xlu0 %3131
        %3133 = vadd.xlane.f32.xlu0 %v3105
        %v3134 = vpop.xlane.xlu0 %3133
        %3135 = vadd.xlane.f32.xlu0 %v3106
        %v3136 = vpop.xlane.xlu0 %3135
        %3137 = vadd.xlane.f32.xlu0 %v3107
        %v3138 = vpop.xlane.xlu0 %3137
        %3139 = vadd.xlane.f32.xlu0 %v3108
        %v3140 = vpop.xlane.xlu0 %3139
        %v3141 = vmul.f32 %v3110, %v2052
        %v3142 = vmul.f32 %v3112, %v2052
        %v3143 = vmul.f32 %v3114, %v2052
        %v3144 = vmul.f32 %v3116, %v2052
        %v3145 = vmul.f32 %v3118, %v2052
        %v3146 = vmul.f32 %v3120, %v2052
        %v3147 = vmul.f32 %v3122, %v2052
        %v3148 = vmul.f32 %v3124, %v2052
        %v3149 = vmul.f32 %v3126, %v2052
        %v3150 = vmul.f32 %v3128, %v2052
        %v3151 = vmul.f32 %v3130, %v2052
        %v3152 = vmul.f32 %v3132, %v2052
        %v3153 = vmul.f32 %v3134, %v2052
        %v3154 = vmul.f32 %v3136, %v2052
        %v3155 = vmul.f32 %v3138, %v2052
        %v3156 = vmul.f32 %v3140, %v2052
        %v3157 = vsub.f32 %v3093, %v3141
        %v3158 = vsub.f32 %v3094, %v3142
        %v3159 = vsub.f32 %v3095, %v3143
        %v3160 = vsub.f32 %v3096, %v3144
        %v3161 = vsub.f32 %v3097, %v3145
        %v3162 = vsub.f32 %v3098, %v3146
        %v3163 = vsub.f32 %v3099, %v3147
        %v3164 = vsub.f32 %v3100, %v3148
        %v3165 = vsub.f32 %v3101, %v3149
        %v3166 = vsub.f32 %v3102, %v3150
        %v3167 = vsub.f32 %v3103, %v3151
        %v3168 = vsub.f32 %v3104, %v3152
        %v3169 = vsub.f32 %v3105, %v3153
        %v3170 = vsub.f32 %v3106, %v3154
        %v3171 = vsub.f32 %v3107, %v3155
        %v3172 = vsub.f32 %v3108, %v3156
        %v3173 = vmul.f32 %v3157, %v3157
        %v3174 = vmul.f32 %v3158, %v3158
        %v3175 = vmul.f32 %v3159, %v3159
        %v3176 = vmul.f32 %v3160, %v3160
        %v3177 = vmul.f32 %v3161, %v3161
        %v3178 = vmul.f32 %v3162, %v3162
        %v3179 = vmul.f32 %v3163, %v3163
        %v3180 = vmul.f32 %v3164, %v3164
        %v3181 = vmul.f32 %v3165, %v3165
        %v3182 = vmul.f32 %v3166, %v3166
        %v3183 = vmul.f32 %v3167, %v3167
        %v3184 = vmul.f32 %v3168, %v3168
        %v3185 = vmul.f32 %v3169, %v3169
        %v3186 = vmul.f32 %v3170, %v3170
        %v3187 = vmul.f32 %v3171, %v3171
        %v3188 = vmul.f32 %v3172, %v3172
        %3189 = vadd.xlane.f32.xlu0 %v3173
        %v3190 = vpop.xlane.xlu0 %3189
        %3191 = vadd.xlane.f32.xlu0 %v3174
        %v3192 = vpop.xlane.xlu0 %3191
        %3193 = vadd.xlane.f32.xlu0 %v3175
        %v3194 = vpop.xlane.xlu0 %3193
        %3195 = vadd.xlane.f32.xlu0 %v3176
        %v3196 = vpop.xlane.xlu0 %3195
        %3197 = vadd.xlane.f32.xlu0 %v3177
        %v3198 = vpop.xlane.xlu0 %3197
        %3199 = vadd.xlane.f32.xlu0 %v3178
        %v3200 = vpop.xlane.xlu0 %3199
        %3201 = vadd.xlane.f32.xlu0 %v3179
        %v3202 = vpop.xlane.xlu0 %3201
        %3203 = vadd.xlane.f32.xlu0 %v3180
        %v3204 = vpop.xlane.xlu0 %3203
        %3205 = vadd.xlane.f32.xlu0 %v3181
        %v3206 = vpop.xlane.xlu0 %3205
        %3207 = vadd.xlane.f32.xlu0 %v3182
        %v3208 = vpop.xlane.xlu0 %3207
        %3209 = vadd.xlane.f32.xlu0 %v3183
        %v3210 = vpop.xlane.xlu0 %3209
        %3211 = vadd.xlane.f32.xlu0 %v3184
        %v3212 = vpop.xlane.xlu0 %3211
        %3213 = vadd.xlane.f32.xlu0 %v3185
        %v3214 = vpop.xlane.xlu0 %3213
        %3215 = vadd.xlane.f32.xlu0 %v3186
        %v3216 = vpop.xlane.xlu0 %3215
        %3217 = vadd.xlane.f32.xlu0 %v3187
        %v3218 = vpop.xlane.xlu0 %3217
        %3219 = vadd.xlane.f32.xlu0 %v3188
        %v3220 = vpop.xlane.xlu0 %3219
        %v3221 = vmul.f32 %v3190, %v2052
        %v3222 = vmul.f32 %v3192, %v2052
        %v3223 = vmul.f32 %v3194, %v2052
        %v3224 = vmul.f32 %v3196, %v2052
        %v3225 = vmul.f32 %v3198, %v2052
        %v3226 = vmul.f32 %v3200, %v2052
        %v3227 = vmul.f32 %v3202, %v2052
        %v3228 = vmul.f32 %v3204, %v2052
        %v3229 = vmul.f32 %v3206, %v2052
        %v3230 = vmul.f32 %v3208, %v2052
        %v3231 = vmul.f32 %v3210, %v2052
        %v3232 = vmul.f32 %v3212, %v2052
        %v3233 = vmul.f32 %v3214, %v2052
        %v3234 = vmul.f32 %v3216, %v2052
        %v3235 = vmul.f32 %v3218, %v2052
        %v3236 = vmul.f32 %v3220, %v2052
        %v3237 = vadd.f32 %v3221, 1e-05
        %v3238 = vadd.f32 %v3222, 1e-05
        %v3239 = vadd.f32 %v3223, 1e-05
        %v3240 = vadd.f32 %v3224, 1e-05
        %v3241 = vadd.f32 %v3225, 1e-05
        %v3242 = vadd.f32 %v3226, 1e-05
        %v3243 = vadd.f32 %v3227, 1e-05
        %v3244 = vadd.f32 %v3228, 1e-05
        %v3245 = vadd.f32 %v3229, 1e-05
        %v3246 = vadd.f32 %v3230, 1e-05
        %v3247 = vadd.f32 %v3231, 1e-05
        %v3248 = vadd.f32 %v3232, 1e-05
        %v3249 = vadd.f32 %v3233, 1e-05
        %v3250 = vadd.f32 %v3234, 1e-05
        %v3251 = vadd.f32 %v3235, 1e-05
        %v3252 = vadd.f32 %v3236, 1e-05
        %v3253 = vrsqrt.pop %v3237
        %v3254 = vrsqrt.pop %v3238
        %v3255 = vrsqrt.pop %v3239
        %v3256 = vrsqrt.pop %v3240
        %v3257 = vrsqrt.pop %v3241
        %v3258 = vrsqrt.pop %v3242
        %v3259 = vrsqrt.pop %v3243
        %v3260 = vrsqrt.pop %v3244
        %v3261 = vrsqrt.pop %v3245
        %v3262 = vrsqrt.pop %v3246
        %v3263 = vrsqrt.pop %v3247
        %v3264 = vrsqrt.pop %v3248
        %v3265 = vrsqrt.pop %v3249
        %v3266 = vrsqrt.pop %v3250
        %v3267 = vrsqrt.pop %v3251
        %v3268 = vrsqrt.pop %v3252
        %v3269 = vmul.f32 %v3157, %v3253
        %v3270 = vmul.f32 %v3158, %v3254
        %v3271 = vmul.f32 %v3159, %v3255
        %v3272 = vmul.f32 %v3160, %v3256
        %v3273 = vmul.f32 %v3161, %v3257
        %v3274 = vmul.f32 %v3162, %v3258
        %v3275 = vmul.f32 %v3163, %v3259
        %v3276 = vmul.f32 %v3164, %v3260
        %v3277 = vmul.f32 %v3165, %v3261
        %v3278 = vmul.f32 %v3166, %v3262
        %v3279 = vmul.f32 %v3167, %v3263
        %v3280 = vmul.f32 %v3168, %v3264
        %v3281 = vmul.f32 %v3169, %v3265
        %v3282 = vmul.f32 %v3170, %v3266
        %v3283 = vmul.f32 %v3171, %v3267
        %v3284 = vmul.f32 %v3172, %v3268
        %v3285 = vld [vmem:[%s15] sm:$0x1]
        %v3287 = vlaneseq
        %v3288 = vshrl.u32 %v3287, 7
        %v3289 = vsub.s32 0, %v3288
        %v3290 = vrot.slane %v3285, %v3289
        %v3292 = vmul.f32 %v3269, %v3290
        %v3293 = vmul.f32 %v3270, %v3290
        %v3294 = vmul.f32 %v3271, %v3290
        %v3295 = vmul.f32 %v3272, %v3290
        %v3296 = vmul.f32 %v3273, %v3290
        %v3297 = vmul.f32 %v3274, %v3290
        %v3298 = vmul.f32 %v3275, %v3290
        %v3299 = vmul.f32 %v3276, %v3290
        %v3300 = vmul.f32 %v3277, %v3290
        %v3301 = vmul.f32 %v3278, %v3290
        %v3302 = vmul.f32 %v3279, %v3290
        %v3303 = vmul.f32 %v3280, %v3290
        %v3304 = vmul.f32 %v3281, %v3290
        %v3305 = vmul.f32 %v3282, %v3290
        %v3306 = vmul.f32 %v3283, %v3290
        %v3307 = vmul.f32 %v3284, %v3290
        %v3308 = vld [vmem:[%s16] sm:$0x1]
        %v3310 = vlaneseq
        %v3311 = vshrl.u32 %v3310, 7
        %v3312 = vsub.s32 0, %v3311
        %v3313 = vrot.slane %v3308, %v3312
        %v3315 = vadd.f32 %v3292, %v3313
        %v3316 = vadd.f32 %v3293, %v3313
        %v3317 = vadd.f32 %v3294, %v3313
        %v3318 = vadd.f32 %v3295, %v3313
        %v3319 = vadd.f32 %v3296, %v3313
        %v3320 = vadd.f32 %v3297, %v3313
        %v3321 = vadd.f32 %v3298, %v3313
        %v3322 = vadd.f32 %v3299, %v3313
        %v3323 = vadd.f32 %v3300, %v3313
        %v3324 = vadd.f32 %v3301, %v3313
        %v3325 = vadd.f32 %v3302, %v3313
        %v3326 = vadd.f32 %v3303, %v3313
        %v3327 = vadd.f32 %v3304, %v3313
        %v3328 = vadd.f32 %v3305, %v3313
        %v3329 = vadd.f32 %v3306, %v3313
        %v3330 = vadd.f32 %v3307, %v3313
        %v3331 = vpack.c.bf16 %v3316, %v3315
        %v3332 = vpack.c.bf16 %v3318, %v3317
        %v3333 = vpack.c.bf16 %v3320, %v3319
        %v3334 = vpack.c.bf16 %v3322, %v3321
        %v3335 = vpack.c.bf16 %v3324, %v3323
        %v3336 = vpack.c.bf16 %v3326, %v3325
        %v3337 = vpack.c.bf16 %v3328, %v3327
        %v3338 = vpack.c.bf16 %v3330, %v3329
        %v3339 = vld [vmem:[#allocation17] sm:$0xff]
        %v3340 = vld [vmem:[#allocation17 + $0x8] sm:$0xff]
        %v3341 = vld [vmem:[#allocation17 + $0x10] sm:$0xff]
        %v3342 = vld [vmem:[#allocation17 + $0x18] sm:$0xff]
        %v3343 = vld [vmem:[#allocation17 + $0x20] sm:$0xff]
        %v3344 = vld [vmem:[#allocation17 + $0x28] sm:$0xff]
        %v3345 = vld [vmem:[#allocation17 + $0x30] sm:$0xff]
        %v3346 = vld [vmem:[#allocation17 + $0x38] sm:$0xff]
        %v3347 = vld [vmem:[#allocation17 + $0x40] sm:$0xff]
        %v3348 = vld [vmem:[#allocation17 + $0x48] sm:$0xff]
        %v3349 = vld [vmem:[#allocation17 + $0x50] sm:$0xff]
        %v3350 = vld [vmem:[#allocation17 + $0x58] sm:$0xff]
        %v3351 = vld [vmem:[#allocation17 + $0x60] sm:$0xff]
        %v3352 = vld [vmem:[#allocation17 + $0x68] sm:$0xff]
        %v3353 = vld [vmem:[#allocation17 + $0x70] sm:$0xff]
        %v3354 = vld [vmem:[#allocation17 + $0x78] sm:$0xff]
        %v3355 = vld [vmem:[%s18] sm:$0x3]
        %v3357 = vlaneseq
        %v3358 = vshrl.u32 %v3357, 7
        %v3359 = vsub.s32 0, %v3358
        %v3360 = vrot.slane %v3355, %v3359
        %v3361 = vlaneseq
        %v3362 = vshrl.u32 %v3361, 7
        %v3363 = vsub.s32 1, %v3362
        %v3364 = vrot.slane %v3355, %v3363
        %v3383 = vunpack.c.l.b16 %v3339
        %v3384 = vunpack.c.h.b16 %v3339
        %v3385 = vunpack.c.l.b16 %v3340
        %v3386 = vunpack.c.h.b16 %v3340
        %v3387 = vunpack.c.l.b16 %v3341
        %v3388 = vunpack.c.h.b16 %v3341
        %v3389 = vunpack.c.l.b16 %v3342
        %v3390 = vunpack.c.h.b16 %v3342
        %v3391 = vunpack.c.l.b16 %v3343
        %v3392 = vunpack.c.h.b16 %v3343
        %v3393 = vunpack.c.l.b16 %v3344
        %v3394 = vunpack.c.h.b16 %v3344
        %v3395 = vunpack.c.l.b16 %v3345
        %v3396 = vunpack.c.h.b16 %v3345
        %v3397 = vunpack.c.l.b16 %v3346
        %v3398 = vunpack.c.h.b16 %v3346
        %v3399 = vunpack.c.l.b16 %v3347
        %v3400 = vunpack.c.h.b16 %v3347
        %v3401 = vunpack.c.l.b16 %v3348
        %v3402 = vunpack.c.h.b16 %v3348
        %v3403 = vunpack.c.l.b16 %v3349
        %v3404 = vunpack.c.h.b16 %v3349
        %v3405 = vunpack.c.l.b16 %v3350
        %v3406 = vunpack.c.h.b16 %v3350
        %v3407 = vunpack.c.l.b16 %v3351
        %v3408 = vunpack.c.h.b16 %v3351
        %v3409 = vunpack.c.l.b16 %v3352
        %v3410 = vunpack.c.h.b16 %v3352
        %v3411 = vunpack.c.l.b16 %v3353
        %v3412 = vunpack.c.h.b16 %v3353
        %v3413 = vunpack.c.l.b16 %v3354
        %v3414 = vunpack.c.h.b16 %v3354
        %v3415 = vpack.c.b16 %v3385, %v3383
        %v3416 = vpack.c.b16 %v3386, %v3384
        %v3417 = vpack.c.b16 %v3389, %v3387
        %v3418 = vpack.c.b16 %v3390, %v3388
        %v3419 = vpack.c.b16 %v3393, %v3391
        %v3420 = vpack.c.b16 %v3394, %v3392
        %v3421 = vpack.c.b16 %v3397, %v3395
        %v3422 = vpack.c.b16 %v3398, %v3396
        %v3423 = vpack.c.b16 %v3401, %v3399
        %v3424 = vpack.c.b16 %v3402, %v3400
        %v3425 = vpack.c.b16 %v3405, %v3403
        %v3426 = vpack.c.b16 %v3406, %v3404
        %v3427 = vpack.c.b16 %v3409, %v3407
        %v3428 = vpack.c.b16 %v3410, %v3408
        %v3429 = vpack.c.b16 %v3413, %v3411
        %v3430 = vpack.c.b16 %v3414, %v3412
        %3447 = vmatprep.subr.bf16.mxu0 %v3416
        %3448 = vmatpush1.bf16.msra.mxu0 %v3415
        %3449 = vmatprep.subr.bf16.mxu0 %v3418
        %3450 = vmatpush1.bf16.msra.mxu0 %v3417
        %3451 = vmatprep.subr.bf16.mxu0 %v3420
        %3452 = vmatpush1.bf16.msra.mxu0 %v3419
        %3453 = vmatprep.subr.bf16.mxu0 %v3422
        %3454 = vmatpush1.bf16.msra.mxu0 %v3421
        %3455 = vmatprep.subr.bf16.mxu0 %v3424
        %3456 = vmatpush1.bf16.msra.mxu0 %v3423
        %3457 = vmatprep.subr.bf16.mxu0 %v3426
        %3458 = vmatpush1.bf16.msra.mxu0 %v3425
        %3459 = vmatprep.subr.bf16.mxu0 %v3428
        %3460 = vmatpush1.bf16.msra.mxu0 %v3427
        %3461 = vmatprep.subr.bf16.mxu0 %v3430
        %3462 = vmatpush1.bf16.msra.mxu0 %v3429
        %3463 = vmatprep.subr.bf16.mxu0 0
        %3464 = vmatpush1.bf16.msra.mxu0 0
        %3465 = vmatprep.subr.bf16.mxu0 0
        %3466 = vmatpush1.bf16.msra.mxu0 0
        %3467 = vmatprep.subr.bf16.mxu0 0
        %3468 = vmatpush1.bf16.msra.mxu0 0
        %3469 = vmatprep.subr.bf16.mxu0 0
        %3470 = vmatpush1.bf16.msra.mxu0 0
        %3471 = vmatprep.subr.bf16.mxu0 0
        %3472 = vmatpush1.bf16.msra.mxu0 0
        %3473 = vmatprep.subr.bf16.mxu0 0
        %3474 = vmatpush1.bf16.msra.mxu0 0
        %3475 = vmatprep.subr.bf16.mxu0 0
        %3476 = vmatpush1.bf16.msra.mxu0 0
        %3477 = vmatprep.subr.bf16.mxu0 0
        %3478 = vmatpush1.bf16.msra.mxu0 0
        %3479 = vmatprep.mubr.bf16.mxu0 0
        %3480 = vmatmul.mubr.bf16.gmra.mrb[0].mxu0 %v3331
        %v3481 = vpop.f32.mrb[0].mxu0
        %v3482 = vadd.f32 %v3360, %v3481
        %v3483 = vpop.f32.mrb[0].mxu0
        %v3484 = vadd.f32 %v3364, %v3483
        %v3485 = vpop.f32.mrb[0].mxu0
        %v3486 = vadd.f32 %v3360, %v3485
        %v3487 = vpop.f32.mrb[0].mxu0
        %v3488 = vadd.f32 %v3364, %v3487
        %3489 = vmatprep.mubr.bf16.mxu0 0
        %3490 = vmatmul.mubr.bf16.gmra.mrb[0].mxu0 %v3332
        %v3491 = vpop.f32.mrb[0].mxu0
        %v3492 = vadd.f32 %v3360, %v3491
        %v3493 = vpop.f32.mrb[0].mxu0
        %v3494 = vadd.f32 %v3364, %v3493
        %v3495 = vpop.f32.mrb[0].mxu0
        %v3496 = vadd.f32 %v3360, %v3495
        %v3497 = vpop.f32.mrb[0].mxu0
        %v3498 = vadd.f32 %v3364, %v3497
        %3499 = vmatprep.mubr.bf16.mxu0 0
        %3500 = vmatmul.mubr.bf16.gmra.mrb[0].mxu0 %v3333
        %v3501 = vpop.f32.mrb[0].mxu0
        %v3502 = vadd.f32 %v3360, %v3501
        %v3503 = vpop.f32.mrb[0].mxu0
        %v3504 = vadd.f32 %v3364, %v3503
        %v3505 = vpop.f32.mrb[0].mxu0
        %v3506 = vadd.f32 %v3360, %v3505
        %v3507 = vpop.f32.mrb[0].mxu0
        %v3508 = vadd.f32 %v3364, %v3507
        %3509 = vmatprep.mubr.bf16.mxu0 0
        %3510 = vmatmul.mubr.bf16.gmra.mrb[0].mxu0 %v3334
        %v3511 = vpop.f32.mrb[0].mxu0
        %v3512 = vadd.f32 %v3360, %v3511
        %v3513 = vpop.f32.mrb[0].mxu0
        %v3514 = vadd.f32 %v3364, %v3513
        %v3515 = vpop.f32.mrb[0].mxu0
        %v3516 = vadd.f32 %v3360, %v3515
        %v3517 = vpop.f32.mrb[0].mxu0
        %v3518 = vadd.f32 %v3364, %v3517
        %3519 = vmatprep.mubr.bf16.mxu0 0
        %3520 = vmatmul.mubr.bf16.gmra.mrb[0].mxu0 %v3335
        %v3521 = vpop.f32.mrb[0].mxu0
        %v3522 = vadd.f32 %v3360, %v3521
        %v3523 = vpop.f32.mrb[0].mxu0
        %v3524 = vadd.f32 %v3364, %v3523
        %v3525 = vpop.f32.mrb[0].mxu0
        %v3526 = vadd.f32 %v3360, %v3525
        %v3527 = vpop.f32.mrb[0].mxu0
        %v3528 = vadd.f32 %v3364, %v3527
        %3529 = vmatprep.mubr.bf16.mxu0 0
        %3530 = vmatmul.mubr.bf16.gmra.mrb[0].mxu0 %v3336
        %v3531 = vpop.f32.mrb[0].mxu0
        %v3532 = vadd.f32 %v3360, %v3531
        %v3533 = vpop.f32.mrb[0].mxu0
        %v3534 = vadd.f32 %v3364, %v3533
        %v3535 = vpop.f32.mrb[0].mxu0
        %v3536 = vadd.f32 %v3360, %v3535
        %v3537 = vpop.f32.mrb[0].mxu0
        %v3538 = vadd.f32 %v3364, %v3537
        %3539 = vmatprep.mubr.bf16.mxu0 0
        %3540 = vmatmul.mubr.bf16.gmra.mrb[0].mxu0 %v3337
        %v3541 = vpop.f32.mrb[0].mxu0
        %v3542 = vadd.f32 %v3360, %v3541
        %v3543 = vpop.f32.mrb[0].mxu0
        %v3544 = vadd.f32 %v3364, %v3543
        %v3545 = vpop.f32.mrb[0].mxu0
        %v3546 = vadd.f32 %v3360, %v3545
        %v3547 = vpop.f32.mrb[0].mxu0
        %v3548 = vadd.f32 %v3364, %v3547
        %3549 = vmatprep.mubr.bf16.mxu0 0
        %3550 = vmatmul.mubr.bf16.gmra.mrb[0].mxu0 %v3338
        %v3551 = vpop.f32.mrb[0].mxu0
        %v3552 = vadd.f32 %v3360, %v3551
        %v3553 = vpop.f32.mrb[0].mxu0
        %v3554 = vadd.f32 %v3364, %v3553
        %v3555 = vpop.f32.mrb[0].mxu0
        %v3556 = vadd.f32 %v3360, %v3555
        %v3557 = vpop.f32.mrb[0].mxu0
        %v3558 = vadd.f32 %v3364, %v3557
        %3559 = vdwg.mxu0
        %v3560 = vmax.f32 %v3482, 0.0
        %v3561 = vmax.f32 %v3484, 0.0
        %v3562 = vmax.f32 %v3486, 0.0
        %v3563 = vmax.f32 %v3488, 0.0
        %v3564 = vmax.f32 %v3492, 0.0
        %v3565 = vmax.f32 %v3494, 0.0
        %v3566 = vmax.f32 %v3496, 0.0
        %v3567 = vmax.f32 %v3498, 0.0
        %v3568 = vmax.f32 %v3502, 0.0
        %v3569 = vmax.f32 %v3504, 0.0
        %v3570 = vmax.f32 %v3506, 0.0
        %v3571 = vmax.f32 %v3508, 0.0
        %v3572 = vmax.f32 %v3512, 0.0
        %v3573 = vmax.f32 %v3514, 0.0
        %v3574 = vmax.f32 %v3516, 0.0
        %v3575 = vmax.f32 %v3518, 0.0
        %v3576 = vmax.f32 %v3522, 0.0
        %v3577 = vmax.f32 %v3524, 0.0
        %v3578 = vmax.f32 %v3526, 0.0
        %v3579 = vmax.f32 %v3528, 0.0
        %v3580 = vmax.f32 %v3532, 0.0
        %v3581 = vmax.f32 %v3534, 0.0
        %v3582 = vmax.f32 %v3536, 0.0
        %v3583 = vmax.f32 %v3538, 0.0
        %v3584 = vmax.f32 %v3542, 0.0
        %v3585 = vmax.f32 %v3544, 0.0
        %v3586 = vmax.f32 %v3546, 0.0
        %v3587 = vmax.f32 %v3548, 0.0
        %v3588 = vmax.f32 %v3552, 0.0
        %v3589 = vmax.f32 %v3554, 0.0
        %v3590 = vmax.f32 %v3556, 0.0
        %v3591 = vmax.f32 %v3558, 0.0
        %v3592 = vpack.c.bf16 %v3562, %v3560
        %v3593 = vpack.c.bf16 %v3563, %v3561
        %v3594 = vpack.c.bf16 %v3566, %v3564
        %v3595 = vpack.c.bf16 %v3567, %v3565
        %v3596 = vpack.c.bf16 %v3570, %v3568
        %v3597 = vpack.c.bf16 %v3571, %v3569
        %v3598 = vpack.c.bf16 %v3574, %v3572
        %v3599 = vpack.c.bf16 %v3575, %v3573
        %v3600 = vpack.c.bf16 %v3578, %v3576
        %v3601 = vpack.c.bf16 %v3579, %v3577
        %v3602 = vpack.c.bf16 %v3582, %v3580
        %v3603 = vpack.c.bf16 %v3583, %v3581
        %v3604 = vpack.c.bf16 %v3586, %v3584
        %v3605 = vpack.c.bf16 %v3587, %v3585
        %v3606 = vpack.c.bf16 %v3590, %v3588
        %v3607 = vpack.c.bf16 %v3591, %v3589
        %v3608 = vld [vmem:[#allocation19] sm:$0xf]
        %v3609 = vld [vmem:[#allocation19 + $0x4] sm:$0xf]
        %v3610 = vld [vmem:[#allocation19 + $0x8] sm:$0xf]
        %v3611 = vld [vmem:[#allocation19 + $0xc] sm:$0xf]
        %v3612 = vld [vmem:[#allocation19 + $0x10] sm:$0xf]
        %v3613 = vld [vmem:[#allocation19 + $0x14] sm:$0xf]
        %v3614 = vld [vmem:[#allocation19 + $0x18] sm:$0xf]
        %v3615 = vld [vmem:[#allocation19 + $0x1c] sm:$0xf]
        %v3616 = vld [vmem:[#allocation19 + $0x20] sm:$0xf]
        %v3617 = vld [vmem:[#allocation19 + $0x24] sm:$0xf]
        %v3618 = vld [vmem:[#allocation19 + $0x28] sm:$0xf]
        %v3619 = vld [vmem:[#allocation19 + $0x2c] sm:$0xf]
        %v3620 = vld [vmem:[#allocation19 + $0x30] sm:$0xf]
        %v3621 = vld [vmem:[#allocation19 + $0x34] sm:$0xf]
        %v3622 = vld [vmem:[#allocation19 + $0x38] sm:$0xf]
        %v3623 = vld [vmem:[#allocation19 + $0x3c] sm:$0xf]
        %v3624 = vld [vmem:[#allocation19 + $0x40] sm:$0xf]
        %v3625 = vld [vmem:[#allocation19 + $0x44] sm:$0xf]
        %v3626 = vld [vmem:[#allocation19 + $0x48] sm:$0xf]
        %v3627 = vld [vmem:[#allocation19 + $0x4c] sm:$0xf]
        %v3628 = vld [vmem:[#allocation19 + $0x50] sm:$0xf]
        %v3629 = vld [vmem:[#allocation19 + $0x54] sm:$0xf]
        %v3630 = vld [vmem:[#allocation19 + $0x58] sm:$0xf]
        %v3631 = vld [vmem:[#allocation19 + $0x5c] sm:$0xf]
        %v3632 = vld [vmem:[#allocation19 + $0x60] sm:$0xf]
        %v3633 = vld [vmem:[#allocation19 + $0x64] sm:$0xf]
        %v3634 = vld [vmem:[#allocation19 + $0x68] sm:$0xf]
        %v3635 = vld [vmem:[#allocation19 + $0x6c] sm:$0xf]
        %v3636 = vld [vmem:[#allocation19 + $0x70] sm:$0xf]
        %v3637 = vld [vmem:[#allocation19 + $0x74] sm:$0xf]
        %v3638 = vld [vmem:[#allocation19 + $0x78] sm:$0xf]
        %v3639 = vld [vmem:[#allocation19 + $0x7c] sm:$0xf]
        %v3640 = vld [vmem:[%s20] sm:$0x1]
        %v3642 = vlaneseq
        %v3643 = vshrl.u32 %v3642, 7
        %v3644 = vsub.s32 0, %v3643
        %v3645 = vrot.slane %v3640, %v3644
        %v3679 = vunpack.c.l.b16 %v3608
        %v3680 = vunpack.c.l.b16 %v3609
        %v3681 = vunpack.c.l.b16 %v3610
        %v3682 = vunpack.c.l.b16 %v3611
        %v3683 = vunpack.c.l.b16 %v3612
        %v3684 = vunpack.c.l.b16 %v3613
        %v3685 = vunpack.c.l.b16 %v3614
        %v3686 = vunpack.c.l.b16 %v3615
        %v3687 = vunpack.c.l.b16 %v3616
        %v3688 = vunpack.c.l.b16 %v3617
        %v3689 = vunpack.c.l.b16 %v3618
        %v3690 = vunpack.c.l.b16 %v3619
        %v3691 = vunpack.c.l.b16 %v3620
        %v3692 = vunpack.c.l.b16 %v3621
        %v3693 = vunpack.c.l.b16 %v3622
        %v3694 = vunpack.c.l.b16 %v3623
        %v3695 = vunpack.c.l.b16 %v3624
        %v3696 = vunpack.c.l.b16 %v3625
        %v3697 = vunpack.c.l.b16 %v3626
        %v3698 = vunpack.c.l.b16 %v3627
        %v3699 = vunpack.c.l.b16 %v3628
        %v3700 = vunpack.c.l.b16 %v3629
        %v3701 = vunpack.c.l.b16 %v3630
        %v3702 = vunpack.c.l.b16 %v3631
        %v3703 = vunpack.c.l.b16 %v3632
        %v3704 = vunpack.c.l.b16 %v3633
        %v3705 = vunpack.c.l.b16 %v3634
        %v3706 = vunpack.c.l.b16 %v3635
        %v3707 = vunpack.c.l.b16 %v3636
        %v3708 = vunpack.c.l.b16 %v3637
        %v3709 = vunpack.c.l.b16 %v3638
        %v3710 = vunpack.c.l.b16 %v3639
        %v3711 = vpack.c.b16 %v3680, %v3679
        %v3712 = vpack.c.b16 %v3682, %v3681
        %v3713 = vpack.c.b16 %v3684, %v3683
        %v3714 = vpack.c.b16 %v3686, %v3685
        %v3715 = vpack.c.b16 %v3688, %v3687
        %v3716 = vpack.c.b16 %v3690, %v3689
        %v3717 = vpack.c.b16 %v3692, %v3691
        %v3718 = vpack.c.b16 %v3694, %v3693
        %v3719 = vpack.c.b16 %v3696, %v3695
        %v3720 = vpack.c.b16 %v3698, %v3697
        %v3721 = vpack.c.b16 %v3700, %v3699
        %v3722 = vpack.c.b16 %v3702, %v3701
        %v3723 = vpack.c.b16 %v3704, %v3703
        %v3724 = vpack.c.b16 %v3706, %v3705
        %v3725 = vpack.c.b16 %v3708, %v3707
        %v3726 = vpack.c.b16 %v3710, %v3709
        %3743 = vmatprep.subr.bf16.mxu0 0
        %3744 = vmatpush1.bf16.msra.mxu0 %v3711
        %3745 = vmatprep.subr.bf16.mxu0 0
        %3746 = vmatpush1.bf16.msra.mxu0 %v3712
        %3747 = vmatprep.subr.bf16.mxu0 0
        %3748 = vmatpush1.bf16.msra.mxu0 %v3713
        %3749 = vmatprep.subr.bf16.mxu0 0
        %3750 = vmatpush1.bf16.msra.mxu0 %v3714
        %3751 = vmatprep.subr.bf16.mxu0 0
        %3752 = vmatpush1.bf16.msra.mxu0 %v3715
        %3753 = vmatprep.subr.bf16.mxu0 0
        %3754 = vmatpush1.bf16.msra.mxu0 %v3716
        %3755 = vmatprep.subr.bf16.mxu0 0
        %3756 = vmatpush1.bf16.msra.mxu0 %v3717
        %3757 = vmatprep.subr.bf16.mxu0 0
        %3758 = vmatpush1.bf16.msra.mxu0 %v3718
        %3759 = vmatprep.subr.bf16.mxu0 0
        %3760 = vmatpush1.bf16.msra.mxu0 %v3719
        %3761 = vmatprep.subr.bf16.mxu0 0
        %3762 = vmatpush1.bf16.msra.mxu0 %v3720
        %3763 = vmatprep.subr.bf16.mxu0 0
        %3764 = vmatpush1.bf16.msra.mxu0 %v3721
        %3765 = vmatprep.subr.bf16.mxu0 0
        %3766 = vmatpush1.bf16.msra.mxu0 %v3722
        %3767 = vmatprep.subr.bf16.mxu0 0
        %3768 = vmatpush1.bf16.msra.mxu0 %v3723
        %3769 = vmatprep.subr.bf16.mxu0 0
        %3770 = vmatpush1.bf16.msra.mxu0 %v3724
        %3771 = vmatprep.subr.bf16.mxu0 0
        %3772 = vmatpush1.bf16.msra.mxu0 %v3725
        %3773 = vmatprep.subr.bf16.mxu0 0
        %3774 = vmatpush1.bf16.msra.mxu0 %v3726
        %3775 = vmatprep.mubr.bf16.mxu0 %v3593
        %3776 = vmatmul.mubr.bf16.gmra.mrb[0].mxu0 %v3592
        %v3777 = vpop.f32.mrb[0].mxu0
        %v3778 = vadd.f32 %v3645, %v3777
        %v3779 = vpop.f32.mrb[0].mxu0
        %v3780 = vpop.f32.mrb[0].mxu0
        %v3781 = vadd.f32 %v3645, %v3780
        %v3782 = vpop.f32.mrb[0].mxu0
        %3783 = vmatprep.mubr.bf16.mxu0 %v3595
        %3784 = vmatmul.mubr.bf16.gmra.mrb[0].mxu0 %v3594
        %v3785 = vpop.f32.mrb[0].mxu0
        %v3786 = vadd.f32 %v3645, %v3785
        %v3787 = vpop.f32.mrb[0].mxu0
        %v3788 = vpop.f32.mrb[0].mxu0
        %v3789 = vadd.f32 %v3645, %v3788
        %v3790 = vpop.f32.mrb[0].mxu0
        %3791 = vmatprep.mubr.bf16.mxu0 %v3597
        %3792 = vmatmul.mubr.bf16.gmra.mrb[0].mxu0 %v3596
        %v3793 = vpop.f32.mrb[0].mxu0
        %v3794 = vadd.f32 %v3645, %v3793
        %v3795 = vpop.f32.mrb[0].mxu0
        %v3796 = vpop.f32.mrb[0].mxu0
        %v3797 = vadd.f32 %v3645, %v3796
        %v3798 = vpop.f32.mrb[0].mxu0
        %3799 = vmatprep.mubr.bf16.mxu0 %v3599
        %3800 = vmatmul.mubr.bf16.gmra.mrb[0].mxu0 %v3598
        %v3801 = vpop.f32.mrb[0].mxu0
        %v3802 = vadd.f32 %v3645, %v3801
        %v3803 = vpop.f32.mrb[0].mxu0
        %v3804 = vpop.f32.mrb[0].mxu0
        %v3805 = vadd.f32 %v3645, %v3804
        %v3806 = vpop.f32.mrb[0].mxu0
        %3807 = vmatprep.mubr.bf16.mxu0 %v3601
        %3808 = vmatmul.mubr.bf16.gmra.mrb[0].mxu0 %v3600
        %v3809 = vpop.f32.mrb[0].mxu0
        %v3810 = vadd.f32 %v3645, %v3809
        %v3811 = vpop.f32.mrb[0].mxu0
        %v3812 = vpop.f32.mrb[0].mxu0
        %v3813 = vadd.f32 %v3645, %v3812
        %v3814 = vpop.f32.mrb[0].mxu0
        %3815 = vmatprep.mubr.bf16.mxu0 %v3603
        %3816 = vmatmul.mubr.bf16.gmra.mrb[0].mxu0 %v3602
        %v3817 = vpop.f32.mrb[0].mxu0
        %v3818 = vadd.f32 %v3645, %v3817
        %v3819 = vpop.f32.mrb[0].mxu0
        %v3820 = vpop.f32.mrb[0].mxu0
        %v3821 = vadd.f32 %v3645, %v3820
        %v3822 = vpop.f32.mrb[0].mxu0
        %3823 = vmatprep.mubr.bf16.mxu0 %v3605
        %3824 = vmatmul.mubr.bf16.gmra.mrb[0].mxu0 %v3604
        %v3825 = vpop.f32.mrb[0].mxu0
        %v3826 = vadd.f32 %v3645, %v3825
        %v3827 = vpop.f32.mrb[0].mxu0
        %v3828 = vpop.f32.mrb[0].mxu0
        %v3829 = vadd.f32 %v3645, %v3828
        %v3830 = vpop.f32.mrb[0].mxu0
        %3831 = vmatprep.mubr.bf16.mxu0 %v3607
        %3832 = vmatmul.mubr.bf16.gmra.mrb[0].mxu0 %v3606
        %v3833 = vpop.f32.mrb[0].mxu0
        %v3834 = vadd.f32 %v3645, %v3833
        %v3835 = vpop.f32.mrb[0].mxu0
        %v3836 = vpop.f32.mrb[0].mxu0
        %v3837 = vadd.f32 %v3645, %v3836
        %v3838 = vpop.f32.mrb[0].mxu0
        %3839 = vdwg.mxu0
        %v3840 = vadd.f32 %v3778, %v3315
        %v3841 = vadd.f32 %v3781, %v3316
        %v3842 = vadd.f32 %v3786, %v3317
        %v3843 = vadd.f32 %v3789, %v3318
        %v3844 = vadd.f32 %v3794, %v3319
        %v3845 = vadd.f32 %v3797, %v3320
        %v3846 = vadd.f32 %v3802, %v3321
        %v3847 = vadd.f32 %v3805, %v3322
        %v3848 = vadd.f32 %v3810, %v3323
        %v3849 = vadd.f32 %v3813, %v3324
        %v3850 = vadd.f32 %v3818, %v3325
        %v3851 = vadd.f32 %v3821, %v3326
        %v3852 = vadd.f32 %v3826, %v3327
        %v3853 = vadd.f32 %v3829, %v3328
        %v3854 = vadd.f32 %v3834, %v3329
        %v3855 = vadd.f32 %v3837, %v3330
        %3856 = vadd.xlane.f32.xlu0 %v3840
        %v3857 = vpop.xlane.xlu0 %3856
        %3858 = vadd.xlane.f32.xlu0 %v3841
        %v3859 = vpop.xlane.xlu0 %3858
        %3860 = vadd.xlane.f32.xlu0 %v3842
        %v3861 = vpop.xlane.xlu0 %3860
        %3862 = vadd.xlane.f32.xlu0 %v3843
        %v3863 = vpop.xlane.xlu0 %3862
        %3864 = vadd.xlane.f32.xlu0 %v3844
        %v3865 = vpop.xlane.xlu0 %3864
        %3866 = vadd.xlane.f32.xlu0 %v3845
        %v3867 = vpop.xlane.xlu0 %3866
        %3868 = vadd.xlane.f32.xlu0 %v3846
        %v3869 = vpop.xlane.xlu0 %3868
        %3870 = vadd.xlane.f32.xlu0 %v3847
        %v3871 = vpop.xlane.xlu0 %3870
        %3872 = vadd.xlane.f32.xlu0 %v3848
        %v3873 = vpop.xlane.xlu0 %3872
        %3874 = vadd.xlane.f32.xlu0 %v3849
        %v3875 = vpop.xlane.xlu0 %3874
        %3876 = vadd.xlane.f32.xlu0 %v3850
        %v3877 = vpop.xlane.xlu0 %3876
        %3878 = vadd.xlane.f32.xlu0 %v3851
        %v3879 = vpop.xlane.xlu0 %3878
        %3880 = vadd.xlane.f32.xlu0 %v3852
        %v3881 = vpop.xlane.xlu0 %3880
        %3882 = vadd.xlane.f32.xlu0 %v3853
        %v3883 = vpop.xlane.xlu0 %3882
        %3884 = vadd.xlane.f32.xlu0 %v3854
        %v3885 = vpop.xlane.xlu0 %3884
        %3886 = vadd.xlane.f32.xlu0 %v3855
        %v3887 = vpop.xlane.xlu0 %3886
        %v3888 = vmul.f32 %v3857, %v2052
        %v3889 = vmul.f32 %v3859, %v2052
        %v3890 = vmul.f32 %v3861, %v2052
        %v3891 = vmul.f32 %v3863, %v2052
        %v3892 = vmul.f32 %v3865, %v2052
        %v3893 = vmul.f32 %v3867, %v2052
        %v3894 = vmul.f32 %v3869, %v2052
        %v3895 = vmul.f32 %v3871, %v2052
        %v3896 = vmul.f32 %v3873, %v2052
        %v3897 = vmul.f32 %v3875, %v2052
        %v3898 = vmul.f32 %v3877, %v2052
        %v3899 = vmul.f32 %v3879, %v2052
        %v3900 = vmul.f32 %v3881, %v2052
        %v3901 = vmul.f32 %v3883, %v2052
        %v3902 = vmul.f32 %v3885, %v2052
        %v3903 = vmul.f32 %v3887, %v2052
        %v3904 = vsub.f32 %v3840, %v3888
        %v3905 = vsub.f32 %v3841, %v3889
        %v3906 = vsub.f32 %v3842, %v3890
        %v3907 = vsub.f32 %v3843, %v3891
        %v3908 = vsub.f32 %v3844, %v3892
        %v3909 = vsub.f32 %v3845, %v3893
        %v3910 = vsub.f32 %v3846, %v3894
        %v3911 = vsub.f32 %v3847, %v3895
        %v3912 = vsub.f32 %v3848, %v3896
        %v3913 = vsub.f32 %v3849, %v3897
        %v3914 = vsub.f32 %v3850, %v3898
        %v3915 = vsub.f32 %v3851, %v3899
        %v3916 = vsub.f32 %v3852, %v3900
        %v3917 = vsub.f32 %v3853, %v3901
        %v3918 = vsub.f32 %v3854, %v3902
        %v3919 = vsub.f32 %v3855, %v3903
        %v3920 = vmul.f32 %v3904, %v3904
        %v3921 = vmul.f32 %v3905, %v3905
        %v3922 = vmul.f32 %v3906, %v3906
        %v3923 = vmul.f32 %v3907, %v3907
        %v3924 = vmul.f32 %v3908, %v3908
        %v3925 = vmul.f32 %v3909, %v3909
        %v3926 = vmul.f32 %v3910, %v3910
        %v3927 = vmul.f32 %v3911, %v3911
        %v3928 = vmul.f32 %v3912, %v3912
        %v3929 = vmul.f32 %v3913, %v3913
        %v3930 = vmul.f32 %v3914, %v3914
        %v3931 = vmul.f32 %v3915, %v3915
        %v3932 = vmul.f32 %v3916, %v3916
        %v3933 = vmul.f32 %v3917, %v3917
        %v3934 = vmul.f32 %v3918, %v3918
        %v3935 = vmul.f32 %v3919, %v3919
        %3936 = vadd.xlane.f32.xlu0 %v3920
        %v3937 = vpop.xlane.xlu0 %3936
        %3938 = vadd.xlane.f32.xlu0 %v3921
        %v3939 = vpop.xlane.xlu0 %3938
        %3940 = vadd.xlane.f32.xlu0 %v3922
        %v3941 = vpop.xlane.xlu0 %3940
        %3942 = vadd.xlane.f32.xlu0 %v3923
        %v3943 = vpop.xlane.xlu0 %3942
        %3944 = vadd.xlane.f32.xlu0 %v3924
        %v3945 = vpop.xlane.xlu0 %3944
        %3946 = vadd.xlane.f32.xlu0 %v3925
        %v3947 = vpop.xlane.xlu0 %3946
        %3948 = vadd.xlane.f32.xlu0 %v3926
        %v3949 = vpop.xlane.xlu0 %3948
        %3950 = vadd.xlane.f32.xlu0 %v3927
        %v3951 = vpop.xlane.xlu0 %3950
        %3952 = vadd.xlane.f32.xlu0 %v3928
        %v3953 = vpop.xlane.xlu0 %3952
        %3954 = vadd.xlane.f32.xlu0 %v3929
        %v3955 = vpop.xlane.xlu0 %3954
        %3956 = vadd.xlane.f32.xlu0 %v3930
        %v3957 = vpop.xlane.xlu0 %3956
        %3958 = vadd.xlane.f32.xlu0 %v3931
        %v3959 = vpop.xlane.xlu0 %3958
        %3960 = vadd.xlane.f32.xlu0 %v3932
        %v3961 = vpop.xlane.xlu0 %3960
        %3962 = vadd.xlane.f32.xlu0 %v3933
        %v3963 = vpop.xlane.xlu0 %3962
        %3964 = vadd.xlane.f32.xlu0 %v3934
        %v3965 = vpop.xlane.xlu0 %3964
        %3966 = vadd.xlane.f32.xlu0 %v3935
        %v3967 = vpop.xlane.xlu0 %3966
        %v3968 = vmul.f32 %v3937, %v2052
        %v3969 = vmul.f32 %v3939, %v2052
        %v3970 = vmul.f32 %v3941, %v2052
        %v3971 = vmul.f32 %v3943, %v2052
        %v3972 = vmul.f32 %v3945, %v2052
        %v3973 = vmul.f32 %v3947, %v2052
        %v3974 = vmul.f32 %v3949, %v2052
        %v3975 = vmul.f32 %v3951, %v2052
        %v3976 = vmul.f32 %v3953, %v2052
        %v3977 = vmul.f32 %v3955, %v2052
        %v3978 = vmul.f32 %v3957, %v2052
        %v3979 = vmul.f32 %v3959, %v2052
        %v3980 = vmul.f32 %v3961, %v2052
        %v3981 = vmul.f32 %v3963, %v2052
        %v3982 = vmul.f32 %v3965, %v2052
        %v3983 = vmul.f32 %v3967, %v2052
        %v3984 = vadd.f32 %v3968, 1e-05
        %v3985 = vadd.f32 %v3969, 1e-05
        %v3986 = vadd.f32 %v3970, 1e-05
        %v3987 = vadd.f32 %v3971, 1e-05
        %v3988 = vadd.f32 %v3972, 1e-05
        %v3989 = vadd.f32 %v3973, 1e-05
        %v3990 = vadd.f32 %v3974, 1e-05
        %v3991 = vadd.f32 %v3975, 1e-05
        %v3992 = vadd.f32 %v3976, 1e-05
        %v3993 = vadd.f32 %v3977, 1e-05
        %v3994 = vadd.f32 %v3978, 1e-05
        %v3995 = vadd.f32 %v3979, 1e-05
        %v3996 = vadd.f32 %v3980, 1e-05
        %v3997 = vadd.f32 %v3981, 1e-05
        %v3998 = vadd.f32 %v3982, 1e-05
        %v3999 = vadd.f32 %v3983, 1e-05
        %v4000 = vrsqrt.pop %v3984
        %v4001 = vrsqrt.pop %v3985
        %v4002 = vrsqrt.pop %v3986
        %v4003 = vrsqrt.pop %v3987
        %v4004 = vrsqrt.pop %v3988
        %v4005 = vrsqrt.pop %v3989
        %v4006 = vrsqrt.pop %v3990
        %v4007 = vrsqrt.pop %v3991
        %v4008 = vrsqrt.pop %v3992
        %v4009 = vrsqrt.pop %v3993
        %v4010 = vrsqrt.pop %v3994
        %v4011 = vrsqrt.pop %v3995
        %v4012 = vrsqrt.pop %v3996
        %v4013 = vrsqrt.pop %v3997
        %v4014 = vrsqrt.pop %v3998
        %v4015 = vrsqrt.pop %v3999
        %v4016 = vmul.f32 %v3904, %v4000
        %v4017 = vmul.f32 %v3905, %v4001
        %v4018 = vmul.f32 %v3906, %v4002
        %v4019 = vmul.f32 %v3907, %v4003
        %v4020 = vmul.f32 %v3908, %v4004
        %v4021 = vmul.f32 %v3909, %v4005
        %v4022 = vmul.f32 %v3910, %v4006
        %v4023 = vmul.f32 %v3911, %v4007
        %v4024 = vmul.f32 %v3912, %v4008
        %v4025 = vmul.f32 %v3913, %v4009
        %v4026 = vmul.f32 %v3914, %v4010
        %v4027 = vmul.f32 %v3915, %v4011
        %v4028 = vmul.f32 %v3916, %v4012
        %v4029 = vmul.f32 %v3917, %v4013
        %v4030 = vmul.f32 %v3918, %v4014
        %v4031 = vmul.f32 %v3919, %v4015
        %v4032 = vld [vmem:[%s21] sm:$0x1]
        %v4034 = vlaneseq
        %v4035 = vshrl.u32 %v4034, 7
        %v4036 = vsub.s32 0, %v4035
        %v4037 = vrot.slane %v4032, %v4036
        %v4039 = vmul.f32 %v4016, %v4037
        %v4040 = vmul.f32 %v4017, %v4037
        %v4041 = vmul.f32 %v4018, %v4037
        %v4042 = vmul.f32 %v4019, %v4037
        %v4043 = vmul.f32 %v4020, %v4037
        %v4044 = vmul.f32 %v4021, %v4037
        %v4045 = vmul.f32 %v4022, %v4037
        %v4046 = vmul.f32 %v4023, %v4037
        %v4047 = vmul.f32 %v4024, %v4037
        %v4048 = vmul.f32 %v4025, %v4037
        %v4049 = vmul.f32 %v4026, %v4037
        %v4050 = vmul.f32 %v4027, %v4037
        %v4051 = vmul.f32 %v4028, %v4037
        %v4052 = vmul.f32 %v4029, %v4037
        %v4053 = vmul.f32 %v4030, %v4037
        %v4054 = vmul.f32 %v4031, %v4037
        %v4055 = vld [vmem:[%s22] sm:$0x1]
        %v4057 = vlaneseq
        %v4058 = vshrl.u32 %v4057, 7
        %v4059 = vsub.s32 0, %v4058
        %v4060 = vrot.slane %v4055, %v4059
        %v4062 = vadd.f32 %v4039, %v4060
        %v4063 = vadd.f32 %v4040, %v4060
        %v4064 = vadd.f32 %v4041, %v4060
        %v4065 = vadd.f32 %v4042, %v4060
        %v4066 = vadd.f32 %v4043, %v4060
        %v4067 = vadd.f32 %v4044, %v4060
        %v4068 = vadd.f32 %v4045, %v4060
        %v4069 = vadd.f32 %v4046, %v4060
        %v4070 = vadd.f32 %v4047, %v4060
        %v4071 = vadd.f32 %v4048, %v4060
        %v4072 = vadd.f32 %v4049, %v4060
        %v4073 = vadd.f32 %v4050, %v4060
        %v4074 = vadd.f32 %v4051, %v4060
        %v4075 = vadd.f32 %v4052, %v4060
        %v4076 = vadd.f32 %v4053, %v4060
        %v4077 = vadd.f32 %v4054, %v4060
        %4078 = vst [vmem:[%s873] sm:$0xff] %v4062
        %4079 = vst [vmem:[%s873 + $0x8] sm:$0xff] %v4063
        %4080 = vst [vmem:[%s873 + $0x10] sm:$0xff] %v4064
        %4081 = vst [vmem:[%s873 + $0x18] sm:$0xff] %v4065
        %4082 = vst [vmem:[%s873 + $0x20] sm:$0xff] %v4066
        %4083 = vst [vmem:[%s873 + $0x28] sm:$0xff] %v4067
        %4084 = vst [vmem:[%s873 + $0x30] sm:$0xff] %v4068
        %4085 = vst [vmem:[%s873 + $0x38] sm:$0xff] %v4069
        %4086 = vst [vmem:[%s873 + $0x40] sm:$0xff] %v4070
        %4087 = vst [vmem:[%s873 + $0x48] sm:$0xff] %v4071
        %4088 = vst [vmem:[%s873 + $0x50] sm:$0xff] %v4072
        %4089 = vst [vmem:[%s873 + $0x58] sm:$0xff] %v4073
        %4090 = vst [vmem:[%s873 + $0x60] sm:$0xff] %v4074
        %4091 = vst [vmem:[%s873 + $0x68] sm:$0xff] %v4075
        %4092 = vst [vmem:[%s873 + $0x70] sm:$0xff] %v4076
        %4093 = vst [vmem:[%s873 + $0x78] sm:$0xff] %v4077
        %s4094 = sand.u32 %s541, 1
        %s4095 = scalar_lea.sflag [#allocation4], %s4094
        %s4096 = sand.u32 %s541, 1
        %s4097 = smul.addr %s4096, 128
        %s4098 = scalar_lea.vmem [#allocation20], %s4097
        // Predicated region
        $region164: #{tpu_custom_call.1} parent=111 // pred_check
          %p4099 = pneg %p551
        $region165: #{tpu_custom_call.1} parent=111 // pred_check_branch
          %4101 = sbr.rel (%p4099) target = $region167
        $region166: #{tpu_custom_call.1} parent=111 // pred_region
          %s4102 = smul.u32 16, %s45
          %s4104 = ssub.s32 2048, 2048
          %4105 = vsyncadd %s4095, %s4104
          %s4106 = smul.addr %s4102, 128
          %s4107 = scalar_lea.hbm %s23, %s4106
          %s4108 = sshll.u32 %s4098, 4
          %s4109 = int_to_ptr.vmem [resolvable:$true] %s4108
          %4114 = dma.vmem_to_hbm [thread:$0]  %s4109, 2048, %s4107, %s4095, 128, 128, 8
        $region167: #{tpu_custom_call.1} parent=111 // pred_fallthru
          _
      $region112: #{tpu_custom_call.1} parent=5 // pred_fallthru
        _
      %p4115 = scmp.le.s32.totalorder 2, %s40
      // Predicated region
      $region168: #{tpu_custom_call.1} parent=5 // pred_check
        %p4116 = pneg %p4115
      $region169: #{tpu_custom_call.1} parent=5 // pred_check_branch
        %4118 = sbr.rel (%p4116) target = $region171
      $region170: #{tpu_custom_call.1} parent=5 // pred_region
        %s4119 = ssub.s32 %s40, 2
        // Predicated region
        $region172: #{tpu_custom_call.1} parent=170 // pred_check
          %p4120 = pneg %p557
        $region173: #{tpu_custom_call.1} parent=170 // pred_check_branch
          %4122 = sbr.rel (%p4120) target = $region175
        $region174: #{tpu_custom_call.1} parent=170 // pred_region
          %s4123 = sand.u32 %s542, 1
          %s4124 = scalar_lea.sflag [#allocation4], %s4123
          %s4125 = sand.u32 %s542, 1
          %s4126 = smul.addr %s4125, 128
          %s4127 = scalar_lea.vmem [#allocation20], %s4126
          %4128 = dma.done %s4124, 2048
        $region175: #{tpu_custom_call.1} parent=170 // pred_fallthru
          _
      $region171: #{tpu_custom_call.1} parent=5 // pred_fallthru
        _
    $region6: #{tpu_custom_call.1} parent=1 // loop_footer
      %s44 = sadd.s32 1, %s40
    $region7: #{tpu_custom_call.1} parent=1 // loop_footer_branch
      %39 = sbr.rel target = $region3
    $region8: #{tpu_custom_call.1} parent=1 // loop_exit
      _
    %4129 = vsyncpa [#allocation3], 1
    %s4130 = scalar_lea.sflag [#allocation3], 1
    %4131 = vsyncpa %s4130, 1
    %4132 = vsyncpa [#allocation6], 1
    %4133 = vsyncpa [#allocation9], 1
    %4134 = vsyncpa [#allocation12], 1
    %4135 = vsyncpa [#allocation15], 1
    %4136 = vsyncpa [#allocation18], 1
    %4137 = vsyncpa [#allocation4], 1
    %s4138 = scalar_lea.sflag [#allocation4], 1
    %4139 = vsyncpa %s4138, 1

</llo_original>
